<compile_context>
chip_gen: v7x
topology: tpu7x:2x2x1
jax: 0.10.0
libtpu: 0.0.40
codegen_flags: <defaults>
</compile_context>

<pallas_src>
import jax
import jax.numpy as jnp
from jax.experimental import pallas as pl
from jax.experimental.pallas import tpu as pltpu


def encoder_kernel(x_ref, w0_ref, b0_ref, w1_ref, b1_ref,
                   w2g_ref, w2f_ref, b2_ref, w3_ref, b3_ref, out_ref):
    bt, n, _ = x_ref.shape
    out_c = w3_ref.shape[1]

    x = x_ref[...].reshape(bt * n, 3)                        # (Bt*N, 3) f32

    # --- shared_mlp0 layer 0: Conv1d(3,128)+ReLU as three rank-1 VPU FMAs ---
    w0 = w0_ref[...]                                         # (3, 128) f32
    h0 = (x[:, 0:1] * w0[0:1, :]
          + x[:, 1:2] * w0[1:2, :]
          + x[:, 2:3] * w0[2:3, :]
          + b0_ref[...])
    h0 = jnp.maximum(h0, 0.0)                                # (Bt*N, 128)

    # --- shared_mlp0 layer 1: Conv1d(128,256) on the MXU (bf16 in, f32 acc) ---
    f = jnp.dot(h0.astype(jnp.bfloat16), w1_ref[...],
                preferred_element_type=jnp.float32) + b1_ref[...]     # (Bt*N,256)

    # --- per-cloud global max over the N points ---
    g = jnp.max(f.reshape(bt, n, 256), axis=1)               # (Bt, 256)

    # --- shared_mlp1 layer 0: fused concat([g, f]) @ w2 + ReLU ---
    #     h1 = relu(f @ w2[256:] + g @ w2[:256] + b2)
    hf = jnp.dot(f.astype(jnp.bfloat16), w2f_ref[...],
                 preferred_element_type=jnp.float32)         # (Bt*N, 512)
    hg = jnp.dot(g.astype(jnp.bfloat16), w2g_ref[...],
                 preferred_element_type=jnp.float32) + b2_ref[...]    # (Bt, 512)
    h1 = jnp.maximum(hf.reshape(bt, n, 512) + hg[:, None, :], 0.0)
    h1 = h1.reshape(bt * n, 512).astype(jnp.bfloat16)

    # --- shared_mlp1 layer 1 + final max, tiled over output columns ---
    # 256-lane chunks keep peak live activations at M*256 f32 and let the
    # XLU max of one chunk overlap the MXU matmul of the next.
    if out_c % 256 == 0:
        chunk = 256
    elif out_c % 128 == 0:
        chunk = 128
    else:
        chunk = out_c
    for c0 in range(0, out_c, chunk):
        v = (jnp.dot(h1, w3_ref[:, c0:c0 + chunk],
                     preferred_element_type=jnp.float32)
             + b3_ref[:, c0:c0 + chunk])                     # (Bt*N, chunk)
        out_ref[:, :, c0:c0 + chunk] = jnp.max(
            v.reshape(bt, n, chunk), axis=1, keepdims=True)


def _pick_block_b(batch, n_points, target_rows=512):
    """Largest divisor of `batch` with block_b * n_points ~ target_rows, but
    capped so the grid has >= 2 steps whenever batch >= 2 (v7x: 2 TCs)."""
    bt = max(1, min(batch, max(1, target_rows // max(n_points, 1))))
    while batch % bt:
        bt -= 1
    if batch >= 2 and batch // bt < 2:
        bt = batch // 2
        while batch % bt:
            bt -= 1
    return max(1, bt)


def prepare_params(params):
    """One-time weight preprocessing, hoisted out of the per-call path:
    split w2 into its [g | f] halves and cast large MXU-side weights to bf16."""
    w0, b0, w1, b1, w2, b2, w3, b3 = params
    w2_g, w2_f = w2[:256], w2[256:]          # concat order is [g, f]
    bf16 = lambda a: a.astype(jnp.bfloat16)
    return (w0, b0, bf16(w1), b1, bf16(w2_g), bf16(w2_f), b2, bf16(w3), b3)


def encoder_forward(x, prepared_params, block_b=None):
    """x: (B, N, 3) float32 point cloud. `prepared_params` from prepare_params.
    Returns (B, out_size) float32."""
    w0, b0, w1_c, b1, w2g_c, w2f_c, b2, w3_c, b3 = prepared_params
    B, N, _ = x.shape
    out_size = w3_c.shape[1]

    # Pad N to a multiple of 8 by replicating the last point: duplicates do not
    # change either max reduction, and keep the in-kernel reshapes layout-free.
    pad = (-N) % 8
    if pad:
        x = jnp.concatenate(
            [x, jnp.broadcast_to(x[:, -1:, :], (B, pad, 3))], axis=1)
        N = N + pad

    bt = block_b if block_b is not None else _pick_block_b(B, N)
    assert B % bt == 0, "block_b must divide the batch"

    full = lambda arr: pl.BlockSpec(arr.shape, lambda i: (0,) * arr.ndim)

    out = pl.pallas_call(
        encoder_kernel,
        out_shape=jax.ShapeDtypeStruct((B, 1, out_size), jnp.float32),
        grid_spec=pltpu.PrefetchScalarGridSpec(
            num_scalar_prefetch=0,
            grid=(B // bt,),
            in_specs=[
                pl.BlockSpec((bt, N, 3), lambda i: (i, 0, 0)),   # Bt point clouds
                full(w0), full(b0),
                full(w1_c), full(b1),
                full(w2g_c), full(w2f_c), full(b2),
                full(w3_c), full(b3),
            ],
            out_specs=pl.BlockSpec((bt, 1, out_size), lambda i: (i, 0, 0)),
        ),
        compiler_params=pltpu.CompilerParams(
            dimension_semantics=("parallel",),
            vmem_limit_bytes=48 * 1024 * 1024),
    )(x, w0, b0, w1_c, b1, w2g_c, w2f_c, b2, w3_c, b3)
    return out.reshape(B, out_size)


def init_params(key, out_size=1024):
    """Deterministic synthetic weights. Weight layout: (Cin, Cout), bias (1, Cout)."""
    ks = jax.random.split(key, 8)
    def w(k, cin, cout):
        return jax.random.normal(k, (cin, cout), jnp.float32) * (1.0 / jnp.sqrt(cin))
    def b(k, cout):
        return jax.random.normal(k, (1, cout), jnp.float32) * 0.01
    w0, b0 = w(ks[0], 3, 128),        b(ks[1], 128)
    w1, b1 = w(ks[2], 128, 256),      b(ks[3], 256)
    w2, b2 = w(ks[4], 512, 512),      b(ks[5], 512)
    w3, b3 = w(ks[6], 512, out_size), b(ks[7], out_size)
    return (w0, b0, w1, b1, w2, b2, w3, b3)


def encoder_ref(x, params):
    """Pure-JAX f32 reference mirroring the PyTorch forward."""
    w0, b0, w1, b1, w2, b2, w3, b3 = params
    h0 = jnp.maximum(jnp.einsum('bnc,cd->bnd', x, w0) + b0, 0.0)
    f = jnp.einsum('bnc,cd->bnd', h0, w1) + b1                  # (B,N,256)
    g = jnp.max(f, axis=1, keepdims=True)                       # (B,1,256)
    cat = jnp.concatenate([jnp.broadcast_to(g, f.shape), f], axis=-1)
    h1 = jnp.maximum(jnp.einsum('bnc,cd->bnd', cat, w2) + b2, 0.0)
    v = jnp.einsum('bnc,cd->bnd', h1, w3) + b3                  # (B,N,out)
    return jnp.max(v, axis=1)                                   # (B,out)


if __name__ == "__main__":
    key = jax.random.PRNGKey(0)
    kx, kp = jax.random.split(key)

    B, N, OUT = 2, 64, 1024
    x = jax.random.normal(kx, (B, N, 3), jnp.float32)            # partial point cloud
    params = init_params(kp, out_size=OUT)

    # One-time weight preprocessing (hoisted out of the per-call path).
    prepared = jax.block_until_ready(prepare_params(params))

    out = encoder_forward(x, prepared)
    out = jax.block_until_ready(out)

    ref = encoder_ref(x, params)
    assert out.shape == (B, OUT)
    # bf16 weight/activation storage on the MXU path -> slightly looser tolerance
    # than pure f32 (observed error ~5e-3; 2e-2 leaves comfortable margin).
    assert jnp.allclose(out, ref, atol=2e-2, rtol=2e-2), "mismatch vs reference"

    print("KERNEL_OK")
</pallas_src>

<mosaic_0001>
module attributes {stable_mosaic.version = 11 : i64} {
  func.func @encoder_kernel(%arg0: i32, %arg1: memref<1x64x3xf32, #tpu.memory_space<vmem>>, %arg2: memref<3x128xf32, #tpu.memory_space<vmem>>, %arg3: memref<1x128xf32, #tpu.memory_space<vmem>>, %arg4: memref<128x256xbf16, #tpu.memory_space<vmem>>, %arg5: memref<1x256xf32, #tpu.memory_space<vmem>>, %arg6: memref<256x512xbf16, #tpu.memory_space<vmem>>, %arg7: memref<256x512xbf16, #tpu.memory_space<vmem>>, %arg8: memref<1x512xf32, #tpu.memory_space<vmem>>, %arg9: memref<512x1024xbf16, #tpu.memory_space<vmem>>, %arg10: memref<1x1024xf32, #tpu.memory_space<vmem>>, %arg11: memref<1x1x1024xf32, #tpu.memory_space<vmem>>) attributes {dimension_semantics = [#tpu.dimension_semantics<parallel>], iteration_bounds = array<i64: 2>, scalar_prefetch = 0 : i64, scratch_operands = 0 : i64, tpu.core_type = #tpu.core_type<tc>, window_params = [{transform_indices = @transform_0, window_bounds = array<i64: 1, 64, 3>}, {pipeline_mode = #tpu.pipeline_mode<synchronous>, transform_indices = @transform_1, window_bounds = array<i64: 3, 128>}, {pipeline_mode = #tpu.pipeline_mode<synchronous>, transform_indices = @transform_2, window_bounds = array<i64: 1, 128>}, {pipeline_mode = #tpu.pipeline_mode<synchronous>, transform_indices = @transform_3, window_bounds = array<i64: 128, 256>}, {pipeline_mode = #tpu.pipeline_mode<synchronous>, transform_indices = @transform_4, window_bounds = array<i64: 1, 256>}, {pipeline_mode = #tpu.pipeline_mode<synchronous>, transform_indices = @transform_5, window_bounds = array<i64: 256, 512>}, {pipeline_mode = #tpu.pipeline_mode<synchronous>, transform_indices = @transform_6, window_bounds = array<i64: 256, 512>}, {pipeline_mode = #tpu.pipeline_mode<synchronous>, transform_indices = @transform_7, window_bounds = array<i64: 1, 512>}, {pipeline_mode = #tpu.pipeline_mode<synchronous>, transform_indices = @transform_8, window_bounds = array<i64: 512, 1024>}, {pipeline_mode = #tpu.pipeline_mode<synchronous>, transform_indices = @transform_9, window_bounds = array<i64: 1, 1024>}, {transform_indices = @transform_10, window_bounds = array<i64: 1, 1, 1024>}]} {
    %c0 = arith.constant 0 : index
    %c0_0 = arith.constant 0 : index
    %c0_1 = arith.constant 0 : index
    %0 = vector.load %arg1[%c0, %c0_0, %c0_1] : memref<1x64x3xf32, #tpu.memory_space<vmem>>, vector<1x64x3xf32>
    %1 = vector.shape_cast %0 : vector<1x64x3xf32> to vector<64x3xf32>
    %c0_2 = arith.constant 0 : index
    %c0_3 = arith.constant 0 : index
    %2 = vector.load %arg2[%c0_2, %c0_3] : memref<3x128xf32, #tpu.memory_space<vmem>>, vector<3x128xf32>
    %3 = vector.extract_strided_slice %1 {offsets = [0, 0], sizes = [64, 1], strides = [1, 1]} : vector<64x3xf32> to vector<64x1xf32>
    %4 = vector.extract_strided_slice %2 {offsets = [0, 0], sizes = [1, 128], strides = [1, 1]} : vector<3x128xf32> to vector<1x128xf32>
    %5 = vector.broadcast %3 : vector<64x1xf32> to vector<64x128xf32>
    %6 = vector.broadcast %4 : vector<1x128xf32> to vector<64x128xf32>
    %7 = arith.mulf %5, %6 : vector<64x128xf32>
    %8 = vector.extract_strided_slice %1 {offsets = [0, 1], sizes = [64, 1], strides = [1, 1]} : vector<64x3xf32> to vector<64x1xf32>
    %9 = vector.extract_strided_slice %2 {offsets = [1, 0], sizes = [1, 128], strides = [1, 1]} : vector<3x128xf32> to vector<1x128xf32>
    %10 = vector.broadcast %8 : vector<64x1xf32> to vector<64x128xf32>
    %11 = vector.broadcast %9 : vector<1x128xf32> to vector<64x128xf32>
    %12 = arith.mulf %10, %11 : vector<64x128xf32>
    %13 = arith.addf %7, %12 : vector<64x128xf32>
    %14 = vector.extract_strided_slice %1 {offsets = [0, 2], sizes = [64, 1], strides = [1, 1]} : vector<64x3xf32> to vector<64x1xf32>
    %15 = vector.extract_strided_slice %2 {offsets = [2, 0], sizes = [1, 128], strides = [1, 1]} : vector<3x128xf32> to vector<1x128xf32>
    %16 = vector.broadcast %14 : vector<64x1xf32> to vector<64x128xf32>
    %17 = vector.broadcast %15 : vector<1x128xf32> to vector<64x128xf32>
    %18 = arith.mulf %16, %17 : vector<64x128xf32>
    %19 = arith.addf %13, %18 : vector<64x128xf32>
    %c0_4 = arith.constant 0 : index
    %c0_5 = arith.constant 0 : index
    %20 = vector.load %arg3[%c0_4, %c0_5] : memref<1x128xf32, #tpu.memory_space<vmem>>, vector<1x128xf32>
    %21 = vector.broadcast %20 : vector<1x128xf32> to vector<64x128xf32>
    %22 = arith.addf %19, %21 : vector<64x128xf32>
    %cst = arith.constant 0.000000e+00 : f32
    %23 = vector.broadcast %cst : f32 to vector<64x128xf32>
    %24 = arith.maximumf %22, %23 : vector<64x128xf32>
    %25 = arith.truncf %24 : vector<64x128xf32> to vector<64x128xbf16>
    %c0_6 = arith.constant 0 : index
    %c0_7 = arith.constant 0 : index
    %26 = vector.load %arg4[%c0_6, %c0_7] : memref<128x256xbf16, #tpu.memory_space<vmem>>, vector<128x256xbf16>
    %cst_8 = arith.constant dense<0.000000e+00> : vector<64x256xf32>
    %27 = tpu.matmul %25, %26, %cst_8 {dimension_numbers = #tpu.dot_dimension_numbers<[1], [0], [0], [1], [0, 0, 1, 1], [], []>} : vector<64x128xbf16>, vector<128x256xbf16>, vector<64x256xf32> -> vector<64x256xf32>
    %c0_9 = arith.constant 0 : index
    %c0_10 = arith.constant 0 : index
    %28 = vector.load %arg5[%c0_9, %c0_10] : memref<1x256xf32, #tpu.memory_space<vmem>>, vector<1x256xf32>
    %29 = vector.broadcast %28 : vector<1x256xf32> to vector<64x256xf32>
    %30 = arith.addf %27, %29 : vector<64x256xf32>
    %31 = vector.shape_cast %30 : vector<64x256xf32> to vector<1x64x256xf32>
    %cst_11 = arith.constant dense<0xFF800000> : vector<1x256xf32>
    %32 = vector.multi_reduction <maximumf>, %31, %cst_11 [1] : vector<1x64x256xf32> to vector<1x256xf32>
    %33 = arith.truncf %30 : vector<64x256xf32> to vector<64x256xbf16>
    %c0_12 = arith.constant 0 : index
    %c0_13 = arith.constant 0 : index
    %34 = vector.load %arg7[%c0_12, %c0_13] : memref<256x512xbf16, #tpu.memory_space<vmem>>, vector<256x512xbf16>
    %cst_14 = arith.constant dense<0.000000e+00> : vector<64x512xf32>
    %35 = tpu.matmul %33, %34, %cst_14 {dimension_numbers = #tpu.dot_dimension_numbers<[1], [0], [0], [1], [0, 0, 1, 1], [], []>} : vector<64x256xbf16>, vector<256x512xbf16>, vector<64x512xf32> -> vector<64x512xf32>
    %36 = arith.truncf %32 : vector<1x256xf32> to vector<1x256xbf16>
    %c0_15 = arith.constant 0 : index
    %c0_16 = arith.constant 0 : index
    %37 = vector.load %arg6[%c0_15, %c0_16] : memref<256x512xbf16, #tpu.memory_space<vmem>>, vector<256x512xbf16>
    %cst_17 = arith.constant dense<0.000000e+00> : vector<1x512xf32>
    %38 = tpu.matmul %36, %37, %cst_17 {dimension_numbers = #tpu.dot_dimension_numbers<[1], [0], [0], [1], [0, 0, 1, 1], [], []>} : vector<1x256xbf16>, vector<256x512xbf16>, vector<1x512xf32> -> vector<1x512xf32>
    %c0_18 = arith.constant 0 : index
    %c0_19 = arith.constant 0 : index
    %39 = vector.load %arg8[%c0_18, %c0_19] : memref<1x512xf32, #tpu.memory_space<vmem>>, vector<1x512xf32>
    %40 = arith.addf %38, %39 : vector<1x512xf32>
    %41 = vector.shape_cast %35 : vector<64x512xf32> to vector<1x64x512xf32>
    %42 = vector.shape_cast %40 : vector<1x512xf32> to vector<1x1x512xf32>
    %43 = vector.broadcast %42 : vector<1x1x512xf32> to vector<1x64x512xf32>
    %44 = arith.addf %41, %43 : vector<1x64x512xf32>
    %cst_20 = arith.constant 0.000000e+00 : f32
    %45 = vector.broadcast %cst_20 : f32 to vector<1x64x512xf32>
    %46 = arith.maximumf %44, %45 : vector<1x64x512xf32>
    %47 = vector.shape_cast %46 : vector<1x64x512xf32> to vector<64x512xf32>
    %48 = arith.truncf %47 : vector<64x512xf32> to vector<64x512xbf16>
    %c0_21 = arith.constant 0 : index
    %c0_22 = arith.constant 0 : index
    %49 = vector.load %arg9[%c0_21, %c0_22] : memref<512x1024xbf16, #tpu.memory_space<vmem>>, vector<512x256xbf16>
    %cst_23 = arith.constant dense<0.000000e+00> : vector<64x256xf32>
    %50 = tpu.matmul %48, %49, %cst_23 {dimension_numbers = #tpu.dot_dimension_numbers<[1], [0], [0], [1], [0, 0, 1, 1], [], []>} : vector<64x512xbf16>, vector<512x256xbf16>, vector<64x256xf32> -> vector<64x256xf32>
    %c0_24 = arith.constant 0 : index
    %c0_25 = arith.constant 0 : index
    %51 = vector.load %arg10[%c0_24, %c0_25] : memref<1x1024xf32, #tpu.memory_space<vmem>>, vector<1x256xf32>
    %52 = vector.broadcast %51 : vector<1x256xf32> to vector<64x256xf32>
    %53 = arith.addf %50, %52 : vector<64x256xf32>
    %54 = vector.shape_cast %53 : vector<64x256xf32> to vector<1x64x256xf32>
    %cst_26 = arith.constant dense<0xFF800000> : vector<1x256xf32>
    %55 = vector.multi_reduction <maximumf>, %54, %cst_26 [1] : vector<1x64x256xf32> to vector<1x256xf32>
    %56 = vector.shape_cast %55 : vector<1x256xf32> to vector<1x1x256xf32>
    %c0_27 = arith.constant 0 : index
    %c0_28 = arith.constant 0 : index
    %c0_29 = arith.constant 0 : index
    %57 = vector.load %arg11[%c0_27, %c0_28, %c0_29] : memref<1x1x1024xf32, #tpu.memory_space<vmem>>, vector<1x1x256xf32>
    tpu.vector_store %arg11[%c0_27, %c0_28, %c0_29], %56 {strides = array<i32>} : memref<1x1x1024xf32, #tpu.memory_space<vmem>>, vector<1x1x256xf32>,
    %c0_30 = arith.constant 0 : index
    %c256 = arith.constant 256 : index
    %58 = vector.load %arg9[%c0_30, %c256] : memref<512x1024xbf16, #tpu.memory_space<vmem>>, vector<512x256xbf16>
    %cst_31 = arith.constant dense<0.000000e+00> : vector<64x256xf32>
    %59 = tpu.matmul %48, %58, %cst_31 {dimension_numbers = #tpu.dot_dimension_numbers<[1], [0], [0], [1], [0, 0, 1, 1], [], []>} : vector<64x512xbf16>, vector<512x256xbf16>, vector<64x256xf32> -> vector<64x256xf32>
    %c0_32 = arith.constant 0 : index
    %c256_33 = arith.constant 256 : index
    %60 = vector.load %arg10[%c0_32, %c256_33] : memref<1x1024xf32, #tpu.memory_space<vmem>>, vector<1x256xf32>
    %61 = vector.broadcast %60 : vector<1x256xf32> to vector<64x256xf32>
    %62 = arith.addf %59, %61 : vector<64x256xf32>
    %63 = vector.shape_cast %62 : vector<64x256xf32> to vector<1x64x256xf32>
    %cst_34 = arith.constant dense<0xFF800000> : vector<1x256xf32>
    %64 = vector.multi_reduction <maximumf>, %63, %cst_34 [1] : vector<1x64x256xf32> to vector<1x256xf32>
    %65 = vector.shape_cast %64 : vector<1x256xf32> to vector<1x1x256xf32>
    %c0_35 = arith.constant 0 : index
    %c0_36 = arith.constant 0 : index
    %c256_37 = arith.constant 256 : index
    %66 = vector.load %arg11[%c0_35, %c0_36, %c256_37] : memref<1x1x1024xf32, #tpu.memory_space<vmem>>, vector<1x1x256xf32>
    tpu.vector_store %arg11[%c0_35, %c0_36, %c256_37], %65 {strides = array<i32>} : memref<1x1x1024xf32, #tpu.memory_space<vmem>>, vector<1x1x256xf32>,
    %c0_38 = arith.constant 0 : index
    %c512 = arith.constant 512 : index
    %67 = vector.load %arg9[%c0_38, %c512] : memref<512x1024xbf16, #tpu.memory_space<vmem>>, vector<512x256xbf16>
    %cst_39 = arith.constant dense<0.000000e+00> : vector<64x256xf32>
    %68 = tpu.matmul %48, %67, %cst_39 {dimension_numbers = #tpu.dot_dimension_numbers<[1], [0], [0], [1], [0, 0, 1, 1], [], []>} : vector<64x512xbf16>, vector<512x256xbf16>, vector<64x256xf32> -> vector<64x256xf32>
    %c0_40 = arith.constant 0 : index
    %c512_41 = arith.constant 512 : index
    %69 = vector.load %arg10[%c0_40, %c512_41] : memref<1x1024xf32, #tpu.memory_space<vmem>>, vector<1x256xf32>
    %70 = vector.broadcast %69 : vector<1x256xf32> to vector<64x256xf32>
    %71 = arith.addf %68, %70 : vector<64x256xf32>
    %72 = vector.shape_cast %71 : vector<64x256xf32> to vector<1x64x256xf32>
    %cst_42 = arith.constant dense<0xFF800000> : vector<1x256xf32>
    %73 = vector.multi_reduction <maximumf>, %72, %cst_42 [1] : vector<1x64x256xf32> to vector<1x256xf32>
    %74 = vector.shape_cast %73 : vector<1x256xf32> to vector<1x1x256xf32>
    %c0_43 = arith.constant 0 : index
    %c0_44 = arith.constant 0 : index
    %c512_45 = arith.constant 512 : index
    %75 = vector.load %arg11[%c0_43, %c0_44, %c512_45] : memref<1x1x1024xf32, #tpu.memory_space<vmem>>, vector<1x1x256xf32>
    tpu.vector_store %arg11[%c0_43, %c0_44, %c512_45], %74 {strides = array<i32>} : memref<1x1x1024xf32, #tpu.memory_space<vmem>>, vector<1x1x256xf32>,
    %c0_46 = arith.constant 0 : index
    %c768 = arith.constant 768 : index
    %76 = vector.load %arg9[%c0_46, %c768] : memref<512x1024xbf16, #tpu.memory_space<vmem>>, vector<512x256xbf16>
    %cst_47 = arith.constant dense<0.000000e+00> : vector<64x256xf32>
    %77 = tpu.matmul %48, %76, %cst_47 {dimension_numbers = #tpu.dot_dimension_numbers<[1], [0], [0], [1], [0, 0, 1, 1], [], []>} : vector<64x512xbf16>, vector<512x256xbf16>, vector<64x256xf32> -> vector<64x256xf32>
    %c0_48 = arith.constant 0 : index
    %c768_49 = arith.constant 768 : index
    %78 = vector.load %arg10[%c0_48, %c768_49] : memref<1x1024xf32, #tpu.memory_space<vmem>>, vector<1x256xf32>
    %79 = vector.broadcast %78 : vector<1x256xf32> to vector<64x256xf32>
    %80 = arith.addf %77, %79 : vector<64x256xf32>
    %81 = vector.shape_cast %80 : vector<64x256xf32> to vector<1x64x256xf32>
    %cst_50 = arith.constant dense<0xFF800000> : vector<1x256xf32>
    %82 = vector.multi_reduction <maximumf>, %81, %cst_50 [1] : vector<1x64x256xf32> to vector<1x256xf32>
    %83 = vector.shape_cast %82 : vector<1x256xf32> to vector<1x1x256xf32>
    %c0_51 = arith.constant 0 : index
    %c0_52 = arith.constant 0 : index
    %c768_53 = arith.constant 768 : index
    %84 = vector.load %arg11[%c0_51, %c0_52, %c768_53] : memref<1x1x1024xf32, #tpu.memory_space<vmem>>, vector<1x1x256xf32>
    tpu.vector_store %arg11[%c0_51, %c0_52, %c768_53], %83 {strides = array<i32>} : memref<1x1x1024xf32, #tpu.memory_space<vmem>>, vector<1x1x256xf32>,
    return
  }
  func.func @transform_0(%arg0: i32) -> (i32, i32, i32) {
    %c0_i32 = arith.constant 0 : i32
    %c0_i32_0 = arith.constant 0 : i32
    %c0_i32_1 = arith.constant 0 : i32
    return %arg0, %c0_i32, %c0_i32_0 : i32, i32, i32
  }
  func.func @transform_1(%arg0: i32) -> (i32, i32) {
    %c0_i32 = arith.constant 0 : i32
    %c0_i32_0 = arith.constant 0 : i32
    %c0_i32_1 = arith.constant 0 : i32
    return %c0_i32, %c0_i32_0 : i32, i32
  }
  func.func @transform_2(%arg0: i32) -> (i32, i32) {
    %c0_i32 = arith.constant 0 : i32
    %c0_i32_0 = arith.constant 0 : i32
    %c0_i32_1 = arith.constant 0 : i32
    return %c0_i32, %c0_i32_0 : i32, i32
  }
  func.func @transform_3(%arg0: i32) -> (i32, i32) {
    %c0_i32 = arith.constant 0 : i32
    %c0_i32_0 = arith.constant 0 : i32
    %c0_i32_1 = arith.constant 0 : i32
    return %c0_i32, %c0_i32_0 : i32, i32
  }
  func.func @transform_4(%arg0: i32) -> (i32, i32) {
    %c0_i32 = arith.constant 0 : i32
    %c0_i32_0 = arith.constant 0 : i32
    %c0_i32_1 = arith.constant 0 : i32
    return %c0_i32, %c0_i32_0 : i32, i32
  }
  func.func @transform_5(%arg0: i32) -> (i32, i32) {
    %c0_i32 = arith.constant 0 : i32
    %c0_i32_0 = arith.constant 0 : i32
    %c0_i32_1 = arith.constant 0 : i32
    return %c0_i32, %c0_i32_0 : i32, i32
  }
  func.func @transform_6(%arg0: i32) -> (i32, i32) {
    %c0_i32 = arith.constant 0 : i32
    %c0_i32_0 = arith.constant 0 : i32
    %c0_i32_1 = arith.constant 0 : i32
    return %c0_i32, %c0_i32_0 : i32, i32
  }
  func.func @transform_7(%arg0: i32) -> (i32, i32) {
    %c0_i32 = arith.constant 0 : i32
    %c0_i32_0 = arith.constant 0 : i32
    %c0_i32_1 = arith.constant 0 : i32
    return %c0_i32, %c0_i32_0 : i32, i32
  }
  func.func @transform_8(%arg0: i32) -> (i32, i32) {
    %c0_i32 = arith.constant 0 : i32
    %c0_i32_0 = arith.constant 0 : i32
    %c0_i32_1 = arith.constant 0 : i32
    return %c0_i32, %c0_i32_0 : i32, i32
  }
  func.func @transform_9(%arg0: i32) -> (i32, i32) {
    %c0_i32 = arith.constant 0 : i32
    %c0_i32_0 = arith.constant 0 : i32
    %c0_i32_1 = arith.constant 0 : i32
    return %c0_i32, %c0_i32_0 : i32, i32
  }
  func.func @transform_10(%arg0: i32) -> (i32, i32, i32) {
    %c0_i32 = arith.constant 0 : i32
    %c0_i32_0 = arith.constant 0 : i32
    %c0_i32_1 = arith.constant 0 : i32
    return %arg0, %c0_i32, %c0_i32_0 : i32, i32, i32
  }
}

</mosaic_0001>

<llo_original>
// kernel: tpu_custom_call.1
$region0: #{tpu_custom_call.1}
  #allocation0 [shape = 'u32[]', space=smem, size = 0x4, offset = 0x4, fixed_abs, tag = 'smem constant byte address 0x4 - core index']
  #allocation1 [shape = 'u32[144,128]{1,0:T(1,128)}', space=vmem, size = 0x12000, scoped, tag = 'internal scratch']
  %s0 = inlined_call_operand.vmem [shape: f32[2,64,3], index: 0, kind: input, shape index: {}]
  %s1 = inlined_call_operand.vmem [shape: f32[3,128], index: 1, kind: input, shape index: {}]
  %s2 = inlined_call_operand.vmem [shape: f32[1,128], index: 2, kind: input, shape index: {}]
  %s3 = inlined_call_operand.vmem [shape: bf16[128,256], index: 3, kind: input, shape index: {}]
  %s4 = inlined_call_operand.vmem [shape: f32[1,256], index: 4, kind: input, shape index: {}]
  %s5 = inlined_call_operand.hbm [shape: bf16[256,512], index: 5, kind: input, shape index: {}]
  %s6 = inlined_call_operand.hbm [shape: bf16[256,512], index: 6, kind: input, shape index: {}]
  %s7 = inlined_call_operand.vmem [shape: f32[1,512], index: 7, kind: input, shape index: {}]
  %s8 = inlined_call_operand.hbm [shape: bf16[512,1024], index: 8, kind: input, shape index: {}]
  %s9 = inlined_call_operand.vmem [shape: f32[1,1024], index: 9, kind: input, shape index: {}]
  %s10 = inlined_call_operand.hbm [shape: f32[2,1,1024], index: 10, kind: output, shape index: {}]
  %s11 = sld [smem:[#allocation0]]
  $region85: #{tpu_custom_call.1} parent=0
    _
  %s13 = ssub.s32 1, %s11
  %s14 = scalar_select 0, %s13, %s11
  $region1: #{tpu_custom_call.1} parent=0
    #allocation2 [shape = 'u8[262144]{0}', space=vmem, size = 0x40000, scoped, tag = 'input window, operand 5, single buffered']
    #allocation3 [shape = 's32[2]{0}', space=sflag, size = 0x8, scoped, tag = 'scoped memory for tpu_custom_call.1']
    #allocation4 [shape = 's32[2]{0}', space=sflag, size = 0x8, scoped, tag = 'scoped memory for tpu_custom_call.1']
    #allocation5 [shape = 'u8[262144]{0}', space=vmem, size = 0x40000, scoped, tag = 'input window, operand 6, single buffered']
    #allocation6 [shape = 's32[1]{0}', space=sflag, size = 0x4, scoped, tag = 'scoped memory for tpu_custom_call.1']
    #allocation7 [shape = 'u8[1048576]{0}', space=vmem, size = 0x100000, scoped, tag = 'input window, operand 8, single buffered']
    #allocation8 [shape = 'u8[8192]{0}', space=vmem, size = 0x2000, scoped, tag = 'output window, operand 0']
    %15 = vsyncpa [#allocation3], 0
    %16 = vsyncpa [#allocation6], 0
    %17 = vsyncpa [#allocation4], 0
    %s18 = scalar_lea.sflag [#allocation4], 1
    %19 = vsyncpa %s18, 0
    loop: start=0, step=1, limit=4
    $region2: #{tpu_custom_call.1} parent=1 // loop_pre_header
      _
    $region3: #{tpu_custom_call.1} parent=1 // loop_header
      %s21 = sphi 0, %s25
      %p22 = scmp.ge.s32.totalorder %s21, 4
      %s31 = sphi 0, %s33
      %s34 = sphi 0, %s31
      %s35 = sphi 0, %s34
      %s51 = sphi 0, %s35
      %s55 = sphi 0, %s55
      %s57 = sphi 0, %s55
      %s58 = sphi 0, %s57
      %s72 = sphi 0, %s58
      %s76 = sphi 0, %s76
      %s78 = sphi 0, %s76
      %s79 = sphi 0, %s78
      %s93 = sphi 0, %s79
      %s97 = sphi 0, %s97
      %s99 = sphi 0, %s97
      %s100 = sphi 0, %s99
      %s114 = sphi 0, %s100
      %s118 = sphi 0, %s118
      %s120 = sphi 0, %s118
      %s121 = sphi 0, %s120
      %s135 = sphi 0, %s121
      %s139 = sphi 0, %s139
      %s141 = sphi 0, %s139
      %s142 = sphi 0, %s141
      %s156 = sphi 0, %s142
      %s160 = sphi 0, %s160
      %s162 = sphi 0, %s160
      %s163 = sphi 0, %s162
      %s177 = sphi 0, %s163
      %s181 = sphi 0, %s181
      %s183 = sphi 0, %s181
      %s184 = sphi 0, %s183
      %s198 = sphi 0, %s184
      %s202 = sphi 0, %s202
      %s204 = sphi 0, %s202
      %s205 = sphi 0, %s204
      %s219 = sphi 0, %s205
      %s223 = sphi 0, %s223
      %s225 = sphi 0, %s223
      %s226 = sphi 0, %s225
      %s240 = sphi 0, %s226
      %s246 = sphi 0, %s248
      %s249 = sphi 0, %s246
      %s250 = sphi 0, %s249
      %s266 = sphi 0, %s250
    $region4: #{tpu_custom_call.1} parent=1 // loop_header_branch
      %24 = sbr.rel (%p22) target = $region8
    $region5: #{tpu_custom_call.1} parent=1 // loop_body
      %s26 = ssub.s32 %s21, 1
      %s27 = ssub.s32 %s21, 2
      %s28 = sadd.s32 %s21, 1
      %s29 = ssub.s32 %s21, %s28
      %p30 = scmp.eq.s32.totalorder %s29, 0
      %s32 = sadd.s32 %s31, 1
      %s33 = scalar_select %p30, %s31, %s32
      %p36 = pneg %p30
      %p37 = scmp.eq.s32.totalorder %s21, 1
      %p38 = por %p36, %p37
      %p39 = scmp.ne.s32.totalorder %s31, %s34
      %p40 = scmp.eq.s32.totalorder %s21, 0
      %p41 = por %p39, %p40
      %p42 = scmp.ne.s32.totalorder %s31, %s34
      %p43 = scmp.eq.s32.totalorder %s26, 1
      %p44 = por %p42, %p43
      %p45 = scmp.ne.s32.totalorder %s34, %s35
      %p46 = scmp.eq.s32.totalorder %s26, 0
      %p47 = por %p45, %p46
      %p48 = scmp.ne.s32.totalorder %s34, %s35
      %p49 = scmp.eq.s32.totalorder %s27, 1
      %p50 = por %p48, %p49
      %p52 = scmp.ne.s32.totalorder %s35, %s51
      %p53 = scmp.eq.s32.totalorder %s27, 0
      %p54 = por %p52, %p53
      %s56 = sadd.s32 %s55, 1
      %p59 = scmp.eq.s32.totalorder %s21, 1
      %p60 = scmp.ne.s32.totalorder %s55, %s57
      %p61 = scmp.eq.s32.totalorder %s21, 0
      %p62 = por %p60, %p61
      %p63 = scmp.ne.s32.totalorder %s55, %s57
      %p64 = scmp.eq.s32.totalorder %s26, 1
      %p65 = por %p63, %p64
      %p66 = scmp.ne.s32.totalorder %s57, %s58
      %p67 = scmp.eq.s32.totalorder %s26, 0
      %p68 = por %p66, %p67
      %p69 = scmp.ne.s32.totalorder %s57, %s58
      %p70 = scmp.eq.s32.totalorder %s27, 1
      %p71 = por %p69, %p70
      %p73 = scmp.ne.s32.totalorder %s58, %s72
      %p74 = scmp.eq.s32.totalorder %s27, 0
      %p75 = por %p73, %p74
      %s77 = sadd.s32 %s76, 1
      %p80 = scmp.eq.s32.totalorder %s21, 1
      %p81 = scmp.ne.s32.totalorder %s76, %s78
      %p82 = scmp.eq.s32.totalorder %s21, 0
      %p83 = por %p81, %p82
      %p84 = scmp.ne.s32.totalorder %s76, %s78
      %p85 = scmp.eq.s32.totalorder %s26, 1
      %p86 = por %p84, %p85
      %p87 = scmp.ne.s32.totalorder %s78, %s79
      %p88 = scmp.eq.s32.totalorder %s26, 0
      %p89 = por %p87, %p88
      %p90 = scmp.ne.s32.totalorder %s78, %s79
      %p91 = scmp.eq.s32.totalorder %s27, 1
      %p92 = por %p90, %p91
      %p94 = scmp.ne.s32.totalorder %s79, %s93
      %p95 = scmp.eq.s32.totalorder %s27, 0
      %p96 = por %p94, %p95
      %s98 = sadd.s32 %s97, 1
      %p101 = scmp.eq.s32.totalorder %s21, 1
      %p102 = scmp.ne.s32.totalorder %s97, %s99
      %p103 = scmp.eq.s32.totalorder %s21, 0
      %p104 = por %p102, %p103
      %p105 = scmp.ne.s32.totalorder %s97, %s99
      %p106 = scmp.eq.s32.totalorder %s26, 1
      %p107 = por %p105, %p106
      %p108 = scmp.ne.s32.totalorder %s99, %s100
      %p109 = scmp.eq.s32.totalorder %s26, 0
      %p110 = por %p108, %p109
      %p111 = scmp.ne.s32.totalorder %s99, %s100
      %p112 = scmp.eq.s32.totalorder %s27, 1
      %p113 = por %p111, %p112
      %p115 = scmp.ne.s32.totalorder %s100, %s114
      %p116 = scmp.eq.s32.totalorder %s27, 0
      %p117 = por %p115, %p116
      %s119 = sadd.s32 %s118, 1
      %p122 = scmp.eq.s32.totalorder %s21, 1
      %p123 = scmp.ne.s32.totalorder %s118, %s120
      %p124 = scmp.eq.s32.totalorder %s21, 0
      %p125 = por %p123, %p124
      %p126 = scmp.ne.s32.totalorder %s118, %s120
      %p127 = scmp.eq.s32.totalorder %s26, 1
      %p128 = por %p126, %p127
      %p129 = scmp.ne.s32.totalorder %s120, %s121
      %p130 = scmp.eq.s32.totalorder %s26, 0
      %p131 = por %p129, %p130
      %p132 = scmp.ne.s32.totalorder %s120, %s121
      %p133 = scmp.eq.s32.totalorder %s27, 1
      %p134 = por %p132, %p133
      %p136 = scmp.ne.s32.totalorder %s121, %s135
      %p137 = scmp.eq.s32.totalorder %s27, 0
      %p138 = por %p136, %p137
      %s140 = sadd.s32 %s139, 1
      %p143 = scmp.eq.s32.totalorder %s21, 1
      %p144 = scmp.ne.s32.totalorder %s139, %s141
      %p145 = scmp.eq.s32.totalorder %s21, 0
      %p146 = por %p144, %p145
      %p147 = scmp.ne.s32.totalorder %s139, %s141
      %p148 = scmp.eq.s32.totalorder %s26, 1
      %p149 = por %p147, %p148
      %p150 = scmp.ne.s32.totalorder %s141, %s142
      %p151 = scmp.eq.s32.totalorder %s26, 0
      %p152 = por %p150, %p151
      %p153 = scmp.ne.s32.totalorder %s141, %s142
      %p154 = scmp.eq.s32.totalorder %s27, 1
      %p155 = por %p153, %p154
      %p157 = scmp.ne.s32.totalorder %s142, %s156
      %p158 = scmp.eq.s32.totalorder %s27, 0
      %p159 = por %p157, %p158
      %s161 = sadd.s32 %s160, 1
      %p164 = scmp.eq.s32.totalorder %s21, 1
      %p165 = scmp.ne.s32.totalorder %s160, %s162
      %p166 = scmp.eq.s32.totalorder %s21, 0
      %p167 = por %p165, %p166
      %p168 = scmp.ne.s32.totalorder %s160, %s162
      %p169 = scmp.eq.s32.totalorder %s26, 1
      %p170 = por %p168, %p169
      %p171 = scmp.ne.s32.totalorder %s162, %s163
      %p172 = scmp.eq.s32.totalorder %s26, 0
      %p173 = por %p171, %p172
      %p174 = scmp.ne.s32.totalorder %s162, %s163
      %p175 = scmp.eq.s32.totalorder %s27, 1
      %p176 = por %p174, %p175
      %p178 = scmp.ne.s32.totalorder %s163, %s177
      %p179 = scmp.eq.s32.totalorder %s27, 0
      %p180 = por %p178, %p179
      %s182 = sadd.s32 %s181, 1
      %p185 = scmp.eq.s32.totalorder %s21, 1
      %p186 = scmp.ne.s32.totalorder %s181, %s183
      %p187 = scmp.eq.s32.totalorder %s21, 0
      %p188 = por %p186, %p187
      %p189 = scmp.ne.s32.totalorder %s181, %s183
      %p190 = scmp.eq.s32.totalorder %s26, 1
      %p191 = por %p189, %p190
      %p192 = scmp.ne.s32.totalorder %s183, %s184
      %p193 = scmp.eq.s32.totalorder %s26, 0
      %p194 = por %p192, %p193
      %p195 = scmp.ne.s32.totalorder %s183, %s184
      %p196 = scmp.eq.s32.totalorder %s27, 1
      %p197 = por %p195, %p196
      %p199 = scmp.ne.s32.totalorder %s184, %s198
      %p200 = scmp.eq.s32.totalorder %s27, 0
      %p201 = por %p199, %p200
      %s203 = sadd.s32 %s202, 1
      %p206 = scmp.eq.s32.totalorder %s21, 1
      %p207 = scmp.ne.s32.totalorder %s202, %s204
      %p208 = scmp.eq.s32.totalorder %s21, 0
      %p209 = por %p207, %p208
      %p210 = scmp.ne.s32.totalorder %s202, %s204
      %p211 = scmp.eq.s32.totalorder %s26, 1
      %p212 = por %p210, %p211
      %p213 = scmp.ne.s32.totalorder %s204, %s205
      %p214 = scmp.eq.s32.totalorder %s26, 0
      %p215 = por %p213, %p214
      %p216 = scmp.ne.s32.totalorder %s204, %s205
      %p217 = scmp.eq.s32.totalorder %s27, 1
      %p218 = por %p216, %p217
      %p220 = scmp.ne.s32.totalorder %s205, %s219
      %p221 = scmp.eq.s32.totalorder %s27, 0
      %p222 = por %p220, %p221
      %s224 = sadd.s32 %s223, 1
      %p227 = scmp.eq.s32.totalorder %s21, 1
      %p228 = scmp.ne.s32.totalorder %s223, %s225
      %p229 = scmp.eq.s32.totalorder %s21, 0
      %p230 = por %p228, %p229
      %p231 = scmp.ne.s32.totalorder %s223, %s225
      %p232 = scmp.eq.s32.totalorder %s26, 1
      %p233 = por %p231, %p232
      %p234 = scmp.ne.s32.totalorder %s225, %s226
      %p235 = scmp.eq.s32.totalorder %s26, 0
      %p236 = por %p234, %p235
      %p237 = scmp.ne.s32.totalorder %s225, %s226
      %p238 = scmp.eq.s32.totalorder %s27, 1
      %p239 = por %p237, %p238
      %p241 = scmp.ne.s32.totalorder %s226, %s240
      %p242 = scmp.eq.s32.totalorder %s27, 0
      %p243 = por %p241, %p242
      %s244 = ssub.s32 %s21, %s28
      %p245 = scmp.eq.s32.totalorder %s244, 0
      %s247 = sadd.s32 %s246, 1
      %s248 = scalar_select %p245, %s246, %s247
      %p251 = pneg %p245
      %p252 = scmp.eq.s32.totalorder %s21, 1
      %p253 = por %p251, %p252
      %p254 = scmp.ne.s32.totalorder %s246, %s249
      %p255 = scmp.eq.s32.totalorder %s21, 0
      %p256 = por %p254, %p255
      %p257 = scmp.ne.s32.totalorder %s246, %s249
      %p258 = scmp.eq.s32.totalorder %s26, 1
      %p259 = por %p257, %p258
      %p260 = scmp.ne.s32.totalorder %s249, %s250
      %p261 = scmp.eq.s32.totalorder %s26, 0
      %p262 = por %p260, %p261
      %p263 = scmp.ne.s32.totalorder %s249, %s250
      %p264 = scmp.eq.s32.totalorder %s27, 1
      %p265 = por %p263, %p264
      %p267 = scmp.ne.s32.totalorder %s250, %s266
      %p268 = scmp.eq.s32.totalorder %s27, 0
      %p269 = por %p267, %p268
      %p270 = scmp.le.s32.totalorder 1, %s21
      %p271 = scmp.lt.s32.totalorder %s21, 3
      %p272 = pnand %p270, %p271
      %p273 = pneg %p272
      // Predicated region
      $region9: #{tpu_custom_call.1} parent=5 // pred_check
        _
      $region10: #{tpu_custom_call.1} parent=5 // pred_check_branch
        %275 = sbr.rel (%p272) target = $region12
      $region11: #{tpu_custom_call.1} parent=5 // pred_region
        %s276 = ssub.s32 %s21, 1
        // Predicated region
        $region13: #{tpu_custom_call.1} parent=11 // pred_check
          %p277 = pneg %p68
        $region14: #{tpu_custom_call.1} parent=11 // pred_check_branch
          %279 = sbr.rel (%p277) target = $region16
        $region15: #{tpu_custom_call.1} parent=11 // pred_region
          _
        $region16: #{tpu_custom_call.1} parent=11 // pred_fallthru
          _
        // Predicated region
        $region17: #{tpu_custom_call.1} parent=11 // pred_check
          %p280 = pneg %p89
        $region18: #{tpu_custom_call.1} parent=11 // pred_check_branch
          %282 = sbr.rel (%p280) target = $region20
        $region19: #{tpu_custom_call.1} parent=11 // pred_region
          _
        $region20: #{tpu_custom_call.1} parent=11 // pred_fallthru
          _
        // Predicated region
        $region21: #{tpu_custom_call.1} parent=11 // pred_check
          %p283 = pneg %p110
        $region22: #{tpu_custom_call.1} parent=11 // pred_check_branch
          %285 = sbr.rel (%p283) target = $region24
        $region23: #{tpu_custom_call.1} parent=11 // pred_region
          _
        $region24: #{tpu_custom_call.1} parent=11 // pred_fallthru
          _
        // Predicated region
        $region25: #{tpu_custom_call.1} parent=11 // pred_check
          %p286 = pneg %p131
        $region26: #{tpu_custom_call.1} parent=11 // pred_check_branch
          %288 = sbr.rel (%p286) target = $region28
        $region27: #{tpu_custom_call.1} parent=11 // pred_region
          _
        $region28: #{tpu_custom_call.1} parent=11 // pred_fallthru
          _
        // Predicated region
        $region29: #{tpu_custom_call.1} parent=11 // pred_check
          %p289 = pneg %p152
        $region30: #{tpu_custom_call.1} parent=11 // pred_check_branch
          %291 = sbr.rel (%p289) target = $region32
        $region31: #{tpu_custom_call.1} parent=11 // pred_region
          %s293 = ssub.s32 8192, 8192
          %294 = vsyncadd [#allocation3], %s293
          %s295 = sshll.u32 [#allocation2], 4
          %s296 = int_to_ptr.vmem [resolvable:$true] %s295
          %301 = dma.hbm_to_vmem [thread:$0]  %s5, 8192, %s296, [#allocation3], 256, 256, 16
        $region32: #{tpu_custom_call.1} parent=11 // pred_fallthru
          _
        // Predicated region
        $region33: #{tpu_custom_call.1} parent=11 // pred_check
          %p302 = pneg %p173
        $region34: #{tpu_custom_call.1} parent=11 // pred_check_branch
          %304 = sbr.rel (%p302) target = $region36
        $region35: #{tpu_custom_call.1} parent=11 // pred_region
          %s306 = ssub.s32 8192, 8192
          %307 = vsyncadd [#allocation6], %s306
          %s308 = sshll.u32 [#allocation5], 4
          %s309 = int_to_ptr.vmem [resolvable:$true] %s308
          %314 = dma.hbm_to_vmem [thread:$0]  %s6, 8192, %s309, [#allocation6], 256, 256, 16
        $region36: #{tpu_custom_call.1} parent=11 // pred_fallthru
          _
        // Predicated region
        $region37: #{tpu_custom_call.1} parent=11 // pred_check
          %p315 = pneg %p194
        $region38: #{tpu_custom_call.1} parent=11 // pred_check_branch
          %317 = sbr.rel (%p315) target = $region40
        $region39: #{tpu_custom_call.1} parent=11 // pred_region
          _
        $region40: #{tpu_custom_call.1} parent=11 // pred_fallthru
          _
        // Predicated region
        $region41: #{tpu_custom_call.1} parent=11 // pred_check
          %p318 = pneg %p215
        $region42: #{tpu_custom_call.1} parent=11 // pred_check_branch
          %320 = sbr.rel (%p318) target = $region44
        $region43: #{tpu_custom_call.1} parent=11 // pred_region
          %s322 = ssub.s32 32768, 32768
          %323 = vsyncadd [#allocation6], %s322
          %s324 = sshll.u32 [#allocation7], 4
          %s325 = int_to_ptr.vmem [resolvable:$true] %s324
          %330 = dma.hbm_to_vmem [thread:$0]  %s8, 32768, %s325, [#allocation6], 512, 512, 32
        $region44: #{tpu_custom_call.1} parent=11 // pred_fallthru
          _
        // Predicated region
        $region45: #{tpu_custom_call.1} parent=11 // pred_check
          %p331 = pneg %p236
        $region46: #{tpu_custom_call.1} parent=11 // pred_check_branch
          %333 = sbr.rel (%p331) target = $region48
        $region47: #{tpu_custom_call.1} parent=11 // pred_region
          _
        $region48: #{tpu_custom_call.1} parent=11 // pred_fallthru
          _
      $region12: #{tpu_custom_call.1} parent=5 // pred_fallthru
        _
      %p334 = scmp.lt.s32.totalorder %s21, 2
      // Predicated region
      $region49: #{tpu_custom_call.1} parent=5 // pred_check
        %p335 = pneg %p334
      $region50: #{tpu_custom_call.1} parent=5 // pred_check_branch
        %337 = sbr.rel (%p335) target = $region52
      $region51: #{tpu_custom_call.1} parent=5 // pred_region
        // Predicated region
        $region53: #{tpu_custom_call.1} parent=51 // pred_check
          %p338 = pneg %p41
        $region54: #{tpu_custom_call.1} parent=51 // pred_check_branch
          %340 = sbr.rel (%p338) target = $region56
        $region55: #{tpu_custom_call.1} parent=51 // pred_region
          %p341 = scmp.lt.s32.totalorder %s21, 1
          %s342 = scalar_select %p341, %s21, 1
          %s343 = smul.addr %s342, 8
          %s344 = smul.addr %s343, 8
          %s345 = scalar_lea.vmem %s0, %s344
        $region56: #{tpu_custom_call.1} parent=51 // pred_fallthru
          _
      $region52: #{tpu_custom_call.1} parent=5 // pred_fallthru
        _
      %p346 = scmp.le.s32.totalorder 1, %s21
      %p347 = scmp.lt.s32.totalorder %s21, 3
      %p348 = pnand %p346, %p347
      %p349 = pneg %p348
      // Predicated region
      $region57: #{tpu_custom_call.1} parent=5 // pred_check
        _
      $region58: #{tpu_custom_call.1} parent=5 // pred_check_branch
        %351 = sbr.rel (%p348) target = $region60
      $region59: #{tpu_custom_call.1} parent=5 // pred_region
        %s352 = ssub.s32 %s21, 1
        // Predicated region
        $region61: #{tpu_custom_call.1} parent=59 // pred_check
          %p353 = pneg %p152
        $region62: #{tpu_custom_call.1} parent=59 // pred_check_branch
          %355 = sbr.rel (%p353) target = $region64
        $region63: #{tpu_custom_call.1} parent=59 // pred_region
          %356 = dma.done [#allocation3], 8192
        $region64: #{tpu_custom_call.1} parent=59 // pred_fallthru
          _
        // Predicated region
        $region65: #{tpu_custom_call.1} parent=59 // pred_check
          %p357 = pneg %p173
        $region66: #{tpu_custom_call.1} parent=59 // pred_check_branch
          %359 = sbr.rel (%p357) target = $region68
        $region67: #{tpu_custom_call.1} parent=59 // pred_region
          %360 = dma.done [#allocation6], 8192
        $region68: #{tpu_custom_call.1} parent=59 // pred_fallthru
          _
        // Predicated region
        $region69: #{tpu_custom_call.1} parent=59 // pred_check
          %p361 = pneg %p215
        $region70: #{tpu_custom_call.1} parent=59 // pred_check_branch
          %363 = sbr.rel (%p361) target = $region72
        $region71: #{tpu_custom_call.1} parent=59 // pred_region
          %364 = dma.done [#allocation6], 32768
        $region72: #{tpu_custom_call.1} parent=59 // pred_fallthru
          _
        %p365 = scmp.lt.s32.totalorder %s26, 1
        %s366 = scalar_select %p365, %s26, 1
        %s367 = smul.addr %s366, 8
        %s368 = smul.addr %s367, 8
        %s369 = scalar_lea.vmem %s0, %s368
        %p370 = pneg %p47
        %p371 = pneg %p44
        %p372 = pneg %p68
        %p373 = pneg %p65
        %p374 = pneg %p89
        %p375 = pneg %p86
        %p376 = pneg %p110
        %p377 = pneg %p107
        %p378 = pneg %p131
        %p379 = pneg %p128
        %p380 = pneg %p152
        %p381 = pneg %p149
        %p382 = pneg %p173
        %p383 = pneg %p170
        %p384 = pneg %p194
        %p385 = pneg %p191
        %p386 = pneg %p215
        %p387 = pneg %p212
        %p388 = pneg %p236
        %p389 = pneg %p233
        %p390 = pneg %p262
        %p391 = pneg %p259
        %s392 = sand.u32 %s249, 1
        %s393 = scalar_lea.sflag [#allocation4], %s392
        %s394 = sand.u32 %s249, 1
        %s395 = smul.addr %s394, 8
        %s396 = scalar_lea.vmem [#allocation8], %s395
        %p397 = scmp.lt.s32.totalorder %s26, 1
        %s398 = scalar_select %p397, %s26, 1
        %s399 = smul.addr %s398, 8
        %s400 = smul.addr %s399, 8
        %s401 = scalar_lea.vmem %s0, %s400
        %v403 = vld [vmem:[%s401] sm:$0xff]
        %v404 = vld [vmem:[%s401 + $0x8] sm:$0xff]
        %v405 = vld [vmem:[%s401 + $0x10] sm:$0xff]
        %v406 = vld [vmem:[%s401 + $0x18] sm:$0xff]
        %v407 = vld [vmem:[%s401 + $0x20] sm:$0xff]
        %v408 = vld [vmem:[%s401 + $0x28] sm:$0xff]
        %v409 = vld [vmem:[%s401 + $0x30] sm:$0xff]
        %v410 = vld [vmem:[%s401 + $0x38] sm:$0xff]
        %v411 = vld [vmem:[%s1] sm:$0x7]
        %413 = vset.pattern.permute.xlu0 0
        %414 = vperm.xlu0 %413, %v403
        %v415 = vpop.permute.xlu0 %414
        %418 = vset.pattern.permute.xlu0 0
        %419 = vperm.xlu0 %418, %v404
        %v420 = vpop.permute.xlu0 %419
        %423 = vset.pattern.permute.xlu0 0
        %424 = vperm.xlu0 %423, %v405
        %v425 = vpop.permute.xlu0 %424
        %428 = vset.pattern.permute.xlu0 0
        %429 = vperm.xlu0 %428, %v406
        %v430 = vpop.permute.xlu0 %429
        %433 = vset.pattern.permute.xlu0 0
        %434 = vperm.xlu0 %433, %v407
        %v435 = vpop.permute.xlu0 %434
        %438 = vset.pattern.permute.xlu0 0
        %439 = vperm.xlu0 %438, %v408
        %v440 = vpop.permute.xlu0 %439
        %443 = vset.pattern.permute.xlu0 0
        %444 = vperm.xlu0 %443, %v409
        %v445 = vpop.permute.xlu0 %444
        %448 = vset.pattern.permute.xlu0 0
        %449 = vperm.xlu0 %448, %v410
        %v450 = vpop.permute.xlu0 %449
        %v452 = vlaneseq
        %v453 = vshrl.u32 %v452, 7
        %v454 = vsub.s32 0, %v453
        %v455 = vrot.slane %v411, %v454
        %v456 = vmul.f32 %v415, %v455
        %v457 = vmul.f32 %v420, %v455
        %v458 = vmul.f32 %v425, %v455
        %v459 = vmul.f32 %v430, %v455
        %v460 = vmul.f32 %v435, %v455
        %v461 = vmul.f32 %v440, %v455
        %v462 = vmul.f32 %v445, %v455
        %v463 = vmul.f32 %v450, %v455
        %464 = vset.pattern.permute.xlu0 1
        %465 = vperm.xlu0 %464, %v403
        %v466 = vpop.permute.xlu0 %465
        %468 = vset.pattern.permute.xlu0 1
        %469 = vperm.xlu0 %468, %v404
        %v470 = vpop.permute.xlu0 %469
        %472 = vset.pattern.permute.xlu0 1
        %473 = vperm.xlu0 %472, %v405
        %v474 = vpop.permute.xlu0 %473
        %476 = vset.pattern.permute.xlu0 1
        %477 = vperm.xlu0 %476, %v406
        %v478 = vpop.permute.xlu0 %477
        %480 = vset.pattern.permute.xlu0 1
        %481 = vperm.xlu0 %480, %v407
        %v482 = vpop.permute.xlu0 %481
        %484 = vset.pattern.permute.xlu0 1
        %485 = vperm.xlu0 %484, %v408
        %v486 = vpop.permute.xlu0 %485
        %488 = vset.pattern.permute.xlu0 1
        %489 = vperm.xlu0 %488, %v409
        %v490 = vpop.permute.xlu0 %489
        %492 = vset.pattern.permute.xlu0 1
        %493 = vperm.xlu0 %492, %v410
        %v494 = vpop.permute.xlu0 %493
        %v496 = vlaneseq
        %v497 = vshrl.u32 %v496, 7
        %v498 = vsub.s32 1, %v497
        %v499 = vrot.slane %v411, %v498
        %v500 = vmul.f32 %v466, %v499
        %v501 = vmul.f32 %v470, %v499
        %v502 = vmul.f32 %v474, %v499
        %v503 = vmul.f32 %v478, %v499
        %v504 = vmul.f32 %v482, %v499
        %v505 = vmul.f32 %v486, %v499
        %v506 = vmul.f32 %v490, %v499
        %v507 = vmul.f32 %v494, %v499
        %v508 = vadd.f32 %v456, %v500
        %v509 = vadd.f32 %v457, %v501
        %v510 = vadd.f32 %v458, %v502
        %v511 = vadd.f32 %v459, %v503
        %v512 = vadd.f32 %v460, %v504
        %v513 = vadd.f32 %v461, %v505
        %v514 = vadd.f32 %v462, %v506
        %v515 = vadd.f32 %v463, %v507
        %516 = vset.pattern.permute.xlu0 2
        %517 = vperm.xlu0 %516, %v403
        %v518 = vpop.permute.xlu0 %517
        %520 = vset.pattern.permute.xlu0 2
        %521 = vperm.xlu0 %520, %v404
        %v522 = vpop.permute.xlu0 %521
        %524 = vset.pattern.permute.xlu0 2
        %525 = vperm.xlu0 %524, %v405
        %v526 = vpop.permute.xlu0 %525
        %528 = vset.pattern.permute.xlu0 2
        %529 = vperm.xlu0 %528, %v406
        %v530 = vpop.permute.xlu0 %529
        %532 = vset.pattern.permute.xlu0 2
        %533 = vperm.xlu0 %532, %v407
        %v534 = vpop.permute.xlu0 %533
        %536 = vset.pattern.permute.xlu0 2
        %537 = vperm.xlu0 %536, %v408
        %v538 = vpop.permute.xlu0 %537
        %540 = vset.pattern.permute.xlu0 2
        %541 = vperm.xlu0 %540, %v409
        %v542 = vpop.permute.xlu0 %541
        %544 = vset.pattern.permute.xlu0 2
        %545 = vperm.xlu0 %544, %v410
        %v546 = vpop.permute.xlu0 %545
        %v548 = vlaneseq
        %v549 = vshrl.u32 %v548, 7
        %v550 = vsub.s32 2, %v549
        %v551 = vrot.slane %v411, %v550
        %v552 = vmul.f32 %v518, %v551
        %v553 = vmul.f32 %v522, %v551
        %v554 = vmul.f32 %v526, %v551
        %v555 = vmul.f32 %v530, %v551
        %v556 = vmul.f32 %v534, %v551
        %v557 = vmul.f32 %v538, %v551
        %v558 = vmul.f32 %v542, %v551
        %v559 = vmul.f32 %v546, %v551
        %v560 = vadd.f32 %v508, %v552
        %v561 = vadd.f32 %v509, %v553
        %v562 = vadd.f32 %v510, %v554
        %v563 = vadd.f32 %v511, %v555
        %v564 = vadd.f32 %v512, %v556
        %v565 = vadd.f32 %v513, %v557
        %v566 = vadd.f32 %v514, %v558
        %v567 = vadd.f32 %v515, %v559
        %v568 = vld [vmem:[%s2] sm:$0x1]
        %v570 = vlaneseq
        %v571 = vshrl.u32 %v570, 7
        %v572 = vsub.s32 0, %v571
        %v573 = vrot.slane %v568, %v572
        %v575 = vadd.f32 %v560, %v573
        %v576 = vadd.f32 %v561, %v573
        %v577 = vadd.f32 %v562, %v573
        %v578 = vadd.f32 %v563, %v573
        %v579 = vadd.f32 %v564, %v573
        %v580 = vadd.f32 %v565, %v573
        %v581 = vadd.f32 %v566, %v573
        %v582 = vadd.f32 %v567, %v573
        %v583 = vmax.f32 %v575, 0.0
        %v584 = vmax.f32 %v576, 0.0
        %v585 = vmax.f32 %v577, 0.0
        %v586 = vmax.f32 %v578, 0.0
        %v587 = vmax.f32 %v579, 0.0
        %v588 = vmax.f32 %v580, 0.0
        %v589 = vmax.f32 %v581, 0.0
        %v590 = vmax.f32 %v582, 0.0
        %v591 = vpack.c.bf16 %v584, %v583
        %v592 = vpack.c.bf16 %v586, %v585
        %v593 = vpack.c.bf16 %v588, %v587
        %v594 = vpack.c.bf16 %v590, %v589
        %v595 = vld [vmem:[%s3] sm:$0xff]
        %v596 = vld [vmem:[%s3 + $0x8] sm:$0xff]
        %v597 = vld [vmem:[%s3 + $0x10] sm:$0xff]
        %v598 = vld [vmem:[%s3 + $0x18] sm:$0xff]
        %v599 = vld [vmem:[%s3 + $0x20] sm:$0xff]
        %v600 = vld [vmem:[%s3 + $0x28] sm:$0xff]
        %v601 = vld [vmem:[%s3 + $0x30] sm:$0xff]
        %v602 = vld [vmem:[%s3 + $0x38] sm:$0xff]
        %v603 = vld [vmem:[%s3 + $0x40] sm:$0xff]
        %v604 = vld [vmem:[%s3 + $0x48] sm:$0xff]
        %v605 = vld [vmem:[%s3 + $0x50] sm:$0xff]
        %v606 = vld [vmem:[%s3 + $0x58] sm:$0xff]
        %v607 = vld [vmem:[%s3 + $0x60] sm:$0xff]
        %v608 = vld [vmem:[%s3 + $0x68] sm:$0xff]
        %v609 = vld [vmem:[%s3 + $0x70] sm:$0xff]
        %v610 = vld [vmem:[%s3 + $0x78] sm:$0xff]
        %v611 = vld [vmem:[%s4] sm:$0x3]
        %v613 = vlaneseq
        %v614 = vshrl.u32 %v613, 7
        %v615 = vsub.s32 0, %v614
        %v616 = vrot.slane %v611, %v615
        %v617 = vlaneseq
        %v618 = vshrl.u32 %v617, 7
        %v619 = vsub.s32 1, %v618
        %v620 = vrot.slane %v611, %v619
        %v639 = vunpack.c.l.b16 %v595
        %v640 = vunpack.c.h.b16 %v595
        %v641 = vunpack.c.l.b16 %v596
        %v642 = vunpack.c.h.b16 %v596
        %v643 = vunpack.c.l.b16 %v597
        %v644 = vunpack.c.h.b16 %v597
        %v645 = vunpack.c.l.b16 %v598
        %v646 = vunpack.c.h.b16 %v598
        %v647 = vunpack.c.l.b16 %v599
        %v648 = vunpack.c.h.b16 %v599
        %v649 = vunpack.c.l.b16 %v600
        %v650 = vunpack.c.h.b16 %v600
        %v651 = vunpack.c.l.b16 %v601
        %v652 = vunpack.c.h.b16 %v601
        %v653 = vunpack.c.l.b16 %v602
        %v654 = vunpack.c.h.b16 %v602
        %v655 = vunpack.c.l.b16 %v603
        %v656 = vunpack.c.h.b16 %v603
        %v657 = vunpack.c.l.b16 %v604
        %v658 = vunpack.c.h.b16 %v604
        %v659 = vunpack.c.l.b16 %v605
        %v660 = vunpack.c.h.b16 %v605
        %v661 = vunpack.c.l.b16 %v606
        %v662 = vunpack.c.h.b16 %v606
        %v663 = vunpack.c.l.b16 %v607
        %v664 = vunpack.c.h.b16 %v607
        %v665 = vunpack.c.l.b16 %v608
        %v666 = vunpack.c.h.b16 %v608
        %v667 = vunpack.c.l.b16 %v609
        %v668 = vunpack.c.h.b16 %v609
        %v669 = vunpack.c.l.b16 %v610
        %v670 = vunpack.c.h.b16 %v610
        %v671 = vpack.c.b16 %v641, %v639
        %v672 = vpack.c.b16 %v642, %v640
        %v673 = vpack.c.b16 %v645, %v643
        %v674 = vpack.c.b16 %v646, %v644
        %v675 = vpack.c.b16 %v649, %v647
        %v676 = vpack.c.b16 %v650, %v648
        %v677 = vpack.c.b16 %v653, %v651
        %v678 = vpack.c.b16 %v654, %v652
        %v679 = vpack.c.b16 %v657, %v655
        %v680 = vpack.c.b16 %v658, %v656
        %v681 = vpack.c.b16 %v661, %v659
        %v682 = vpack.c.b16 %v662, %v660
        %v683 = vpack.c.b16 %v665, %v663
        %v684 = vpack.c.b16 %v666, %v664
        %v685 = vpack.c.b16 %v669, %v667
        %v686 = vpack.c.b16 %v670, %v668
        %703 = vmatprep.subr.bf16.mxu0 %v672
        %704 = vmatpush1.bf16.msra.mxu0 %v671
        %705 = vmatprep.subr.bf16.mxu0 %v674
        %706 = vmatpush1.bf16.msra.mxu0 %v673
        %707 = vmatprep.subr.bf16.mxu0 %v676
        %708 = vmatpush1.bf16.msra.mxu0 %v675
        %709 = vmatprep.subr.bf16.mxu0 %v678
        %710 = vmatpush1.bf16.msra.mxu0 %v677
        %711 = vmatprep.subr.bf16.mxu0 %v680
        %712 = vmatpush1.bf16.msra.mxu0 %v679
        %713 = vmatprep.subr.bf16.mxu0 %v682
        %714 = vmatpush1.bf16.msra.mxu0 %v681
        %715 = vmatprep.subr.bf16.mxu0 %v684
        %716 = vmatpush1.bf16.msra.mxu0 %v683
        %717 = vmatprep.subr.bf16.mxu0 %v686
        %718 = vmatpush1.bf16.msra.mxu0 %v685
        %719 = vmatprep.subr.bf16.mxu0 0
        %720 = vmatpush1.bf16.msra.mxu0 0
        %721 = vmatprep.subr.bf16.mxu0 0
        %722 = vmatpush1.bf16.msra.mxu0 0
        %723 = vmatprep.subr.bf16.mxu0 0
        %724 = vmatpush1.bf16.msra.mxu0 0
        %725 = vmatprep.subr.bf16.mxu0 0
        %726 = vmatpush1.bf16.msra.mxu0 0
        %727 = vmatprep.subr.bf16.mxu0 0
        %728 = vmatpush1.bf16.msra.mxu0 0
        %729 = vmatprep.subr.bf16.mxu0 0
        %730 = vmatpush1.bf16.msra.mxu0 0
        %731 = vmatprep.subr.bf16.mxu0 0
        %732 = vmatpush1.bf16.msra.mxu0 0
        %733 = vmatprep.subr.bf16.mxu0 0
        %734 = vmatpush1.bf16.msra.mxu0 0
        %735 = vmatprep.mubr.bf16.mxu0 0
        %736 = vmatmul.mubr.bf16.gmra.mrb[0].mxu0 %v591
        %v737 = vpop.f32.mrb[0].mxu0
        %v738 = vadd.f32 %v616, %v737
        %v739 = vpop.f32.mrb[0].mxu0
        %v740 = vadd.f32 %v620, %v739
        %v741 = vpop.f32.mrb[0].mxu0
        %v742 = vadd.f32 %v616, %v741
        %v743 = vpop.f32.mrb[0].mxu0
        %v744 = vadd.f32 %v620, %v743
        %745 = vmatprep.mubr.bf16.mxu0 0
        %746 = vmatmul.mubr.bf16.gmra.mrb[0].mxu0 %v592
        %v747 = vpop.f32.mrb[0].mxu0
        %v748 = vadd.f32 %v616, %v747
        %v749 = vpop.f32.mrb[0].mxu0
        %v750 = vadd.f32 %v620, %v749
        %v751 = vpop.f32.mrb[0].mxu0
        %v752 = vadd.f32 %v616, %v751
        %v753 = vpop.f32.mrb[0].mxu0
        %v754 = vadd.f32 %v620, %v753
        %755 = vmatprep.mubr.bf16.mxu0 0
        %756 = vmatmul.mubr.bf16.gmra.mrb[0].mxu0 %v593
        %v757 = vpop.f32.mrb[0].mxu0
        %v758 = vadd.f32 %v616, %v757
        %v759 = vpop.f32.mrb[0].mxu0
        %v760 = vadd.f32 %v620, %v759
        %v761 = vpop.f32.mrb[0].mxu0
        %v762 = vadd.f32 %v616, %v761
        %v763 = vpop.f32.mrb[0].mxu0
        %v764 = vadd.f32 %v620, %v763
        %765 = vmatprep.mubr.bf16.mxu0 0
        %766 = vmatmul.mubr.bf16.gmra.mrb[0].mxu0 %v594
        %v767 = vpop.f32.mrb[0].mxu0
        %v768 = vadd.f32 %v616, %v767
        %v769 = vpop.f32.mrb[0].mxu0
        %v770 = vadd.f32 %v620, %v769
        %v771 = vpop.f32.mrb[0].mxu0
        %v772 = vadd.f32 %v616, %v771
        %v773 = vpop.f32.mrb[0].mxu0
        %v774 = vadd.f32 %v620, %v773
        %775 = vdwg.mxu0
        %v776 = vmax.f32 %v738, %v748
        %v777 = vmax.f32 %v742, %v752
        %v778 = vmax.f32 %v776, %v758
        %v779 = vmax.f32 %v777, %v762
        %v780 = vmax.f32 %v778, %v768
        %v781 = vmax.f32 %v779, %v772
        %v782 = vmax.f32 %v780, %v781
        %v783 = vrot.slane %v782, 4
        %v784 = vmax.f32 %v782, %v783
        %v785 = vrot.slane %v784, 2
        %v786 = vmax.f32 %v784, %v785
        %v787 = vrot.slane %v786, 1
        %v788 = vmax.f32 %v786, %v787
        %v789 = vmax.f32 %v740, %v750
        %v790 = vmax.f32 %v744, %v754
        %v791 = vmax.f32 %v789, %v760
        %v792 = vmax.f32 %v790, %v764
        %v793 = vmax.f32 %v791, %v770
        %v794 = vmax.f32 %v792, %v774
        %v795 = vmax.f32 %v793, %v794
        %v796 = vrot.slane %v795, 4
        %v797 = vmax.f32 %v795, %v796
        %v798 = vrot.slane %v797, 2
        %v799 = vmax.f32 %v797, %v798
        %v800 = vrot.slane %v799, 1
        %v801 = vmax.f32 %v799, %v800
        %v802 = vpack.c.bf16 %v742, %v738
        %v803 = vpack.c.bf16 %v744, %v740
        %v804 = vpack.c.bf16 %v752, %v748
        %v805 = vpack.c.bf16 %v754, %v750
        %v806 = vpack.c.bf16 %v762, %v758
        %v807 = vpack.c.bf16 %v764, %v760
        %v808 = vpack.c.bf16 %v772, %v768
        %v809 = vpack.c.bf16 %v774, %v770
        %v810 = vld [vmem:[#allocation5] sm:$0xff]
        %v811 = vld [vmem:[#allocation5 + $0x8] sm:$0xff]
        %v812 = vld [vmem:[#allocation5 + $0x10] sm:$0xff]
        %v813 = vld [vmem:[#allocation5 + $0x18] sm:$0xff]
        %v814 = vld [vmem:[#allocation5 + $0x20] sm:$0xff]
        %v815 = vld [vmem:[#allocation5 + $0x28] sm:$0xff]
        %v816 = vld [vmem:[#allocation5 + $0x30] sm:$0xff]
        %v817 = vld [vmem:[#allocation5 + $0x38] sm:$0xff]
        %v818 = vld [vmem:[#allocation5 + $0x40] sm:$0xff]
        %v819 = vld [vmem:[#allocation5 + $0x48] sm:$0xff]
        %v820 = vld [vmem:[#allocation5 + $0x50] sm:$0xff]
        %v821 = vld [vmem:[#allocation5 + $0x58] sm:$0xff]
        %v822 = vld [vmem:[#allocation5 + $0x60] sm:$0xff]
        %v823 = vld [vmem:[#allocation5 + $0x68] sm:$0xff]
        %v824 = vld [vmem:[#allocation5 + $0x70] sm:$0xff]
        %v825 = vld [vmem:[#allocation5 + $0x78] sm:$0xff]
        %v826 = vld [vmem:[#allocation5 + $0x80] sm:$0xff]
        %v827 = vld [vmem:[#allocation5 + $0x88] sm:$0xff]
        %v828 = vld [vmem:[#allocation5 + $0x90] sm:$0xff]
        %v829 = vld [vmem:[#allocation5 + $0x98] sm:$0xff]
        %v830 = vld [vmem:[#allocation5 + $0xa0] sm:$0xff]
        %v831 = vld [vmem:[#allocation5 + $0xa8] sm:$0xff]
        %v832 = vld [vmem:[#allocation5 + $0xb0] sm:$0xff]
        %v833 = vld [vmem:[#allocation5 + $0xb8] sm:$0xff]
        %v834 = vld [vmem:[#allocation5 + $0xc0] sm:$0xff]
        %v835 = vld [vmem:[#allocation5 + $0xc8] sm:$0xff]
        %v836 = vld [vmem:[#allocation5 + $0xd0] sm:$0xff]
        %v837 = vld [vmem:[#allocation5 + $0xd8] sm:$0xff]
        %v838 = vld [vmem:[#allocation5 + $0xe0] sm:$0xff]
        %v839 = vld [vmem:[#allocation5 + $0xe8] sm:$0xff]
        %v840 = vld [vmem:[#allocation5 + $0xf0] sm:$0xff]
        %v841 = vld [vmem:[#allocation5 + $0xf8] sm:$0xff]
        %v842 = vld [vmem:[#allocation5 + $0x100] sm:$0xff]
        %v843 = vld [vmem:[#allocation5 + $0x108] sm:$0xff]
        %v844 = vld [vmem:[#allocation5 + $0x110] sm:$0xff]
        %v845 = vld [vmem:[#allocation5 + $0x118] sm:$0xff]
        %v846 = vld [vmem:[#allocation5 + $0x120] sm:$0xff]
        %v847 = vld [vmem:[#allocation5 + $0x128] sm:$0xff]
        %v848 = vld [vmem:[#allocation5 + $0x130] sm:$0xff]
        %v849 = vld [vmem:[#allocation5 + $0x138] sm:$0xff]
        %v850 = vld [vmem:[#allocation5 + $0x140] sm:$0xff]
        %v851 = vld [vmem:[#allocation5 + $0x148] sm:$0xff]
        %v852 = vld [vmem:[#allocation5 + $0x150] sm:$0xff]
        %v853 = vld [vmem:[#allocation5 + $0x158] sm:$0xff]
        %v854 = vld [vmem:[#allocation5 + $0x160] sm:$0xff]
        %v855 = vld [vmem:[#allocation5 + $0x168] sm:$0xff]
        %v856 = vld [vmem:[#allocation5 + $0x170] sm:$0xff]
        %v857 = vld [vmem:[#allocation5 + $0x178] sm:$0xff]
        %v858 = vld [vmem:[#allocation5 + $0x180] sm:$0xff]
        %v859 = vld [vmem:[#allocation5 + $0x188] sm:$0xff]
        %v860 = vld [vmem:[#allocation5 + $0x190] sm:$0xff]
        %v861 = vld [vmem:[#allocation5 + $0x198] sm:$0xff]
        %v862 = vld [vmem:[#allocation5 + $0x1a0] sm:$0xff]
        %v863 = vld [vmem:[#allocation5 + $0x1a8] sm:$0xff]
        %v864 = vld [vmem:[#allocation5 + $0x1b0] sm:$0xff]
        %v865 = vld [vmem:[#allocation5 + $0x1b8] sm:$0xff]
        %v866 = vld [vmem:[#allocation5 + $0x1c0] sm:$0xff]
        %v867 = vld [vmem:[#allocation5 + $0x1c8] sm:$0xff]
        %v868 = vld [vmem:[#allocation5 + $0x1d0] sm:$0xff]
        %v869 = vld [vmem:[#allocation5 + $0x1d8] sm:$0xff]
        %v870 = vld [vmem:[#allocation5 + $0x1e0] sm:$0xff]
        %v871 = vld [vmem:[#allocation5 + $0x1e8] sm:$0xff]
        %v872 = vld [vmem:[#allocation5 + $0x1f0] sm:$0xff]
        %v873 = vld [vmem:[#allocation5 + $0x1f8] sm:$0xff]
        %v938 = vunpack.c.l.b16 %v810
        %v939 = vunpack.c.h.b16 %v810
        %v940 = vunpack.c.l.b16 %v811
        %v941 = vunpack.c.h.b16 %v811
        %v942 = vunpack.c.l.b16 %v812
        %v943 = vunpack.c.h.b16 %v812
        %v944 = vunpack.c.l.b16 %v813
        %v945 = vunpack.c.h.b16 %v813
        %v946 = vunpack.c.l.b16 %v814
        %v947 = vunpack.c.h.b16 %v814
        %v948 = vunpack.c.l.b16 %v815
        %v949 = vunpack.c.h.b16 %v815
        %v950 = vunpack.c.l.b16 %v816
        %v951 = vunpack.c.h.b16 %v816
        %v952 = vunpack.c.l.b16 %v817
        %v953 = vunpack.c.h.b16 %v817
        %v954 = vunpack.c.l.b16 %v818
        %v955 = vunpack.c.h.b16 %v818
        %v956 = vunpack.c.l.b16 %v819
        %v957 = vunpack.c.h.b16 %v819
        %v958 = vunpack.c.l.b16 %v820
        %v959 = vunpack.c.h.b16 %v820
        %v960 = vunpack.c.l.b16 %v821
        %v961 = vunpack.c.h.b16 %v821
        %v962 = vunpack.c.l.b16 %v822
        %v963 = vunpack.c.h.b16 %v822
        %v964 = vunpack.c.l.b16 %v823
        %v965 = vunpack.c.h.b16 %v823
        %v966 = vunpack.c.l.b16 %v824
        %v967 = vunpack.c.h.b16 %v824
        %v968 = vunpack.c.l.b16 %v825
        %v969 = vunpack.c.h.b16 %v825
        %v970 = vunpack.c.l.b16 %v826
        %v971 = vunpack.c.h.b16 %v826
        %v972 = vunpack.c.l.b16 %v827
        %v973 = vunpack.c.h.b16 %v827
        %v974 = vunpack.c.l.b16 %v828
        %v975 = vunpack.c.h.b16 %v828
        %v976 = vunpack.c.l.b16 %v829
        %v977 = vunpack.c.h.b16 %v829
        %v978 = vunpack.c.l.b16 %v830
        %v979 = vunpack.c.h.b16 %v830
        %v980 = vunpack.c.l.b16 %v831
        %v981 = vunpack.c.h.b16 %v831
        %v982 = vunpack.c.l.b16 %v832
        %v983 = vunpack.c.h.b16 %v832
        %v984 = vunpack.c.l.b16 %v833
        %v985 = vunpack.c.h.b16 %v833
        %v986 = vunpack.c.l.b16 %v834
        %v987 = vunpack.c.h.b16 %v834
        %v988 = vunpack.c.l.b16 %v835
        %v989 = vunpack.c.h.b16 %v835
        %v990 = vunpack.c.l.b16 %v836
        %v991 = vunpack.c.h.b16 %v836
        %v992 = vunpack.c.l.b16 %v837
        %v993 = vunpack.c.h.b16 %v837
        %v994 = vunpack.c.l.b16 %v838
        %v995 = vunpack.c.h.b16 %v838
        %v996 = vunpack.c.l.b16 %v839
        %v997 = vunpack.c.h.b16 %v839
        %v998 = vunpack.c.l.b16 %v840
        %v999 = vunpack.c.h.b16 %v840
        %v1000 = vunpack.c.l.b16 %v841
        %v1001 = vunpack.c.h.b16 %v841
        %v1002 = vunpack.c.l.b16 %v842
        %v1003 = vunpack.c.h.b16 %v842
        %v1004 = vunpack.c.l.b16 %v843
        %v1005 = vunpack.c.h.b16 %v843
        %v1006 = vunpack.c.l.b16 %v844
        %v1007 = vunpack.c.h.b16 %v844
        %v1008 = vunpack.c.l.b16 %v845
        %v1009 = vunpack.c.h.b16 %v845
        %v1010 = vunpack.c.l.b16 %v846
        %v1011 = vunpack.c.h.b16 %v846
        %v1012 = vunpack.c.l.b16 %v847
        %v1013 = vunpack.c.h.b16 %v847
        %v1014 = vunpack.c.l.b16 %v848
        %v1015 = vunpack.c.h.b16 %v848
        %v1016 = vunpack.c.l.b16 %v849
        %v1017 = vunpack.c.h.b16 %v849
        %v1018 = vunpack.c.l.b16 %v850
        %v1019 = vunpack.c.h.b16 %v850
        %v1020 = vunpack.c.l.b16 %v851
        %v1021 = vunpack.c.h.b16 %v851
        %v1022 = vunpack.c.l.b16 %v852
        %v1023 = vunpack.c.h.b16 %v852
        %v1024 = vunpack.c.l.b16 %v853
        %v1025 = vunpack.c.h.b16 %v853
        %v1026 = vunpack.c.l.b16 %v854
        %v1027 = vunpack.c.h.b16 %v854
        %v1028 = vunpack.c.l.b16 %v855
        %v1029 = vunpack.c.h.b16 %v855
        %v1030 = vunpack.c.l.b16 %v856
        %v1031 = vunpack.c.h.b16 %v856
        %v1032 = vunpack.c.l.b16 %v857
        %v1033 = vunpack.c.h.b16 %v857
        %v1034 = vunpack.c.l.b16 %v858
        %v1035 = vunpack.c.h.b16 %v858
        %v1036 = vunpack.c.l.b16 %v859
        %v1037 = vunpack.c.h.b16 %v859
        %v1038 = vunpack.c.l.b16 %v860
        %v1039 = vunpack.c.h.b16 %v860
        %v1040 = vunpack.c.l.b16 %v861
        %v1041 = vunpack.c.h.b16 %v861
        %v1042 = vunpack.c.l.b16 %v862
        %v1043 = vunpack.c.h.b16 %v862
        %v1044 = vunpack.c.l.b16 %v863
        %v1045 = vunpack.c.h.b16 %v863
        %v1046 = vunpack.c.l.b16 %v864
        %v1047 = vunpack.c.h.b16 %v864
        %v1048 = vunpack.c.l.b16 %v865
        %v1049 = vunpack.c.h.b16 %v865
        %v1050 = vunpack.c.l.b16 %v866
        %v1051 = vunpack.c.h.b16 %v866
        %v1052 = vunpack.c.l.b16 %v867
        %v1053 = vunpack.c.h.b16 %v867
        %v1054 = vunpack.c.l.b16 %v868
        %v1055 = vunpack.c.h.b16 %v868
        %v1056 = vunpack.c.l.b16 %v869
        %v1057 = vunpack.c.h.b16 %v869
        %v1058 = vunpack.c.l.b16 %v870
        %v1059 = vunpack.c.h.b16 %v870
        %v1060 = vunpack.c.l.b16 %v871
        %v1061 = vunpack.c.h.b16 %v871
        %v1062 = vunpack.c.l.b16 %v872
        %v1063 = vunpack.c.h.b16 %v872
        %v1064 = vunpack.c.l.b16 %v873
        %v1065 = vunpack.c.h.b16 %v873
        %v1066 = vpack.c.b16 %v942, %v938
        %v1067 = vpack.c.b16 %v943, %v939
        %v1068 = vpack.c.b16 %v944, %v940
        %v1069 = vpack.c.b16 %v945, %v941
        %v1070 = vpack.c.b16 %v950, %v946
        %v1071 = vpack.c.b16 %v951, %v947
        %v1072 = vpack.c.b16 %v952, %v948
        %v1073 = vpack.c.b16 %v953, %v949
        %v1074 = vpack.c.b16 %v958, %v954
        %v1075 = vpack.c.b16 %v959, %v955
        %v1076 = vpack.c.b16 %v960, %v956
        %v1077 = vpack.c.b16 %v961, %v957
        %v1078 = vpack.c.b16 %v966, %v962
        %v1079 = vpack.c.b16 %v967, %v963
        %v1080 = vpack.c.b16 %v968, %v964
        %v1081 = vpack.c.b16 %v969, %v965
        %v1082 = vpack.c.b16 %v974, %v970
        %v1083 = vpack.c.b16 %v975, %v971
        %v1084 = vpack.c.b16 %v976, %v972
        %v1085 = vpack.c.b16 %v977, %v973
        %v1086 = vpack.c.b16 %v982, %v978
        %v1087 = vpack.c.b16 %v983, %v979
        %v1088 = vpack.c.b16 %v984, %v980
        %v1089 = vpack.c.b16 %v985, %v981
        %v1090 = vpack.c.b16 %v990, %v986
        %v1091 = vpack.c.b16 %v991, %v987
        %v1092 = vpack.c.b16 %v992, %v988
        %v1093 = vpack.c.b16 %v993, %v989
        %v1094 = vpack.c.b16 %v998, %v994
        %v1095 = vpack.c.b16 %v999, %v995
        %v1096 = vpack.c.b16 %v1000, %v996
        %v1097 = vpack.c.b16 %v1001, %v997
        %v1098 = vpack.c.b16 %v1006, %v1002
        %v1099 = vpack.c.b16 %v1007, %v1003
        %v1100 = vpack.c.b16 %v1008, %v1004
        %v1101 = vpack.c.b16 %v1009, %v1005
        %v1102 = vpack.c.b16 %v1014, %v1010
        %v1103 = vpack.c.b16 %v1015, %v1011
        %v1104 = vpack.c.b16 %v1016, %v1012
        %v1105 = vpack.c.b16 %v1017, %v1013
        %v1106 = vpack.c.b16 %v1022, %v1018
        %v1107 = vpack.c.b16 %v1023, %v1019
        %v1108 = vpack.c.b16 %v1024, %v1020
        %v1109 = vpack.c.b16 %v1025, %v1021
        %v1110 = vpack.c.b16 %v1030, %v1026
        %v1111 = vpack.c.b16 %v1031, %v1027
        %v1112 = vpack.c.b16 %v1032, %v1028
        %v1113 = vpack.c.b16 %v1033, %v1029
        %v1114 = vpack.c.b16 %v1038, %v1034
        %v1115 = vpack.c.b16 %v1039, %v1035
        %v1116 = vpack.c.b16 %v1040, %v1036
        %v1117 = vpack.c.b16 %v1041, %v1037
        %v1118 = vpack.c.b16 %v1046, %v1042
        %v1119 = vpack.c.b16 %v1047, %v1043
        %v1120 = vpack.c.b16 %v1048, %v1044
        %v1121 = vpack.c.b16 %v1049, %v1045
        %v1122 = vpack.c.b16 %v1054, %v1050
        %v1123 = vpack.c.b16 %v1055, %v1051
        %v1124 = vpack.c.b16 %v1056, %v1052
        %v1125 = vpack.c.b16 %v1057, %v1053
        %v1126 = vpack.c.b16 %v1062, %v1058
        %v1127 = vpack.c.b16 %v1063, %v1059
        %v1128 = vpack.c.b16 %v1064, %v1060
        %v1129 = vpack.c.b16 %v1065, %v1061
        %1194 = vmatprep.subr.bf16.mxu0 %v1067
        %1195 = vmatpush1.bf16.msra.mxu0 %v1066
        %1196 = vmatprep.subr.bf16.mxu0 %v1071
        %1197 = vmatpush1.bf16.msra.mxu0 %v1070
        %1198 = vmatprep.subr.bf16.mxu0 %v1075
        %1199 = vmatpush1.bf16.msra.mxu0 %v1074
        %1200 = vmatprep.subr.bf16.mxu0 %v1079
        %1201 = vmatpush1.bf16.msra.mxu0 %v1078
        %1202 = vmatprep.subr.bf16.mxu0 %v1083
        %1203 = vmatpush1.bf16.msra.mxu0 %v1082
        %1204 = vmatprep.subr.bf16.mxu0 %v1087
        %1205 = vmatpush1.bf16.msra.mxu0 %v1086
        %1206 = vmatprep.subr.bf16.mxu0 %v1091
        %1207 = vmatpush1.bf16.msra.mxu0 %v1090
        %1208 = vmatprep.subr.bf16.mxu0 %v1095
        %1209 = vmatpush1.bf16.msra.mxu0 %v1094
        %1210 = vmatprep.subr.bf16.mxu0 %v1099
        %1211 = vmatpush1.bf16.msra.mxu0 %v1098
        %1212 = vmatprep.subr.bf16.mxu0 %v1103
        %1213 = vmatpush1.bf16.msra.mxu0 %v1102
        %1214 = vmatprep.subr.bf16.mxu0 %v1107
        %1215 = vmatpush1.bf16.msra.mxu0 %v1106
        %1216 = vmatprep.subr.bf16.mxu0 %v1111
        %1217 = vmatpush1.bf16.msra.mxu0 %v1110
        %1218 = vmatprep.subr.bf16.mxu0 %v1115
        %1219 = vmatpush1.bf16.msra.mxu0 %v1114
        %1220 = vmatprep.subr.bf16.mxu0 %v1119
        %1221 = vmatpush1.bf16.msra.mxu0 %v1118
        %1222 = vmatprep.subr.bf16.mxu0 %v1123
        %1223 = vmatpush1.bf16.msra.mxu0 %v1122
        %1224 = vmatprep.subr.bf16.mxu0 %v1127
        %1225 = vmatpush1.bf16.msra.mxu0 %v1126
        %1226 = vmatprep.mubr.bf16.mxu0 %v803
        %1227 = vmatmul.mubr.bf16.gmra.mrb[0].mxu0 %v802
        %v1228 = vpop.f32.mrb[0].mxu0
        %v1229 = vadd.f32 0.0, %v1228
        %v1230 = vpop.f32.mrb[0].mxu0
        %v1231 = vadd.f32 0.0, %v1230
        %v1232 = vpop.f32.mrb[0].mxu0
        %v1233 = vadd.f32 0.0, %v1232
        %v1234 = vpop.f32.mrb[0].mxu0
        %v1235 = vadd.f32 0.0, %v1234
        %1236 = vmatprep.mubr.bf16.mxu0 %v805
        %1237 = vmatmul.mubr.bf16.gmra.mrb[0].mxu0 %v804
        %v1238 = vpop.f32.mrb[0].mxu0
        %v1239 = vadd.f32 0.0, %v1238
        %v1240 = vpop.f32.mrb[0].mxu0
        %v1241 = vadd.f32 0.0, %v1240
        %v1242 = vpop.f32.mrb[0].mxu0
        %v1243 = vadd.f32 0.0, %v1242
        %v1244 = vpop.f32.mrb[0].mxu0
        %v1245 = vadd.f32 0.0, %v1244
        %1246 = vmatprep.mubr.bf16.mxu0 %v807
        %1247 = vmatmul.mubr.bf16.gmra.mrb[0].mxu0 %v806
        %v1248 = vpop.f32.mrb[0].mxu0
        %v1249 = vadd.f32 0.0, %v1248
        %v1250 = vpop.f32.mrb[0].mxu0
        %v1251 = vadd.f32 0.0, %v1250
        %v1252 = vpop.f32.mrb[0].mxu0
        %v1253 = vadd.f32 0.0, %v1252
        %v1254 = vpop.f32.mrb[0].mxu0
        %v1255 = vadd.f32 0.0, %v1254
        %1256 = vmatprep.mubr.bf16.mxu0 %v809
        %1257 = vmatmul.mubr.bf16.gmra.mrb[0].mxu0 %v808
        %v1258 = vpop.f32.mrb[0].mxu0
        %v1259 = vadd.f32 0.0, %v1258
        %v1260 = vpop.f32.mrb[0].mxu0
        %v1261 = vadd.f32 0.0, %v1260
        %v1262 = vpop.f32.mrb[0].mxu0
        %v1263 = vadd.f32 0.0, %v1262
        %v1264 = vpop.f32.mrb[0].mxu0
        %v1265 = vadd.f32 0.0, %v1264
        %1266 = vdwg.mxu0
        %1267 = vmatprep.subr.bf16.mxu0 %v1069
        %1268 = vmatpush1.bf16.msra.mxu0 %v1068
        %1269 = vmatprep.subr.bf16.mxu0 %v1073
        %1270 = vmatpush1.bf16.msra.mxu0 %v1072
        %1271 = vmatprep.subr.bf16.mxu0 %v1077
        %1272 = vmatpush1.bf16.msra.mxu0 %v1076
        %1273 = vmatprep.subr.bf16.mxu0 %v1081
        %1274 = vmatpush1.bf16.msra.mxu0 %v1080
        %1275 = vmatprep.subr.bf16.mxu0 %v1085
        %1276 = vmatpush1.bf16.msra.mxu0 %v1084
        %1277 = vmatprep.subr.bf16.mxu0 %v1089
        %1278 = vmatpush1.bf16.msra.mxu0 %v1088
        %1279 = vmatprep.subr.bf16.mxu0 %v1093
        %1280 = vmatpush1.bf16.msra.mxu0 %v1092
        %1281 = vmatprep.subr.bf16.mxu0 %v1097
        %1282 = vmatpush1.bf16.msra.mxu0 %v1096
        %1283 = vmatprep.subr.bf16.mxu0 %v1101
        %1284 = vmatpush1.bf16.msra.mxu0 %v1100
        %1285 = vmatprep.subr.bf16.mxu0 %v1105
        %1286 = vmatpush1.bf16.msra.mxu0 %v1104
        %1287 = vmatprep.subr.bf16.mxu0 %v1109
        %1288 = vmatpush1.bf16.msra.mxu0 %v1108
        %1289 = vmatprep.subr.bf16.mxu0 %v1113
        %1290 = vmatpush1.bf16.msra.mxu0 %v1112
        %1291 = vmatprep.subr.bf16.mxu0 %v1117
        %1292 = vmatpush1.bf16.msra.mxu0 %v1116
        %1293 = vmatprep.subr.bf16.mxu0 %v1121
        %1294 = vmatpush1.bf16.msra.mxu0 %v1120
        %1295 = vmatprep.subr.bf16.mxu0 %v1125
        %1296 = vmatpush1.bf16.msra.mxu0 %v1124
        %1297 = vmatprep.subr.bf16.mxu0 %v1129
        %1298 = vmatpush1.bf16.msra.mxu0 %v1128
        %1299 = vmatprep.mubr.bf16.mxu0 %v803
        %1300 = vmatmul.mubr.bf16.gmra.mrb[0].mxu0 %v802
        %v1301 = vpop.f32.mrb[0].mxu0
        %v1302 = vadd.f32 0.0, %v1301
        %v1303 = vpop.f32.mrb[0].mxu0
        %v1304 = vadd.f32 0.0, %v1303
        %v1305 = vpop.f32.mrb[0].mxu0
        %v1306 = vadd.f32 0.0, %v1305
        %v1307 = vpop.f32.mrb[0].mxu0
        %v1308 = vadd.f32 0.0, %v1307
        %1309 = vmatprep.mubr.bf16.mxu0 %v805
        %1310 = vmatmul.mubr.bf16.gmra.mrb[0].mxu0 %v804
        %v1311 = vpop.f32.mrb[0].mxu0
        %v1312 = vadd.f32 0.0, %v1311
        %v1313 = vpop.f32.mrb[0].mxu0
        %v1314 = vadd.f32 0.0, %v1313
        %v1315 = vpop.f32.mrb[0].mxu0
        %v1316 = vadd.f32 0.0, %v1315
        %v1317 = vpop.f32.mrb[0].mxu0
        %v1318 = vadd.f32 0.0, %v1317
        %1319 = vmatprep.mubr.bf16.mxu0 %v807
        %1320 = vmatmul.mubr.bf16.gmra.mrb[0].mxu0 %v806
        %v1321 = vpop.f32.mrb[0].mxu0
        %v1322 = vadd.f32 0.0, %v1321
        %v1323 = vpop.f32.mrb[0].mxu0
        %v1324 = vadd.f32 0.0, %v1323
        %v1325 = vpop.f32.mrb[0].mxu0
        %v1326 = vadd.f32 0.0, %v1325
        %v1327 = vpop.f32.mrb[0].mxu0
        %v1328 = vadd.f32 0.0, %v1327
        %1329 = vmatprep.mubr.bf16.mxu0 %v809
        %1330 = vmatmul.mubr.bf16.gmra.mrb[0].mxu0 %v808
        %v1331 = vpop.f32.mrb[0].mxu0
        %v1332 = vadd.f32 0.0, %v1331
        %v1333 = vpop.f32.mrb[0].mxu0
        %v1334 = vadd.f32 0.0, %v1333
        %v1335 = vpop.f32.mrb[0].mxu0
        %v1336 = vadd.f32 0.0, %v1335
        %v1337 = vpop.f32.mrb[0].mxu0
        %v1338 = vadd.f32 0.0, %v1337
        %1339 = vdwg.mxu0
        %v1340 = vpack.c.bf16 %v788, %v788
        %v1341 = vpack.c.bf16 %v801, %v801
        %v1342 = vld [vmem:[#allocation2] sm:$0xff]
        %v1343 = vld [vmem:[#allocation2 + $0x8] sm:$0xff]
        %v1344 = vld [vmem:[#allocation2 + $0x10] sm:$0xff]
        %v1345 = vld [vmem:[#allocation2 + $0x18] sm:$0xff]
        %v1346 = vld [vmem:[#allocation2 + $0x20] sm:$0xff]
        %v1347 = vld [vmem:[#allocation2 + $0x28] sm:$0xff]
        %v1348 = vld [vmem:[#allocation2 + $0x30] sm:$0xff]
        %v1349 = vld [vmem:[#allocation2 + $0x38] sm:$0xff]
        %v1350 = vld [vmem:[#allocation2 + $0x40] sm:$0xff]
        %v1351 = vld [vmem:[#allocation2 + $0x48] sm:$0xff]
        %v1352 = vld [vmem:[#allocation2 + $0x50] sm:$0xff]
        %v1353 = vld [vmem:[#allocation2 + $0x58] sm:$0xff]
        %v1354 = vld [vmem:[#allocation2 + $0x60] sm:$0xff]
        %v1355 = vld [vmem:[#allocation2 + $0x68] sm:$0xff]
        %v1356 = vld [vmem:[#allocation2 + $0x70] sm:$0xff]
        %v1357 = vld [vmem:[#allocation2 + $0x78] sm:$0xff]
        %v1358 = vld [vmem:[#allocation2 + $0x80] sm:$0xff]
        %v1359 = vld [vmem:[#allocation2 + $0x88] sm:$0xff]
        %v1360 = vld [vmem:[#allocation2 + $0x90] sm:$0xff]
        %v1361 = vld [vmem:[#allocation2 + $0x98] sm:$0xff]
        %v1362 = vld [vmem:[#allocation2 + $0xa0] sm:$0xff]
        %v1363 = vld [vmem:[#allocation2 + $0xa8] sm:$0xff]
        %v1364 = vld [vmem:[#allocation2 + $0xb0] sm:$0xff]
        %v1365 = vld [vmem:[#allocation2 + $0xb8] sm:$0xff]
        %v1366 = vld [vmem:[#allocation2 + $0xc0] sm:$0xff]
        %v1367 = vld [vmem:[#allocation2 + $0xc8] sm:$0xff]
        %v1368 = vld [vmem:[#allocation2 + $0xd0] sm:$0xff]
        %v1369 = vld [vmem:[#allocation2 + $0xd8] sm:$0xff]
        %v1370 = vld [vmem:[#allocation2 + $0xe0] sm:$0xff]
        %v1371 = vld [vmem:[#allocation2 + $0xe8] sm:$0xff]
        %v1372 = vld [vmem:[#allocation2 + $0xf0] sm:$0xff]
        %v1373 = vld [vmem:[#allocation2 + $0xf8] sm:$0xff]
        %v1374 = vld [vmem:[#allocation2 + $0x100] sm:$0xff]
        %v1375 = vld [vmem:[#allocation2 + $0x108] sm:$0xff]
        %v1376 = vld [vmem:[#allocation2 + $0x110] sm:$0xff]
        %v1377 = vld [vmem:[#allocation2 + $0x118] sm:$0xff]
        %v1378 = vld [vmem:[#allocation2 + $0x120] sm:$0xff]
        %v1379 = vld [vmem:[#allocation2 + $0x128] sm:$0xff]
        %v1380 = vld [vmem:[#allocation2 + $0x130] sm:$0xff]
        %v1381 = vld [vmem:[#allocation2 + $0x138] sm:$0xff]
        %v1382 = vld [vmem:[#allocation2 + $0x140] sm:$0xff]
        %v1383 = vld [vmem:[#allocation2 + $0x148] sm:$0xff]
        %v1384 = vld [vmem:[#allocation2 + $0x150] sm:$0xff]
        %v1385 = vld [vmem:[#allocation2 + $0x158] sm:$0xff]
        %v1386 = vld [vmem:[#allocation2 + $0x160] sm:$0xff]
        %v1387 = vld [vmem:[#allocation2 + $0x168] sm:$0xff]
        %v1388 = vld [vmem:[#allocation2 + $0x170] sm:$0xff]
        %v1389 = vld [vmem:[#allocation2 + $0x178] sm:$0xff]
        %v1390 = vld [vmem:[#allocation2 + $0x180] sm:$0xff]
        %v1391 = vld [vmem:[#allocation2 + $0x188] sm:$0xff]
        %v1392 = vld [vmem:[#allocation2 + $0x190] sm:$0xff]
        %v1393 = vld [vmem:[#allocation2 + $0x198] sm:$0xff]
        %v1394 = vld [vmem:[#allocation2 + $0x1a0] sm:$0xff]
        %v1395 = vld [vmem:[#allocation2 + $0x1a8] sm:$0xff]
        %v1396 = vld [vmem:[#allocation2 + $0x1b0] sm:$0xff]
        %v1397 = vld [vmem:[#allocation2 + $0x1b8] sm:$0xff]
        %v1398 = vld [vmem:[#allocation2 + $0x1c0] sm:$0xff]
        %v1399 = vld [vmem:[#allocation2 + $0x1c8] sm:$0xff]
        %v1400 = vld [vmem:[#allocation2 + $0x1d0] sm:$0xff]
        %v1401 = vld [vmem:[#allocation2 + $0x1d8] sm:$0xff]
        %v1402 = vld [vmem:[#allocation2 + $0x1e0] sm:$0xff]
        %v1403 = vld [vmem:[#allocation2 + $0x1e8] sm:$0xff]
        %v1404 = vld [vmem:[#allocation2 + $0x1f0] sm:$0xff]
        %v1405 = vld [vmem:[#allocation2 + $0x1f8] sm:$0xff]
        %v1406 = vld [vmem:[%s7] sm:$0xf]
        %v1471 = vunpack.c.l.b16 %v1342
        %v1472 = vunpack.c.h.b16 %v1342
        %v1473 = vunpack.c.l.b16 %v1343
        %v1474 = vunpack.c.h.b16 %v1343
        %v1475 = vunpack.c.l.b16 %v1344
        %v1476 = vunpack.c.h.b16 %v1344
        %v1477 = vunpack.c.l.b16 %v1345
        %v1478 = vunpack.c.h.b16 %v1345
        %v1479 = vunpack.c.l.b16 %v1346
        %v1480 = vunpack.c.h.b16 %v1346
        %v1481 = vunpack.c.l.b16 %v1347
        %v1482 = vunpack.c.h.b16 %v1347
        %v1483 = vunpack.c.l.b16 %v1348
        %v1484 = vunpack.c.h.b16 %v1348
        %v1485 = vunpack.c.l.b16 %v1349
        %v1486 = vunpack.c.h.b16 %v1349
        %v1487 = vunpack.c.l.b16 %v1350
        %v1488 = vunpack.c.h.b16 %v1350
        %v1489 = vunpack.c.l.b16 %v1351
        %v1490 = vunpack.c.h.b16 %v1351
        %v1491 = vunpack.c.l.b16 %v1352
        %v1492 = vunpack.c.h.b16 %v1352
        %v1493 = vunpack.c.l.b16 %v1353
        %v1494 = vunpack.c.h.b16 %v1353
        %v1495 = vunpack.c.l.b16 %v1354
        %v1496 = vunpack.c.h.b16 %v1354
        %v1497 = vunpack.c.l.b16 %v1355
        %v1498 = vunpack.c.h.b16 %v1355
        %v1499 = vunpack.c.l.b16 %v1356
        %v1500 = vunpack.c.h.b16 %v1356
        %v1501 = vunpack.c.l.b16 %v1357
        %v1502 = vunpack.c.h.b16 %v1357
        %v1503 = vunpack.c.l.b16 %v1358
        %v1504 = vunpack.c.h.b16 %v1358
        %v1505 = vunpack.c.l.b16 %v1359
        %v1506 = vunpack.c.h.b16 %v1359
        %v1507 = vunpack.c.l.b16 %v1360
        %v1508 = vunpack.c.h.b16 %v1360
        %v1509 = vunpack.c.l.b16 %v1361
        %v1510 = vunpack.c.h.b16 %v1361
        %v1511 = vunpack.c.l.b16 %v1362
        %v1512 = vunpack.c.h.b16 %v1362
        %v1513 = vunpack.c.l.b16 %v1363
        %v1514 = vunpack.c.h.b16 %v1363
        %v1515 = vunpack.c.l.b16 %v1364
        %v1516 = vunpack.c.h.b16 %v1364
        %v1517 = vunpack.c.l.b16 %v1365
        %v1518 = vunpack.c.h.b16 %v1365
        %v1519 = vunpack.c.l.b16 %v1366
        %v1520 = vunpack.c.h.b16 %v1366
        %v1521 = vunpack.c.l.b16 %v1367
        %v1522 = vunpack.c.h.b16 %v1367
        %v1523 = vunpack.c.l.b16 %v1368
        %v1524 = vunpack.c.h.b16 %v1368
        %v1525 = vunpack.c.l.b16 %v1369
        %v1526 = vunpack.c.h.b16 %v1369
        %v1527 = vunpack.c.l.b16 %v1370
        %v1528 = vunpack.c.h.b16 %v1370
        %v1529 = vunpack.c.l.b16 %v1371
        %v1530 = vunpack.c.h.b16 %v1371
        %v1531 = vunpack.c.l.b16 %v1372
        %v1532 = vunpack.c.h.b16 %v1372
        %v1533 = vunpack.c.l.b16 %v1373
        %v1534 = vunpack.c.h.b16 %v1373
        %v1535 = vunpack.c.l.b16 %v1374
        %v1536 = vunpack.c.h.b16 %v1374
        %v1537 = vunpack.c.l.b16 %v1375
        %v1538 = vunpack.c.h.b16 %v1375
        %v1539 = vunpack.c.l.b16 %v1376
        %v1540 = vunpack.c.h.b16 %v1376
        %v1541 = vunpack.c.l.b16 %v1377
        %v1542 = vunpack.c.h.b16 %v1377
        %v1543 = vunpack.c.l.b16 %v1378
        %v1544 = vunpack.c.h.b16 %v1378
        %v1545 = vunpack.c.l.b16 %v1379
        %v1546 = vunpack.c.h.b16 %v1379
        %v1547 = vunpack.c.l.b16 %v1380
        %v1548 = vunpack.c.h.b16 %v1380
        %v1549 = vunpack.c.l.b16 %v1381
        %v1550 = vunpack.c.h.b16 %v1381
        %v1551 = vunpack.c.l.b16 %v1382
        %v1552 = vunpack.c.h.b16 %v1382
        %v1553 = vunpack.c.l.b16 %v1383
        %v1554 = vunpack.c.h.b16 %v1383
        %v1555 = vunpack.c.l.b16 %v1384
        %v1556 = vunpack.c.h.b16 %v1384
        %v1557 = vunpack.c.l.b16 %v1385
        %v1558 = vunpack.c.h.b16 %v1385
        %v1559 = vunpack.c.l.b16 %v1386
        %v1560 = vunpack.c.h.b16 %v1386
        %v1561 = vunpack.c.l.b16 %v1387
        %v1562 = vunpack.c.h.b16 %v1387
        %v1563 = vunpack.c.l.b16 %v1388
        %v1564 = vunpack.c.h.b16 %v1388
        %v1565 = vunpack.c.l.b16 %v1389
        %v1566 = vunpack.c.h.b16 %v1389
        %v1567 = vunpack.c.l.b16 %v1390
        %v1568 = vunpack.c.h.b16 %v1390
        %v1569 = vunpack.c.l.b16 %v1391
        %v1570 = vunpack.c.h.b16 %v1391
        %v1571 = vunpack.c.l.b16 %v1392
        %v1572 = vunpack.c.h.b16 %v1392
        %v1573 = vunpack.c.l.b16 %v1393
        %v1574 = vunpack.c.h.b16 %v1393
        %v1575 = vunpack.c.l.b16 %v1394
        %v1576 = vunpack.c.h.b16 %v1394
        %v1577 = vunpack.c.l.b16 %v1395
        %v1578 = vunpack.c.h.b16 %v1395
        %v1579 = vunpack.c.l.b16 %v1396
        %v1580 = vunpack.c.h.b16 %v1396
        %v1581 = vunpack.c.l.b16 %v1397
        %v1582 = vunpack.c.h.b16 %v1397
        %v1583 = vunpack.c.l.b16 %v1398
        %v1584 = vunpack.c.h.b16 %v1398
        %v1585 = vunpack.c.l.b16 %v1399
        %v1586 = vunpack.c.h.b16 %v1399
        %v1587 = vunpack.c.l.b16 %v1400
        %v1588 = vunpack.c.h.b16 %v1400
        %v1589 = vunpack.c.l.b16 %v1401
        %v1590 = vunpack.c.h.b16 %v1401
        %v1591 = vunpack.c.l.b16 %v1402
        %v1592 = vunpack.c.h.b16 %v1402
        %v1593 = vunpack.c.l.b16 %v1403
        %v1594 = vunpack.c.h.b16 %v1403
        %v1595 = vunpack.c.l.b16 %v1404
        %v1596 = vunpack.c.h.b16 %v1404
        %v1597 = vunpack.c.l.b16 %v1405
        %v1598 = vunpack.c.h.b16 %v1405
        %v1599 = vpack.c.b16 %v1475, %v1471
        %v1600 = vpack.c.b16 %v1476, %v1472
        %v1601 = vpack.c.b16 %v1477, %v1473
        %v1602 = vpack.c.b16 %v1478, %v1474
        %v1603 = vpack.c.b16 %v1483, %v1479
        %v1604 = vpack.c.b16 %v1484, %v1480
        %v1605 = vpack.c.b16 %v1485, %v1481
        %v1606 = vpack.c.b16 %v1486, %v1482
        %v1607 = vpack.c.b16 %v1491, %v1487
        %v1608 = vpack.c.b16 %v1492, %v1488
        %v1609 = vpack.c.b16 %v1493, %v1489
        %v1610 = vpack.c.b16 %v1494, %v1490
        %v1611 = vpack.c.b16 %v1499, %v1495
        %v1612 = vpack.c.b16 %v1500, %v1496
        %v1613 = vpack.c.b16 %v1501, %v1497
        %v1614 = vpack.c.b16 %v1502, %v1498
        %v1615 = vpack.c.b16 %v1507, %v1503
        %v1616 = vpack.c.b16 %v1508, %v1504
        %v1617 = vpack.c.b16 %v1509, %v1505
        %v1618 = vpack.c.b16 %v1510, %v1506
        %v1619 = vpack.c.b16 %v1515, %v1511
        %v1620 = vpack.c.b16 %v1516, %v1512
        %v1621 = vpack.c.b16 %v1517, %v1513
        %v1622 = vpack.c.b16 %v1518, %v1514
        %v1623 = vpack.c.b16 %v1523, %v1519
        %v1624 = vpack.c.b16 %v1524, %v1520
        %v1625 = vpack.c.b16 %v1525, %v1521
        %v1626 = vpack.c.b16 %v1526, %v1522
        %v1627 = vpack.c.b16 %v1531, %v1527
        %v1628 = vpack.c.b16 %v1532, %v1528
        %v1629 = vpack.c.b16 %v1533, %v1529
        %v1630 = vpack.c.b16 %v1534, %v1530
        %v1631 = vpack.c.b16 %v1539, %v1535
        %v1632 = vpack.c.b16 %v1540, %v1536
        %v1633 = vpack.c.b16 %v1541, %v1537
        %v1634 = vpack.c.b16 %v1542, %v1538
        %v1635 = vpack.c.b16 %v1547, %v1543
        %v1636 = vpack.c.b16 %v1548, %v1544
        %v1637 = vpack.c.b16 %v1549, %v1545
        %v1638 = vpack.c.b16 %v1550, %v1546
        %v1639 = vpack.c.b16 %v1555, %v1551
        %v1640 = vpack.c.b16 %v1556, %v1552
        %v1641 = vpack.c.b16 %v1557, %v1553
        %v1642 = vpack.c.b16 %v1558, %v1554
        %v1643 = vpack.c.b16 %v1563, %v1559
        %v1644 = vpack.c.b16 %v1564, %v1560
        %v1645 = vpack.c.b16 %v1565, %v1561
        %v1646 = vpack.c.b16 %v1566, %v1562
        %v1647 = vpack.c.b16 %v1571, %v1567
        %v1648 = vpack.c.b16 %v1572, %v1568
        %v1649 = vpack.c.b16 %v1573, %v1569
        %v1650 = vpack.c.b16 %v1574, %v1570
        %v1651 = vpack.c.b16 %v1579, %v1575
        %v1652 = vpack.c.b16 %v1580, %v1576
        %v1653 = vpack.c.b16 %v1581, %v1577
        %v1654 = vpack.c.b16 %v1582, %v1578
        %v1655 = vpack.c.b16 %v1587, %v1583
        %v1656 = vpack.c.b16 %v1588, %v1584
        %v1657 = vpack.c.b16 %v1589, %v1585
        %v1658 = vpack.c.b16 %v1590, %v1586
        %v1659 = vpack.c.b16 %v1595, %v1591
        %v1660 = vpack.c.b16 %v1596, %v1592
        %v1661 = vpack.c.b16 %v1597, %v1593
        %v1662 = vpack.c.b16 %v1598, %v1594
        %v1728 = vlaneseq
        %v1729 = vshrl.u32 %v1728, 7
        %v1730 = vsub.s32 0, %v1729
        %v1731 = vrot.slane %v1406, %v1730
        %v1732 = vlaneseq
        %v1733 = vshrl.u32 %v1732, 7
        %v1734 = vsub.s32 1, %v1733
        %v1735 = vrot.slane %v1406, %v1734
        %v1736 = vlaneseq
        %v1737 = vshrl.u32 %v1736, 7
        %v1738 = vsub.s32 2, %v1737
        %v1739 = vrot.slane %v1406, %v1738
        %v1740 = vlaneseq
        %v1741 = vshrl.u32 %v1740, 7
        %v1742 = vsub.s32 3, %v1741
        %v1743 = vrot.slane %v1406, %v1742
        %1748 = vmatprep.subr.bf16.mxu0 %v1600
        %1749 = vmatpush1.bf16.msra.mxu0 %v1599
        %1750 = vmatprep.subr.bf16.mxu0 %v1604
        %1751 = vmatpush1.bf16.msra.mxu0 %v1603
        %1752 = vmatprep.subr.bf16.mxu0 %v1608
        %1753 = vmatpush1.bf16.msra.mxu0 %v1607
        %1754 = vmatprep.subr.bf16.mxu0 %v1612
        %1755 = vmatpush1.bf16.msra.mxu0 %v1611
        %1756 = vmatprep.subr.bf16.mxu0 %v1616
        %1757 = vmatpush1.bf16.msra.mxu0 %v1615
        %1758 = vmatprep.subr.bf16.mxu0 %v1620
        %1759 = vmatpush1.bf16.msra.mxu0 %v1619
        %1760 = vmatprep.subr.bf16.mxu0 %v1624
        %1761 = vmatpush1.bf16.msra.mxu0 %v1623
        %1762 = vmatprep.subr.bf16.mxu0 %v1628
        %1763 = vmatpush1.bf16.msra.mxu0 %v1627
        %1764 = vmatprep.subr.bf16.mxu0 %v1632
        %1765 = vmatpush1.bf16.msra.mxu0 %v1631
        %1766 = vmatprep.subr.bf16.mxu0 %v1636
        %1767 = vmatpush1.bf16.msra.mxu0 %v1635
        %1768 = vmatprep.subr.bf16.mxu0 %v1640
        %1769 = vmatpush1.bf16.msra.mxu0 %v1639
        %1770 = vmatprep.subr.bf16.mxu0 %v1644
        %1771 = vmatpush1.bf16.msra.mxu0 %v1643
        %1772 = vmatprep.subr.bf16.mxu0 %v1648
        %1773 = vmatpush1.bf16.msra.mxu0 %v1647
        %1774 = vmatprep.subr.bf16.mxu0 %v1652
        %1775 = vmatpush1.bf16.msra.mxu0 %v1651
        %1776 = vmatprep.subr.bf16.mxu0 %v1656
        %1777 = vmatpush1.bf16.msra.mxu0 %v1655
        %1778 = vmatprep.subr.bf16.mxu0 %v1660
        %1779 = vmatpush1.bf16.msra.mxu0 %v1659
        %1780 = vmatprep.mubr.bf16.mxu0 %v1341
        %1781 = vmatmul.mubr.bf16.gmra.mrb[0].mxu0 %v1340
        %v1782 = vpop.f32.mrb[0].mxu0
        %v1783 = vadd.f32 %v1731, %v1782
        %v1784 = vpop.f32.mrb[0].mxu0
        %v1785 = vadd.f32 %v1735, %v1784
        %v1786 = vpop.f32.mrb[0].mxu0
        %v1787 = vpop.f32.mrb[0].mxu0
        %1788 = vdwg.mxu0
        %1789 = vmatprep.subr.bf16.mxu0 %v1602
        %1790 = vmatpush1.bf16.msra.mxu0 %v1601
        %1791 = vmatprep.subr.bf16.mxu0 %v1606
        %1792 = vmatpush1.bf16.msra.mxu0 %v1605
        %1793 = vmatprep.subr.bf16.mxu0 %v1610
        %1794 = vmatpush1.bf16.msra.mxu0 %v1609
        %1795 = vmatprep.subr.bf16.mxu0 %v1614
        %1796 = vmatpush1.bf16.msra.mxu0 %v1613
        %1797 = vmatprep.subr.bf16.mxu0 %v1618
        %1798 = vmatpush1.bf16.msra.mxu0 %v1617
        %1799 = vmatprep.subr.bf16.mxu0 %v1622
        %1800 = vmatpush1.bf16.msra.mxu0 %v1621
        %1801 = vmatprep.subr.bf16.mxu0 %v1626
        %1802 = vmatpush1.bf16.msra.mxu0 %v1625
        %1803 = vmatprep.subr.bf16.mxu0 %v1630
        %1804 = vmatpush1.bf16.msra.mxu0 %v1629
        %1805 = vmatprep.subr.bf16.mxu0 %v1634
        %1806 = vmatpush1.bf16.msra.mxu0 %v1633
        %1807 = vmatprep.subr.bf16.mxu0 %v1638
        %1808 = vmatpush1.bf16.msra.mxu0 %v1637
        %1809 = vmatprep.subr.bf16.mxu0 %v1642
        %1810 = vmatpush1.bf16.msra.mxu0 %v1641
        %1811 = vmatprep.subr.bf16.mxu0 %v1646
        %1812 = vmatpush1.bf16.msra.mxu0 %v1645
        %1813 = vmatprep.subr.bf16.mxu0 %v1650
        %1814 = vmatpush1.bf16.msra.mxu0 %v1649
        %1815 = vmatprep.subr.bf16.mxu0 %v1654
        %1816 = vmatpush1.bf16.msra.mxu0 %v1653
        %1817 = vmatprep.subr.bf16.mxu0 %v1658
        %1818 = vmatpush1.bf16.msra.mxu0 %v1657
        %1819 = vmatprep.subr.bf16.mxu0 %v1662
        %1820 = vmatpush1.bf16.msra.mxu0 %v1661
        %1821 = vmatprep.mubr.bf16.mxu0 %v1341
        %1822 = vmatmul.mubr.bf16.gmra.mrb[0].mxu0 %v1340
        %v1823 = vpop.f32.mrb[0].mxu0
        %v1824 = vadd.f32 %v1739, %v1823
        %v1825 = vpop.f32.mrb[0].mxu0
        %v1826 = vadd.f32 %v1743, %v1825
        %v1827 = vpop.f32.mrb[0].mxu0
        %v1828 = vpop.f32.mrb[0].mxu0
        %1829 = vdwg.mxu0
        %v1830 = vlaneseq
        %v1831 = vshrl.u32 %v1830, 7
        %v1832 = vsub.s32 0, %v1831
        %v1833 = vrot.slane %v1783, %v1832
        %v1834 = vlaneseq
        %v1835 = vshrl.u32 %v1834, 7
        %v1836 = vsub.s32 0, %v1835
        %v1837 = vrot.slane %v1785, %v1836
        %v1838 = vlaneseq
        %v1839 = vshrl.u32 %v1838, 7
        %v1840 = vsub.s32 0, %v1839
        %v1841 = vrot.slane %v1824, %v1840
        %v1842 = vlaneseq
        %v1843 = vshrl.u32 %v1842, 7
        %v1844 = vsub.s32 0, %v1843
        %v1845 = vrot.slane %v1826, %v1844
        %v1846 = vadd.f32 %v1229, %v1833
        %v1847 = vadd.f32 %v1231, %v1837
        %v1848 = vadd.f32 %v1302, %v1841
        %v1849 = vadd.f32 %v1304, %v1845
        %v1850 = vadd.f32 %v1233, %v1833
        %v1851 = vadd.f32 %v1235, %v1837
        %v1852 = vadd.f32 %v1306, %v1841
        %v1853 = vadd.f32 %v1308, %v1845
        %v1854 = vadd.f32 %v1239, %v1833
        %v1855 = vadd.f32 %v1241, %v1837
        %v1856 = vadd.f32 %v1312, %v1841
        %v1857 = vadd.f32 %v1314, %v1845
        %v1858 = vadd.f32 %v1243, %v1833
        %v1859 = vadd.f32 %v1245, %v1837
        %v1860 = vadd.f32 %v1316, %v1841
        %v1861 = vadd.f32 %v1318, %v1845
        %v1862 = vadd.f32 %v1249, %v1833
        %v1863 = vadd.f32 %v1251, %v1837
        %v1864 = vadd.f32 %v1322, %v1841
        %v1865 = vadd.f32 %v1324, %v1845
        %v1866 = vadd.f32 %v1253, %v1833
        %v1867 = vadd.f32 %v1255, %v1837
        %v1868 = vadd.f32 %v1326, %v1841
        %v1869 = vadd.f32 %v1328, %v1845
        %v1870 = vadd.f32 %v1259, %v1833
        %v1871 = vadd.f32 %v1261, %v1837
        %v1872 = vadd.f32 %v1332, %v1841
        %v1873 = vadd.f32 %v1334, %v1845
        %v1874 = vadd.f32 %v1263, %v1833
        %v1875 = vadd.f32 %v1265, %v1837
        %v1876 = vadd.f32 %v1336, %v1841
        %v1877 = vadd.f32 %v1338, %v1845
        %v1878 = vmax.f32 %v1846, 0.0
        %v1879 = vmax.f32 %v1847, 0.0
        %v1880 = vmax.f32 %v1848, 0.0
        %v1881 = vmax.f32 %v1849, 0.0
        %v1882 = vmax.f32 %v1850, 0.0
        %v1883 = vmax.f32 %v1851, 0.0
        %v1884 = vmax.f32 %v1852, 0.0
        %v1885 = vmax.f32 %v1853, 0.0
        %v1886 = vmax.f32 %v1854, 0.0
        %v1887 = vmax.f32 %v1855, 0.0
        %v1888 = vmax.f32 %v1856, 0.0
        %v1889 = vmax.f32 %v1857, 0.0
        %v1890 = vmax.f32 %v1858, 0.0
        %v1891 = vmax.f32 %v1859, 0.0
        %v1892 = vmax.f32 %v1860, 0.0
        %v1893 = vmax.f32 %v1861, 0.0
        %v1894 = vmax.f32 %v1862, 0.0
        %v1895 = vmax.f32 %v1863, 0.0
        %v1896 = vmax.f32 %v1864, 0.0
        %v1897 = vmax.f32 %v1865, 0.0
        %v1898 = vmax.f32 %v1866, 0.0
        %v1899 = vmax.f32 %v1867, 0.0
        %v1900 = vmax.f32 %v1868, 0.0
        %v1901 = vmax.f32 %v1869, 0.0
        %v1902 = vmax.f32 %v1870, 0.0
        %v1903 = vmax.f32 %v1871, 0.0
        %v1904 = vmax.f32 %v1872, 0.0
        %v1905 = vmax.f32 %v1873, 0.0
        %v1906 = vmax.f32 %v1874, 0.0
        %v1907 = vmax.f32 %v1875, 0.0
        %v1908 = vmax.f32 %v1876, 0.0
        %v1909 = vmax.f32 %v1877, 0.0
        %v1910 = vpack.c.bf16 %v1882, %v1878
        %v1911 = vpack.c.bf16 %v1883, %v1879
        %v1912 = vpack.c.bf16 %v1884, %v1880
        %v1913 = vpack.c.bf16 %v1885, %v1881
        %v1914 = vpack.c.bf16 %v1890, %v1886
        %v1915 = vpack.c.bf16 %v1891, %v1887
        %v1916 = vpack.c.bf16 %v1892, %v1888
        %v1917 = vpack.c.bf16 %v1893, %v1889
        %v1918 = vpack.c.bf16 %v1898, %v1894
        %v1919 = vpack.c.bf16 %v1899, %v1895
        %v1920 = vpack.c.bf16 %v1900, %v1896
        %v1921 = vpack.c.bf16 %v1901, %v1897
        %v1922 = vpack.c.bf16 %v1906, %v1902
        %v1923 = vpack.c.bf16 %v1907, %v1903
        %v1924 = vpack.c.bf16 %v1908, %v1904
        %v1925 = vpack.c.bf16 %v1909, %v1905
        %v1926 = vld [vmem:[#allocation7] sm:$0xff]
        %v1927 = vld [vmem:[#allocation7 + $0x20] sm:$0xff]
        %v1928 = vld [vmem:[#allocation7 + $0x40] sm:$0xff]
        %v1929 = vld [vmem:[#allocation7 + $0x60] sm:$0xff]
        %v1930 = vld [vmem:[#allocation7 + $0x80] sm:$0xff]
        %v1931 = vld [vmem:[#allocation7 + $0xa0] sm:$0xff]
        %v1932 = vld [vmem:[#allocation7 + $0xc0] sm:$0xff]
        %v1933 = vld [vmem:[#allocation7 + $0xe0] sm:$0xff]
        %v1934 = vld [vmem:[#allocation7 + $0x100] sm:$0xff]
        %v1935 = vld [vmem:[#allocation7 + $0x120] sm:$0xff]
        %v1936 = vld [vmem:[#allocation7 + $0x140] sm:$0xff]
        %v1937 = vld [vmem:[#allocation7 + $0x160] sm:$0xff]
        %v1938 = vld [vmem:[#allocation7 + $0x180] sm:$0xff]
        %v1939 = vld [vmem:[#allocation7 + $0x1a0] sm:$0xff]
        %v1940 = vld [vmem:[#allocation7 + $0x1c0] sm:$0xff]
        %v1941 = vld [vmem:[#allocation7 + $0x1e0] sm:$0xff]
        %v1942 = vld [vmem:[#allocation7 + $0x200] sm:$0xff]
        %v1943 = vld [vmem:[#allocation7 + $0x220] sm:$0xff]
        %v1944 = vld [vmem:[#allocation7 + $0x240] sm:$0xff]
        %v1945 = vld [vmem:[#allocation7 + $0x260] sm:$0xff]
        %v1946 = vld [vmem:[#allocation7 + $0x280] sm:$0xff]
        %v1947 = vld [vmem:[#allocation7 + $0x2a0] sm:$0xff]
        %v1948 = vld [vmem:[#allocation7 + $0x2c0] sm:$0xff]
        %v1949 = vld [vmem:[#allocation7 + $0x2e0] sm:$0xff]
        %v1950 = vld [vmem:[#allocation7 + $0x300] sm:$0xff]
        %v1951 = vld [vmem:[#allocation7 + $0x320] sm:$0xff]
        %v1952 = vld [vmem:[#allocation7 + $0x340] sm:$0xff]
        %v1953 = vld [vmem:[#allocation7 + $0x360] sm:$0xff]
        %v1954 = vld [vmem:[#allocation7 + $0x380] sm:$0xff]
        %v1955 = vld [vmem:[#allocation7 + $0x3a0] sm:$0xff]
        %v1956 = vld [vmem:[#allocation7 + $0x3c0] sm:$0xff]
        %v1957 = vld [vmem:[#allocation7 + $0x3e0] sm:$0xff]
        %v1958 = vld [vmem:[#allocation7 + $0x400] sm:$0xff]
        %v1959 = vld [vmem:[#allocation7 + $0x420] sm:$0xff]
        %v1960 = vld [vmem:[#allocation7 + $0x440] sm:$0xff]
        %v1961 = vld [vmem:[#allocation7 + $0x460] sm:$0xff]
        %v1962 = vld [vmem:[#allocation7 + $0x480] sm:$0xff]
        %v1963 = vld [vmem:[#allocation7 + $0x4a0] sm:$0xff]
        %v1964 = vld [vmem:[#allocation7 + $0x4c0] sm:$0xff]
        %v1965 = vld [vmem:[#allocation7 + $0x4e0] sm:$0xff]
        %v1966 = vld [vmem:[#allocation7 + $0x500] sm:$0xff]
        %v1967 = vld [vmem:[#allocation7 + $0x520] sm:$0xff]
        %v1968 = vld [vmem:[#allocation7 + $0x540] sm:$0xff]
        %v1969 = vld [vmem:[#allocation7 + $0x560] sm:$0xff]
        %v1970 = vld [vmem:[#allocation7 + $0x580] sm:$0xff]
        %v1971 = vld [vmem:[#allocation7 + $0x5a0] sm:$0xff]
        %v1972 = vld [vmem:[#allocation7 + $0x5c0] sm:$0xff]
        %v1973 = vld [vmem:[#allocation7 + $0x5e0] sm:$0xff]
        %v1974 = vld [vmem:[#allocation7 + $0x600] sm:$0xff]
        %v1975 = vld [vmem:[#allocation7 + $0x620] sm:$0xff]
        %v1976 = vld [vmem:[#allocation7 + $0x640] sm:$0xff]
        %v1977 = vld [vmem:[#allocation7 + $0x660] sm:$0xff]
        %v1978 = vld [vmem:[#allocation7 + $0x680] sm:$0xff]
        %v1979 = vld [vmem:[#allocation7 + $0x6a0] sm:$0xff]
        %v1980 = vld [vmem:[#allocation7 + $0x6c0] sm:$0xff]
        %v1981 = vld [vmem:[#allocation7 + $0x6e0] sm:$0xff]
        %v1982 = vld [vmem:[#allocation7 + $0x700] sm:$0xff]
        %v1983 = vld [vmem:[#allocation7 + $0x720] sm:$0xff]
        %v1984 = vld [vmem:[#allocation7 + $0x740] sm:$0xff]
        %v1985 = vld [vmem:[#allocation7 + $0x760] sm:$0xff]
        %v1986 = vld [vmem:[#allocation7 + $0x780] sm:$0xff]
        %v1987 = vld [vmem:[#allocation7 + $0x7a0] sm:$0xff]
        %v1988 = vld [vmem:[#allocation7 + $0x7c0] sm:$0xff]
        %v1989 = vld [vmem:[#allocation7 + $0x7e0] sm:$0xff]
        %v1990 = vld [vmem:[%s9] sm:$0x3]
        %v1992 = vlaneseq
        %v1993 = vshrl.u32 %v1992, 7
        %v1994 = vsub.s32 0, %v1993
        %v1995 = vrot.slane %v1990, %v1994
        %v1996 = vlaneseq
        %v1997 = vshrl.u32 %v1996, 7
        %v1998 = vsub.s32 1, %v1997
        %v1999 = vrot.slane %v1990, %v1998
        %v2066 = vunpack.c.l.b16 %v1926
        %v2067 = vunpack.c.h.b16 %v1926
        %v2068 = vunpack.c.l.b16 %v1927
        %v2069 = vunpack.c.h.b16 %v1927
        %v2070 = vunpack.c.l.b16 %v1928
        %v2071 = vunpack.c.h.b16 %v1928
        %v2072 = vunpack.c.l.b16 %v1929
        %v2073 = vunpack.c.h.b16 %v1929
        %v2074 = vunpack.c.l.b16 %v1930
        %v2075 = vunpack.c.h.b16 %v1930
        %v2076 = vunpack.c.l.b16 %v1931
        %v2077 = vunpack.c.h.b16 %v1931
        %v2078 = vunpack.c.l.b16 %v1932
        %v2079 = vunpack.c.h.b16 %v1932
        %v2080 = vunpack.c.l.b16 %v1933
        %v2081 = vunpack.c.h.b16 %v1933
        %v2082 = vunpack.c.l.b16 %v1934
        %v2083 = vunpack.c.h.b16 %v1934
        %v2084 = vunpack.c.l.b16 %v1935
        %v2085 = vunpack.c.h.b16 %v1935
        %v2086 = vunpack.c.l.b16 %v1936
        %v2087 = vunpack.c.h.b16 %v1936
        %v2088 = vunpack.c.l.b16 %v1937
        %v2089 = vunpack.c.h.b16 %v1937
        %v2090 = vunpack.c.l.b16 %v1938
        %v2091 = vunpack.c.h.b16 %v1938
        %v2092 = vunpack.c.l.b16 %v1939
        %v2093 = vunpack.c.h.b16 %v1939
        %v2094 = vunpack.c.l.b16 %v1940
        %v2095 = vunpack.c.h.b16 %v1940
        %v2096 = vunpack.c.l.b16 %v1941
        %v2097 = vunpack.c.h.b16 %v1941
        %v2098 = vunpack.c.l.b16 %v1942
        %v2099 = vunpack.c.h.b16 %v1942
        %v2100 = vunpack.c.l.b16 %v1943
        %v2101 = vunpack.c.h.b16 %v1943
        %v2102 = vunpack.c.l.b16 %v1944
        %v2103 = vunpack.c.h.b16 %v1944
        %v2104 = vunpack.c.l.b16 %v1945
        %v2105 = vunpack.c.h.b16 %v1945
        %v2106 = vunpack.c.l.b16 %v1946
        %v2107 = vunpack.c.h.b16 %v1946
        %v2108 = vunpack.c.l.b16 %v1947
        %v2109 = vunpack.c.h.b16 %v1947
        %v2110 = vunpack.c.l.b16 %v1948
        %v2111 = vunpack.c.h.b16 %v1948
        %v2112 = vunpack.c.l.b16 %v1949
        %v2113 = vunpack.c.h.b16 %v1949
        %v2114 = vunpack.c.l.b16 %v1950
        %v2115 = vunpack.c.h.b16 %v1950
        %v2116 = vunpack.c.l.b16 %v1951
        %v2117 = vunpack.c.h.b16 %v1951
        %v2118 = vunpack.c.l.b16 %v1952
        %v2119 = vunpack.c.h.b16 %v1952
        %v2120 = vunpack.c.l.b16 %v1953
        %v2121 = vunpack.c.h.b16 %v1953
        %v2122 = vunpack.c.l.b16 %v1954
        %v2123 = vunpack.c.h.b16 %v1954
        %v2124 = vunpack.c.l.b16 %v1955
        %v2125 = vunpack.c.h.b16 %v1955
        %v2126 = vunpack.c.l.b16 %v1956
        %v2127 = vunpack.c.h.b16 %v1956
        %v2128 = vunpack.c.l.b16 %v1957
        %v2129 = vunpack.c.h.b16 %v1957
        %v2130 = vunpack.c.l.b16 %v1958
        %v2131 = vunpack.c.h.b16 %v1958
        %v2132 = vunpack.c.l.b16 %v1959
        %v2133 = vunpack.c.h.b16 %v1959
        %v2134 = vunpack.c.l.b16 %v1960
        %v2135 = vunpack.c.h.b16 %v1960
        %v2136 = vunpack.c.l.b16 %v1961
        %v2137 = vunpack.c.h.b16 %v1961
        %v2138 = vunpack.c.l.b16 %v1962
        %v2139 = vunpack.c.h.b16 %v1962
        %v2140 = vunpack.c.l.b16 %v1963
        %v2141 = vunpack.c.h.b16 %v1963
        %v2142 = vunpack.c.l.b16 %v1964
        %v2143 = vunpack.c.h.b16 %v1964
        %v2144 = vunpack.c.l.b16 %v1965
        %v2145 = vunpack.c.h.b16 %v1965
        %v2146 = vunpack.c.l.b16 %v1966
        %v2147 = vunpack.c.h.b16 %v1966
        %v2148 = vunpack.c.l.b16 %v1967
        %v2149 = vunpack.c.h.b16 %v1967
        %v2150 = vunpack.c.l.b16 %v1968
        %v2151 = vunpack.c.h.b16 %v1968
        %v2152 = vunpack.c.l.b16 %v1969
        %v2153 = vunpack.c.h.b16 %v1969
        %v2154 = vunpack.c.l.b16 %v1970
        %v2155 = vunpack.c.h.b16 %v1970
        %v2156 = vunpack.c.l.b16 %v1971
        %v2157 = vunpack.c.h.b16 %v1971
        %v2158 = vunpack.c.l.b16 %v1972
        %v2159 = vunpack.c.h.b16 %v1972
        %v2160 = vunpack.c.l.b16 %v1973
        %v2161 = vunpack.c.h.b16 %v1973
        %v2162 = vunpack.c.l.b16 %v1974
        %v2163 = vunpack.c.h.b16 %v1974
        %v2164 = vunpack.c.l.b16 %v1975
        %v2165 = vunpack.c.h.b16 %v1975
        %v2166 = vunpack.c.l.b16 %v1976
        %v2167 = vunpack.c.h.b16 %v1976
        %v2168 = vunpack.c.l.b16 %v1977
        %v2169 = vunpack.c.h.b16 %v1977
        %v2170 = vunpack.c.l.b16 %v1978
        %v2171 = vunpack.c.h.b16 %v1978
        %v2172 = vunpack.c.l.b16 %v1979
        %v2173 = vunpack.c.h.b16 %v1979
        %v2174 = vunpack.c.l.b16 %v1980
        %v2175 = vunpack.c.h.b16 %v1980
        %v2176 = vunpack.c.l.b16 %v1981
        %v2177 = vunpack.c.h.b16 %v1981
        %v2178 = vunpack.c.l.b16 %v1982
        %v2179 = vunpack.c.h.b16 %v1982
        %v2180 = vunpack.c.l.b16 %v1983
        %v2181 = vunpack.c.h.b16 %v1983
        %v2182 = vunpack.c.l.b16 %v1984
        %v2183 = vunpack.c.h.b16 %v1984
        %v2184 = vunpack.c.l.b16 %v1985
        %v2185 = vunpack.c.h.b16 %v1985
        %v2186 = vunpack.c.l.b16 %v1986
        %v2187 = vunpack.c.h.b16 %v1986
        %v2188 = vunpack.c.l.b16 %v1987
        %v2189 = vunpack.c.h.b16 %v1987
        %v2190 = vunpack.c.l.b16 %v1988
        %v2191 = vunpack.c.h.b16 %v1988
        %v2192 = vunpack.c.l.b16 %v1989
        %v2193 = vunpack.c.h.b16 %v1989
        %v2194 = vpack.c.b16 %v2068, %v2066
        %v2195 = vpack.c.b16 %v2069, %v2067
        %v2196 = vpack.c.b16 %v2072, %v2070
        %v2197 = vpack.c.b16 %v2073, %v2071
        %v2198 = vpack.c.b16 %v2076, %v2074
        %v2199 = vpack.c.b16 %v2077, %v2075
        %v2200 = vpack.c.b16 %v2080, %v2078
        %v2201 = vpack.c.b16 %v2081, %v2079
        %v2202 = vpack.c.b16 %v2084, %v2082
        %v2203 = vpack.c.b16 %v2085, %v2083
        %v2204 = vpack.c.b16 %v2088, %v2086
        %v2205 = vpack.c.b16 %v2089, %v2087
        %v2206 = vpack.c.b16 %v2092, %v2090
        %v2207 = vpack.c.b16 %v2093, %v2091
        %v2208 = vpack.c.b16 %v2096, %v2094
        %v2209 = vpack.c.b16 %v2097, %v2095
        %v2210 = vpack.c.b16 %v2100, %v2098
        %v2211 = vpack.c.b16 %v2101, %v2099
        %v2212 = vpack.c.b16 %v2104, %v2102
        %v2213 = vpack.c.b16 %v2105, %v2103
        %v2214 = vpack.c.b16 %v2108, %v2106
        %v2215 = vpack.c.b16 %v2109, %v2107
        %v2216 = vpack.c.b16 %v2112, %v2110
        %v2217 = vpack.c.b16 %v2113, %v2111
        %v2218 = vpack.c.b16 %v2116, %v2114
        %v2219 = vpack.c.b16 %v2117, %v2115
        %v2220 = vpack.c.b16 %v2120, %v2118
        %v2221 = vpack.c.b16 %v2121, %v2119
        %v2222 = vpack.c.b16 %v2124, %v2122
        %v2223 = vpack.c.b16 %v2125, %v2123
        %v2224 = vpack.c.b16 %v2128, %v2126
        %v2225 = vpack.c.b16 %v2129, %v2127
        %v2226 = vpack.c.b16 %v2132, %v2130
        %v2227 = vpack.c.b16 %v2133, %v2131
        %v2228 = vpack.c.b16 %v2136, %v2134
        %v2229 = vpack.c.b16 %v2137, %v2135
        %v2230 = vpack.c.b16 %v2140, %v2138
        %v2231 = vpack.c.b16 %v2141, %v2139
        %v2232 = vpack.c.b16 %v2144, %v2142
        %v2233 = vpack.c.b16 %v2145, %v2143
        %v2234 = vpack.c.b16 %v2148, %v2146
        %v2235 = vpack.c.b16 %v2149, %v2147
        %v2236 = vpack.c.b16 %v2152, %v2150
        %v2237 = vpack.c.b16 %v2153, %v2151
        %v2238 = vpack.c.b16 %v2156, %v2154
        %v2239 = vpack.c.b16 %v2157, %v2155
        %v2240 = vpack.c.b16 %v2160, %v2158
        %v2241 = vpack.c.b16 %v2161, %v2159
        %v2242 = vpack.c.b16 %v2164, %v2162
        %v2243 = vpack.c.b16 %v2165, %v2163
        %v2244 = vpack.c.b16 %v2168, %v2166
        %v2245 = vpack.c.b16 %v2169, %v2167
        %v2246 = vpack.c.b16 %v2172, %v2170
        %v2247 = vpack.c.b16 %v2173, %v2171
        %v2248 = vpack.c.b16 %v2176, %v2174
        %v2249 = vpack.c.b16 %v2177, %v2175
        %v2250 = vpack.c.b16 %v2180, %v2178
        %v2251 = vpack.c.b16 %v2181, %v2179
        %v2252 = vpack.c.b16 %v2184, %v2182
        %v2253 = vpack.c.b16 %v2185, %v2183
        %v2254 = vpack.c.b16 %v2188, %v2186
        %v2255 = vpack.c.b16 %v2189, %v2187
        %v2256 = vpack.c.b16 %v2192, %v2190
        %v2257 = vpack.c.b16 %v2193, %v2191
        %2322 = vmatprep.subr.bf16.mxu0 %v2195
        %2323 = vmatpush1.bf16.msra.mxu0 %v2194
        %2324 = vmatprep.subr.bf16.mxu0 %v2197
        %2325 = vmatpush1.bf16.msra.mxu0 %v2196
        %2326 = vmatprep.subr.bf16.mxu0 %v2199
        %2327 = vmatpush1.bf16.msra.mxu0 %v2198
        %2328 = vmatprep.subr.bf16.mxu0 %v2201
        %2329 = vmatpush1.bf16.msra.mxu0 %v2200
        %2330 = vmatprep.subr.bf16.mxu0 %v2203
        %2331 = vmatpush1.bf16.msra.mxu0 %v2202
        %2332 = vmatprep.subr.bf16.mxu0 %v2205
        %2333 = vmatpush1.bf16.msra.mxu0 %v2204
        %2334 = vmatprep.subr.bf16.mxu0 %v2207
        %2335 = vmatpush1.bf16.msra.mxu0 %v2206
        %2336 = vmatprep.subr.bf16.mxu0 %v2209
        %2337 = vmatpush1.bf16.msra.mxu0 %v2208
        %2338 = vmatprep.subr.bf16.mxu0 %v2211
        %2339 = vmatpush1.bf16.msra.mxu0 %v2210
        %2340 = vmatprep.subr.bf16.mxu0 %v2213
        %2341 = vmatpush1.bf16.msra.mxu0 %v2212
        %2342 = vmatprep.subr.bf16.mxu0 %v2215
        %2343 = vmatpush1.bf16.msra.mxu0 %v2214
        %2344 = vmatprep.subr.bf16.mxu0 %v2217
        %2345 = vmatpush1.bf16.msra.mxu0 %v2216
        %2346 = vmatprep.subr.bf16.mxu0 %v2219
        %2347 = vmatpush1.bf16.msra.mxu0 %v2218
        %2348 = vmatprep.subr.bf16.mxu0 %v2221
        %2349 = vmatpush1.bf16.msra.mxu0 %v2220
        %2350 = vmatprep.subr.bf16.mxu0 %v2223
        %2351 = vmatpush1.bf16.msra.mxu0 %v2222
        %2352 = vmatprep.subr.bf16.mxu0 %v2225
        %2353 = vmatpush1.bf16.msra.mxu0 %v2224
        %2354 = vmatprep.mubr.bf16.mxu0 %v1911
        %2355 = vmatmul.mubr.bf16.gmra.mrb[0].mxu0 %v1910
        %v2356 = vpop.f32.mrb[0].mxu0
        %v2357 = vadd.f32 %v1995, %v2356
        %v2358 = vpop.f32.mrb[0].mxu0
        %v2359 = vadd.f32 %v1999, %v2358
        %v2360 = vpop.f32.mrb[0].mxu0
        %v2361 = vadd.f32 %v1995, %v2360
        %v2362 = vpop.f32.mrb[0].mxu0
        %v2363 = vadd.f32 %v1999, %v2362
        %2364 = vmatprep.mubr.bf16.mxu0 %v1915
        %2365 = vmatmul.mubr.bf16.gmra.mrb[0].mxu0 %v1914
        %v2366 = vpop.f32.mrb[0].mxu0
        %v2367 = vadd.f32 %v1995, %v2366
        %v2368 = vpop.f32.mrb[0].mxu0
        %v2369 = vadd.f32 %v1999, %v2368
        %v2370 = vpop.f32.mrb[0].mxu0
        %v2371 = vadd.f32 %v1995, %v2370
        %v2372 = vpop.f32.mrb[0].mxu0
        %v2373 = vadd.f32 %v1999, %v2372
        %2374 = vmatprep.mubr.bf16.mxu0 %v1919
        %2375 = vmatmul.mubr.bf16.gmra.mrb[0].mxu0 %v1918
        %v2376 = vpop.f32.mrb[0].mxu0
        %v2377 = vadd.f32 %v1995, %v2376
        %v2378 = vpop.f32.mrb[0].mxu0
        %v2379 = vadd.f32 %v1999, %v2378
        %v2380 = vpop.f32.mrb[0].mxu0
        %v2381 = vadd.f32 %v1995, %v2380
        %v2382 = vpop.f32.mrb[0].mxu0
        %v2383 = vadd.f32 %v1999, %v2382
        %2384 = vmatprep.mubr.bf16.mxu0 %v1923
        %2385 = vmatmul.mubr.bf16.gmra.mrb[0].mxu0 %v1922
        %v2386 = vpop.f32.mrb[0].mxu0
        %v2387 = vadd.f32 %v1995, %v2386
        %v2388 = vpop.f32.mrb[0].mxu0
        %v2389 = vadd.f32 %v1999, %v2388
        %v2390 = vpop.f32.mrb[0].mxu0
        %v2391 = vadd.f32 %v1995, %v2390
        %v2392 = vpop.f32.mrb[0].mxu0
        %v2393 = vadd.f32 %v1999, %v2392
        %2394 = vdwg.mxu0
        %2395 = vmatprep.subr.bf16.mxu0 %v2227
        %2396 = vmatpush1.bf16.msra.mxu0 %v2226
        %2397 = vmatprep.subr.bf16.mxu0 %v2229
        %2398 = vmatpush1.bf16.msra.mxu0 %v2228
        %2399 = vmatprep.subr.bf16.mxu0 %v2231
        %2400 = vmatpush1.bf16.msra.mxu0 %v2230
        %2401 = vmatprep.subr.bf16.mxu0 %v2233
        %2402 = vmatpush1.bf16.msra.mxu0 %v2232
        %2403 = vmatprep.subr.bf16.mxu0 %v2235
        %2404 = vmatpush1.bf16.msra.mxu0 %v2234
        %2405 = vmatprep.subr.bf16.mxu0 %v2237
        %2406 = vmatpush1.bf16.msra.mxu0 %v2236
        %2407 = vmatprep.subr.bf16.mxu0 %v2239
        %2408 = vmatpush1.bf16.msra.mxu0 %v2238
        %2409 = vmatprep.subr.bf16.mxu0 %v2241
        %2410 = vmatpush1.bf16.msra.mxu0 %v2240
        %2411 = vmatprep.subr.bf16.mxu0 %v2243
        %2412 = vmatpush1.bf16.msra.mxu0 %v2242
        %2413 = vmatprep.subr.bf16.mxu0 %v2245
        %2414 = vmatpush1.bf16.msra.mxu0 %v2244
        %2415 = vmatprep.subr.bf16.mxu0 %v2247
        %2416 = vmatpush1.bf16.msra.mxu0 %v2246
        %2417 = vmatprep.subr.bf16.mxu0 %v2249
        %2418 = vmatpush1.bf16.msra.mxu0 %v2248
        %2419 = vmatprep.subr.bf16.mxu0 %v2251
        %2420 = vmatpush1.bf16.msra.mxu0 %v2250
        %2421 = vmatprep.subr.bf16.mxu0 %v2253
        %2422 = vmatpush1.bf16.msra.mxu0 %v2252
        %2423 = vmatprep.subr.bf16.mxu0 %v2255
        %2424 = vmatpush1.bf16.msra.mxu0 %v2254
        %2425 = vmatprep.subr.bf16.mxu0 %v2257
        %2426 = vmatpush1.bf16.msra.mxu0 %v2256
        %2427 = vmatprep.mubr.bf16.mxu0 %v1913
        %2428 = vmatmul.mubr.bf16.gmra.mrb[0].mxu0 %v1912
        %v2429 = vpop.f32.mrb[0].mxu0
        %v2430 = vadd.f32 %v2357, %v2429
        %v2431 = vpop.f32.mrb[0].mxu0
        %v2432 = vadd.f32 %v2359, %v2431
        %v2433 = vpop.f32.mrb[0].mxu0
        %v2434 = vadd.f32 %v2361, %v2433
        %v2435 = vpop.f32.mrb[0].mxu0
        %v2436 = vadd.f32 %v2363, %v2435
        %2437 = vmatprep.mubr.bf16.mxu0 %v1917
        %2438 = vmatmul.mubr.bf16.gmra.mrb[0].mxu0 %v1916
        %v2439 = vpop.f32.mrb[0].mxu0
        %v2440 = vadd.f32 %v2367, %v2439
        %v2441 = vpop.f32.mrb[0].mxu0
        %v2442 = vadd.f32 %v2369, %v2441
        %v2443 = vpop.f32.mrb[0].mxu0
        %v2444 = vadd.f32 %v2371, %v2443
        %v2445 = vpop.f32.mrb[0].mxu0
        %v2446 = vadd.f32 %v2373, %v2445
        %2447 = vmatprep.mubr.bf16.mxu0 %v1921
        %2448 = vmatmul.mubr.bf16.gmra.mrb[0].mxu0 %v1920
        %v2449 = vpop.f32.mrb[0].mxu0
        %v2450 = vadd.f32 %v2377, %v2449
        %v2451 = vpop.f32.mrb[0].mxu0
        %v2452 = vadd.f32 %v2379, %v2451
        %v2453 = vpop.f32.mrb[0].mxu0
        %v2454 = vadd.f32 %v2381, %v2453
        %v2455 = vpop.f32.mrb[0].mxu0
        %v2456 = vadd.f32 %v2383, %v2455
        %2457 = vmatprep.mubr.bf16.mxu0 %v1925
        %2458 = vmatmul.mubr.bf16.gmra.mrb[0].mxu0 %v1924
        %v2459 = vpop.f32.mrb[0].mxu0
        %v2460 = vadd.f32 %v2387, %v2459
        %v2461 = vpop.f32.mrb[0].mxu0
        %v2462 = vadd.f32 %v2389, %v2461
        %v2463 = vpop.f32.mrb[0].mxu0
        %v2464 = vadd.f32 %v2391, %v2463
        %v2465 = vpop.f32.mrb[0].mxu0
        %v2466 = vadd.f32 %v2393, %v2465
        %2467 = vdwg.mxu0
        %v2468 = vmax.f32 %v2430, %v2440
        %v2469 = vmax.f32 %v2434, %v2444
        %v2470 = vmax.f32 %v2468, %v2450
        %v2471 = vmax.f32 %v2469, %v2454
        %v2472 = vmax.f32 %v2470, %v2460
        %v2473 = vmax.f32 %v2471, %v2464
        %v2474 = vmax.f32 %v2472, %v2473
        %v2475 = vrot.slane %v2474, 4
        %v2476 = vmax.f32 %v2474, %v2475
        %v2477 = vrot.slane %v2476, 2
        %v2478 = vmax.f32 %v2476, %v2477
        %v2479 = vrot.slane %v2478, 1
        %v2480 = vmax.f32 %v2478, %v2479
        %v2481 = vmax.f32 %v2432, %v2442
        %v2482 = vmax.f32 %v2436, %v2446
        %v2483 = vmax.f32 %v2481, %v2452
        %v2484 = vmax.f32 %v2482, %v2456
        %v2485 = vmax.f32 %v2483, %v2462
        %v2486 = vmax.f32 %v2484, %v2466
        %v2487 = vmax.f32 %v2485, %v2486
        %v2488 = vrot.slane %v2487, 4
        %v2489 = vmax.f32 %v2487, %v2488
        %v2490 = vrot.slane %v2489, 2
        %v2491 = vmax.f32 %v2489, %v2490
        %v2492 = vrot.slane %v2491, 1
        %v2493 = vmax.f32 %v2491, %v2492
        %v2496 = vcombine.low %v2480, %v2493
        %v2498 = vunpack.c.l.s4 1966171168
        %v2499 = vunpack.c.0.s8 %v2498
        %v2500 = vlaneseq
        %v2501 = vshrl.u32 %v2500, 7
        %v2502 = vsub.s32 %v2499, %v2501
        %v2503 = vrot.slane %v2496, %v2502
        %v2505 = vunpack.c.l.s4 1966171168
        %v2506 = vunpack.c.0.s8 %v2505
        %v2507 = vlaneseq
        %v2508 = vshrl.u32 %v2507, 7
        %v2509 = vsub.s32 %v2506, %v2508
        %v2510 = vrot.slane %v2503, %v2509
        %v2512 = vlaneseq
        %vm2513 = vcmp.ge.s32.totalorder %v2512, 0
        %vm2514 = vcmp.lt.s32.totalorder %v2512, 256
        %vm2515 = vmand %vm2513, %vm2514
        %2516 = vst.msk [vmem:[%s396] sm:$0x3] %vm2515, %v2510
        %v2517 = vld [vmem:[#allocation7 + $0x8] sm:$0xff]
        %v2518 = vld [vmem:[#allocation7 + $0x28] sm:$0xff]
        %v2519 = vld [vmem:[#allocation7 + $0x48] sm:$0xff]
        %v2520 = vld [vmem:[#allocation7 + $0x68] sm:$0xff]
        %v2521 = vld [vmem:[#allocation7 + $0x88] sm:$0xff]
        %v2522 = vld [vmem:[#allocation7 + $0xa8] sm:$0xff]
        %v2523 = vld [vmem:[#allocation7 + $0xc8] sm:$0xff]
        %v2524 = vld [vmem:[#allocation7 + $0xe8] sm:$0xff]
        %v2525 = vld [vmem:[#allocation7 + $0x108] sm:$0xff]
        %v2526 = vld [vmem:[#allocation7 + $0x128] sm:$0xff]
        %v2527 = vld [vmem:[#allocation7 + $0x148] sm:$0xff]
        %v2528 = vld [vmem:[#allocation7 + $0x168] sm:$0xff]
        %v2529 = vld [vmem:[#allocation7 + $0x188] sm:$0xff]
        %v2530 = vld [vmem:[#allocation7 + $0x1a8] sm:$0xff]
        %v2531 = vld [vmem:[#allocation7 + $0x1c8] sm:$0xff]
        %v2532 = vld [vmem:[#allocation7 + $0x1e8] sm:$0xff]
        %v2533 = vld [vmem:[#allocation7 + $0x208] sm:$0xff]
        %v2534 = vld [vmem:[#allocation7 + $0x228] sm:$0xff]
        %v2535 = vld [vmem:[#allocation7 + $0x248] sm:$0xff]
        %v2536 = vld [vmem:[#allocation7 + $0x268] sm:$0xff]
        %v2537 = vld [vmem:[#allocation7 + $0x288] sm:$0xff]
        %v2538 = vld [vmem:[#allocation7 + $0x2a8] sm:$0xff]
        %v2539 = vld [vmem:[#allocation7 + $0x2c8] sm:$0xff]
        %v2540 = vld [vmem:[#allocation7 + $0x2e8] sm:$0xff]
        %v2541 = vld [vmem:[#allocation7 + $0x308] sm:$0xff]
        %v2542 = vld [vmem:[#allocation7 + $0x328] sm:$0xff]
        %v2543 = vld [vmem:[#allocation7 + $0x348] sm:$0xff]
        %v2544 = vld [vmem:[#allocation7 + $0x368] sm:$0xff]
        %v2545 = vld [vmem:[#allocation7 + $0x388] sm:$0xff]
        %v2546 = vld [vmem:[#allocation7 + $0x3a8] sm:$0xff]
        %v2547 = vld [vmem:[#allocation7 + $0x3c8] sm:$0xff]
        %v2548 = vld [vmem:[#allocation7 + $0x3e8] sm:$0xff]
        %v2549 = vld [vmem:[#allocation7 + $0x408] sm:$0xff]
        %v2550 = vld [vmem:[#allocation7 + $0x428] sm:$0xff]
        %v2551 = vld [vmem:[#allocation7 + $0x448] sm:$0xff]
        %v2552 = vld [vmem:[#allocation7 + $0x468] sm:$0xff]
        %v2553 = vld [vmem:[#allocation7 + $0x488] sm:$0xff]
        %v2554 = vld [vmem:[#allocation7 + $0x4a8] sm:$0xff]
        %v2555 = vld [vmem:[#allocation7 + $0x4c8] sm:$0xff]
        %v2556 = vld [vmem:[#allocation7 + $0x4e8] sm:$0xff]
        %v2557 = vld [vmem:[#allocation7 + $0x508] sm:$0xff]
        %v2558 = vld [vmem:[#allocation7 + $0x528] sm:$0xff]
        %v2559 = vld [vmem:[#allocation7 + $0x548] sm:$0xff]
        %v2560 = vld [vmem:[#allocation7 + $0x568] sm:$0xff]
        %v2561 = vld [vmem:[#allocation7 + $0x588] sm:$0xff]
        %v2562 = vld [vmem:[#allocation7 + $0x5a8] sm:$0xff]
        %v2563 = vld [vmem:[#allocation7 + $0x5c8] sm:$0xff]
        %v2564 = vld [vmem:[#allocation7 + $0x5e8] sm:$0xff]
        %v2565 = vld [vmem:[#allocation7 + $0x608] sm:$0xff]
        %v2566 = vld [vmem:[#allocation7 + $0x628] sm:$0xff]
        %v2567 = vld [vmem:[#allocation7 + $0x648] sm:$0xff]
        %v2568 = vld [vmem:[#allocation7 + $0x668] sm:$0xff]
        %v2569 = vld [vmem:[#allocation7 + $0x688] sm:$0xff]
        %v2570 = vld [vmem:[#allocation7 + $0x6a8] sm:$0xff]
        %v2571 = vld [vmem:[#allocation7 + $0x6c8] sm:$0xff]
        %v2572 = vld [vmem:[#allocation7 + $0x6e8] sm:$0xff]
        %v2573 = vld [vmem:[#allocation7 + $0x708] sm:$0xff]
        %v2574 = vld [vmem:[#allocation7 + $0x728] sm:$0xff]
        %v2575 = vld [vmem:[#allocation7 + $0x748] sm:$0xff]
        %v2576 = vld [vmem:[#allocation7 + $0x768] sm:$0xff]
        %v2577 = vld [vmem:[#allocation7 + $0x788] sm:$0xff]
        %v2578 = vld [vmem:[#allocation7 + $0x7a8] sm:$0xff]
        %v2579 = vld [vmem:[#allocation7 + $0x7c8] sm:$0xff]
        %v2580 = vld [vmem:[#allocation7 + $0x7e8] sm:$0xff]
        %v2581 = vld [vmem:[%s9 + $0x2] sm:$0x3]
        %v2583 = vlaneseq
        %v2584 = vshrl.u32 %v2583, 7
        %v2585 = vsub.s32 0, %v2584
        %v2586 = vrot.slane %v2581, %v2585
        %v2587 = vlaneseq
        %v2588 = vshrl.u32 %v2587, 7
        %v2589 = vsub.s32 1, %v2588
        %v2590 = vrot.slane %v2581, %v2589
        %v2657 = vunpack.c.l.b16 %v2517
        %v2658 = vunpack.c.h.b16 %v2517
        %v2659 = vunpack.c.l.b16 %v2518
        %v2660 = vunpack.c.h.b16 %v2518
        %v2661 = vunpack.c.l.b16 %v2519
        %v2662 = vunpack.c.h.b16 %v2519
        %v2663 = vunpack.c.l.b16 %v2520
        %v2664 = vunpack.c.h.b16 %v2520
        %v2665 = vunpack.c.l.b16 %v2521
        %v2666 = vunpack.c.h.b16 %v2521
        %v2667 = vunpack.c.l.b16 %v2522
        %v2668 = vunpack.c.h.b16 %v2522
        %v2669 = vunpack.c.l.b16 %v2523
        %v2670 = vunpack.c.h.b16 %v2523
        %v2671 = vunpack.c.l.b16 %v2524
        %v2672 = vunpack.c.h.b16 %v2524
        %v2673 = vunpack.c.l.b16 %v2525
        %v2674 = vunpack.c.h.b16 %v2525
        %v2675 = vunpack.c.l.b16 %v2526
        %v2676 = vunpack.c.h.b16 %v2526
        %v2677 = vunpack.c.l.b16 %v2527
        %v2678 = vunpack.c.h.b16 %v2527
        %v2679 = vunpack.c.l.b16 %v2528
        %v2680 = vunpack.c.h.b16 %v2528
        %v2681 = vunpack.c.l.b16 %v2529
        %v2682 = vunpack.c.h.b16 %v2529
        %v2683 = vunpack.c.l.b16 %v2530
        %v2684 = vunpack.c.h.b16 %v2530
        %v2685 = vunpack.c.l.b16 %v2531
        %v2686 = vunpack.c.h.b16 %v2531
        %v2687 = vunpack.c.l.b16 %v2532
        %v2688 = vunpack.c.h.b16 %v2532
        %v2689 = vunpack.c.l.b16 %v2533
        %v2690 = vunpack.c.h.b16 %v2533
        %v2691 = vunpack.c.l.b16 %v2534
        %v2692 = vunpack.c.h.b16 %v2534
        %v2693 = vunpack.c.l.b16 %v2535
        %v2694 = vunpack.c.h.b16 %v2535
        %v2695 = vunpack.c.l.b16 %v2536
        %v2696 = vunpack.c.h.b16 %v2536
        %v2697 = vunpack.c.l.b16 %v2537
        %v2698 = vunpack.c.h.b16 %v2537
        %v2699 = vunpack.c.l.b16 %v2538
        %v2700 = vunpack.c.h.b16 %v2538
        %v2701 = vunpack.c.l.b16 %v2539
        %v2702 = vunpack.c.h.b16 %v2539
        %v2703 = vunpack.c.l.b16 %v2540
        %v2704 = vunpack.c.h.b16 %v2540
        %v2705 = vunpack.c.l.b16 %v2541
        %v2706 = vunpack.c.h.b16 %v2541
        %v2707 = vunpack.c.l.b16 %v2542
        %v2708 = vunpack.c.h.b16 %v2542
        %v2709 = vunpack.c.l.b16 %v2543
        %v2710 = vunpack.c.h.b16 %v2543
        %v2711 = vunpack.c.l.b16 %v2544
        %v2712 = vunpack.c.h.b16 %v2544
        %v2713 = vunpack.c.l.b16 %v2545
        %v2714 = vunpack.c.h.b16 %v2545
        %v2715 = vunpack.c.l.b16 %v2546
        %v2716 = vunpack.c.h.b16 %v2546
        %v2717 = vunpack.c.l.b16 %v2547
        %v2718 = vunpack.c.h.b16 %v2547
        %v2719 = vunpack.c.l.b16 %v2548
        %v2720 = vunpack.c.h.b16 %v2548
        %v2721 = vunpack.c.l.b16 %v2549
        %v2722 = vunpack.c.h.b16 %v2549
        %v2723 = vunpack.c.l.b16 %v2550
        %v2724 = vunpack.c.h.b16 %v2550
        %v2725 = vunpack.c.l.b16 %v2551
        %v2726 = vunpack.c.h.b16 %v2551
        %v2727 = vunpack.c.l.b16 %v2552
        %v2728 = vunpack.c.h.b16 %v2552
        %v2729 = vunpack.c.l.b16 %v2553
        %v2730 = vunpack.c.h.b16 %v2553
        %v2731 = vunpack.c.l.b16 %v2554
        %v2732 = vunpack.c.h.b16 %v2554
        %v2733 = vunpack.c.l.b16 %v2555
        %v2734 = vunpack.c.h.b16 %v2555
        %v2735 = vunpack.c.l.b16 %v2556
        %v2736 = vunpack.c.h.b16 %v2556
        %v2737 = vunpack.c.l.b16 %v2557
        %v2738 = vunpack.c.h.b16 %v2557
        %v2739 = vunpack.c.l.b16 %v2558
        %v2740 = vunpack.c.h.b16 %v2558
        %v2741 = vunpack.c.l.b16 %v2559
        %v2742 = vunpack.c.h.b16 %v2559
        %v2743 = vunpack.c.l.b16 %v2560
        %v2744 = vunpack.c.h.b16 %v2560
        %v2745 = vunpack.c.l.b16 %v2561
        %v2746 = vunpack.c.h.b16 %v2561
        %v2747 = vunpack.c.l.b16 %v2562
        %v2748 = vunpack.c.h.b16 %v2562
        %v2749 = vunpack.c.l.b16 %v2563
        %v2750 = vunpack.c.h.b16 %v2563
        %v2751 = vunpack.c.l.b16 %v2564
        %v2752 = vunpack.c.h.b16 %v2564
        %v2753 = vunpack.c.l.b16 %v2565
        %v2754 = vunpack.c.h.b16 %v2565
        %v2755 = vunpack.c.l.b16 %v2566
        %v2756 = vunpack.c.h.b16 %v2566
        %v2757 = vunpack.c.l.b16 %v2567
        %v2758 = vunpack.c.h.b16 %v2567
        %v2759 = vunpack.c.l.b16 %v2568
        %v2760 = vunpack.c.h.b16 %v2568
        %v2761 = vunpack.c.l.b16 %v2569
        %v2762 = vunpack.c.h.b16 %v2569
        %v2763 = vunpack.c.l.b16 %v2570
        %v2764 = vunpack.c.h.b16 %v2570
        %v2765 = vunpack.c.l.b16 %v2571
        %v2766 = vunpack.c.h.b16 %v2571
        %v2767 = vunpack.c.l.b16 %v2572
        %v2768 = vunpack.c.h.b16 %v2572
        %v2769 = vunpack.c.l.b16 %v2573
        %v2770 = vunpack.c.h.b16 %v2573
        %v2771 = vunpack.c.l.b16 %v2574
        %v2772 = vunpack.c.h.b16 %v2574
        %v2773 = vunpack.c.l.b16 %v2575
        %v2774 = vunpack.c.h.b16 %v2575
        %v2775 = vunpack.c.l.b16 %v2576
        %v2776 = vunpack.c.h.b16 %v2576
        %v2777 = vunpack.c.l.b16 %v2577
        %v2778 = vunpack.c.h.b16 %v2577
        %v2779 = vunpack.c.l.b16 %v2578
        %v2780 = vunpack.c.h.b16 %v2578
        %v2781 = vunpack.c.l.b16 %v2579
        %v2782 = vunpack.c.h.b16 %v2579
        %v2783 = vunpack.c.l.b16 %v2580
        %v2784 = vunpack.c.h.b16 %v2580
        %v2785 = vpack.c.b16 %v2659, %v2657
        %v2786 = vpack.c.b16 %v2660, %v2658
        %v2787 = vpack.c.b16 %v2663, %v2661
        %v2788 = vpack.c.b16 %v2664, %v2662
        %v2789 = vpack.c.b16 %v2667, %v2665
        %v2790 = vpack.c.b16 %v2668, %v2666
        %v2791 = vpack.c.b16 %v2671, %v2669
        %v2792 = vpack.c.b16 %v2672, %v2670
        %v2793 = vpack.c.b16 %v2675, %v2673
        %v2794 = vpack.c.b16 %v2676, %v2674
        %v2795 = vpack.c.b16 %v2679, %v2677
        %v2796 = vpack.c.b16 %v2680, %v2678
        %v2797 = vpack.c.b16 %v2683, %v2681
        %v2798 = vpack.c.b16 %v2684, %v2682
        %v2799 = vpack.c.b16 %v2687, %v2685
        %v2800 = vpack.c.b16 %v2688, %v2686
        %v2801 = vpack.c.b16 %v2691, %v2689
        %v2802 = vpack.c.b16 %v2692, %v2690
        %v2803 = vpack.c.b16 %v2695, %v2693
        %v2804 = vpack.c.b16 %v2696, %v2694
        %v2805 = vpack.c.b16 %v2699, %v2697
        %v2806 = vpack.c.b16 %v2700, %v2698
        %v2807 = vpack.c.b16 %v2703, %v2701
        %v2808 = vpack.c.b16 %v2704, %v2702
        %v2809 = vpack.c.b16 %v2707, %v2705
        %v2810 = vpack.c.b16 %v2708, %v2706
        %v2811 = vpack.c.b16 %v2711, %v2709
        %v2812 = vpack.c.b16 %v2712, %v2710
        %v2813 = vpack.c.b16 %v2715, %v2713
        %v2814 = vpack.c.b16 %v2716, %v2714
        %v2815 = vpack.c.b16 %v2719, %v2717
        %v2816 = vpack.c.b16 %v2720, %v2718
        %v2817 = vpack.c.b16 %v2723, %v2721
        %v2818 = vpack.c.b16 %v2724, %v2722
        %v2819 = vpack.c.b16 %v2727, %v2725
        %v2820 = vpack.c.b16 %v2728, %v2726
        %v2821 = vpack.c.b16 %v2731, %v2729
        %v2822 = vpack.c.b16 %v2732, %v2730
        %v2823 = vpack.c.b16 %v2735, %v2733
        %v2824 = vpack.c.b16 %v2736, %v2734
        %v2825 = vpack.c.b16 %v2739, %v2737
        %v2826 = vpack.c.b16 %v2740, %v2738
        %v2827 = vpack.c.b16 %v2743, %v2741
        %v2828 = vpack.c.b16 %v2744, %v2742
        %v2829 = vpack.c.b16 %v2747, %v2745
        %v2830 = vpack.c.b16 %v2748, %v2746
        %v2831 = vpack.c.b16 %v2751, %v2749
        %v2832 = vpack.c.b16 %v2752, %v2750
        %v2833 = vpack.c.b16 %v2755, %v2753
        %v2834 = vpack.c.b16 %v2756, %v2754
        %v2835 = vpack.c.b16 %v2759, %v2757
        %v2836 = vpack.c.b16 %v2760, %v2758
        %v2837 = vpack.c.b16 %v2763, %v2761
        %v2838 = vpack.c.b16 %v2764, %v2762
        %v2839 = vpack.c.b16 %v2767, %v2765
        %v2840 = vpack.c.b16 %v2768, %v2766
        %v2841 = vpack.c.b16 %v2771, %v2769
        %v2842 = vpack.c.b16 %v2772, %v2770
        %v2843 = vpack.c.b16 %v2775, %v2773
        %v2844 = vpack.c.b16 %v2776, %v2774
        %v2845 = vpack.c.b16 %v2779, %v2777
        %v2846 = vpack.c.b16 %v2780, %v2778
        %v2847 = vpack.c.b16 %v2783, %v2781
        %v2848 = vpack.c.b16 %v2784, %v2782
        %2913 = vmatprep.subr.bf16.mxu0 %v2786
        %2914 = vmatpush1.bf16.msra.mxu0 %v2785
        %2915 = vmatprep.subr.bf16.mxu0 %v2788
        %2916 = vmatpush1.bf16.msra.mxu0 %v2787
        %2917 = vmatprep.subr.bf16.mxu0 %v2790
        %2918 = vmatpush1.bf16.msra.mxu0 %v2789
        %2919 = vmatprep.subr.bf16.mxu0 %v2792
        %2920 = vmatpush1.bf16.msra.mxu0 %v2791
        %2921 = vmatprep.subr.bf16.mxu0 %v2794
        %2922 = vmatpush1.bf16.msra.mxu0 %v2793
        %2923 = vmatprep.subr.bf16.mxu0 %v2796
        %2924 = vmatpush1.bf16.msra.mxu0 %v2795
        %2925 = vmatprep.subr.bf16.mxu0 %v2798
        %2926 = vmatpush1.bf16.msra.mxu0 %v2797
        %2927 = vmatprep.subr.bf16.mxu0 %v2800
        %2928 = vmatpush1.bf16.msra.mxu0 %v2799
        %2929 = vmatprep.subr.bf16.mxu0 %v2802
        %2930 = vmatpush1.bf16.msra.mxu0 %v2801
        %2931 = vmatprep.subr.bf16.mxu0 %v2804
        %2932 = vmatpush1.bf16.msra.mxu0 %v2803
        %2933 = vmatprep.subr.bf16.mxu0 %v2806
        %2934 = vmatpush1.bf16.msra.mxu0 %v2805
        %2935 = vmatprep.subr.bf16.mxu0 %v2808
        %2936 = vmatpush1.bf16.msra.mxu0 %v2807
        %2937 = vmatprep.subr.bf16.mxu0 %v2810
        %2938 = vmatpush1.bf16.msra.mxu0 %v2809
        %2939 = vmatprep.subr.bf16.mxu0 %v2812
        %2940 = vmatpush1.bf16.msra.mxu0 %v2811
        %2941 = vmatprep.subr.bf16.mxu0 %v2814
        %2942 = vmatpush1.bf16.msra.mxu0 %v2813
        %2943 = vmatprep.subr.bf16.mxu0 %v2816
        %2944 = vmatpush1.bf16.msra.mxu0 %v2815
        %2945 = vmatprep.mubr.bf16.mxu0 %v1911
        %2946 = vmatmul.mubr.bf16.gmra.mrb[0].mxu0 %v1910
        %v2947 = vpop.f32.mrb[0].mxu0
        %v2948 = vadd.f32 %v2586, %v2947
        %v2949 = vpop.f32.mrb[0].mxu0
        %v2950 = vadd.f32 %v2590, %v2949
        %v2951 = vpop.f32.mrb[0].mxu0
        %v2952 = vadd.f32 %v2586, %v2951
        %v2953 = vpop.f32.mrb[0].mxu0
        %v2954 = vadd.f32 %v2590, %v2953
        %2955 = vmatprep.mubr.bf16.mxu0 %v1915
        %2956 = vmatmul.mubr.bf16.gmra.mrb[0].mxu0 %v1914
        %v2957 = vpop.f32.mrb[0].mxu0
        %v2958 = vadd.f32 %v2586, %v2957
        %v2959 = vpop.f32.mrb[0].mxu0
        %v2960 = vadd.f32 %v2590, %v2959
        %v2961 = vpop.f32.mrb[0].mxu0
        %v2962 = vadd.f32 %v2586, %v2961
        %v2963 = vpop.f32.mrb[0].mxu0
        %v2964 = vadd.f32 %v2590, %v2963
        %2965 = vmatprep.mubr.bf16.mxu0 %v1919
        %2966 = vmatmul.mubr.bf16.gmra.mrb[0].mxu0 %v1918
        %v2967 = vpop.f32.mrb[0].mxu0
        %v2968 = vadd.f32 %v2586, %v2967
        %v2969 = vpop.f32.mrb[0].mxu0
        %v2970 = vadd.f32 %v2590, %v2969
        %v2971 = vpop.f32.mrb[0].mxu0
        %v2972 = vadd.f32 %v2586, %v2971
        %v2973 = vpop.f32.mrb[0].mxu0
        %v2974 = vadd.f32 %v2590, %v2973
        %2975 = vmatprep.mubr.bf16.mxu0 %v1923
        %2976 = vmatmul.mubr.bf16.gmra.mrb[0].mxu0 %v1922
        %v2977 = vpop.f32.mrb[0].mxu0
        %v2978 = vadd.f32 %v2586, %v2977
        %v2979 = vpop.f32.mrb[0].mxu0
        %v2980 = vadd.f32 %v2590, %v2979
        %v2981 = vpop.f32.mrb[0].mxu0
        %v2982 = vadd.f32 %v2586, %v2981
        %v2983 = vpop.f32.mrb[0].mxu0
        %v2984 = vadd.f32 %v2590, %v2983
        %2985 = vdwg.mxu0
        %2986 = vmatprep.subr.bf16.mxu0 %v2818
        %2987 = vmatpush1.bf16.msra.mxu0 %v2817
        %2988 = vmatprep.subr.bf16.mxu0 %v2820
        %2989 = vmatpush1.bf16.msra.mxu0 %v2819
        %2990 = vmatprep.subr.bf16.mxu0 %v2822
        %2991 = vmatpush1.bf16.msra.mxu0 %v2821
        %2992 = vmatprep.subr.bf16.mxu0 %v2824
        %2993 = vmatpush1.bf16.msra.mxu0 %v2823
        %2994 = vmatprep.subr.bf16.mxu0 %v2826
        %2995 = vmatpush1.bf16.msra.mxu0 %v2825
        %2996 = vmatprep.subr.bf16.mxu0 %v2828
        %2997 = vmatpush1.bf16.msra.mxu0 %v2827
        %2998 = vmatprep.subr.bf16.mxu0 %v2830
        %2999 = vmatpush1.bf16.msra.mxu0 %v2829
        %3000 = vmatprep.subr.bf16.mxu0 %v2832
        %3001 = vmatpush1.bf16.msra.mxu0 %v2831
        %3002 = vmatprep.subr.bf16.mxu0 %v2834
        %3003 = vmatpush1.bf16.msra.mxu0 %v2833
        %3004 = vmatprep.subr.bf16.mxu0 %v2836
        %3005 = vmatpush1.bf16.msra.mxu0 %v2835
        %3006 = vmatprep.subr.bf16.mxu0 %v2838
        %3007 = vmatpush1.bf16.msra.mxu0 %v2837
        %3008 = vmatprep.subr.bf16.mxu0 %v2840
        %3009 = vmatpush1.bf16.msra.mxu0 %v2839
        %3010 = vmatprep.subr.bf16.mxu0 %v2842
        %3011 = vmatpush1.bf16.msra.mxu0 %v2841
        %3012 = vmatprep.subr.bf16.mxu0 %v2844
        %3013 = vmatpush1.bf16.msra.mxu0 %v2843
        %3014 = vmatprep.subr.bf16.mxu0 %v2846
        %3015 = vmatpush1.bf16.msra.mxu0 %v2845
        %3016 = vmatprep.subr.bf16.mxu0 %v2848
        %3017 = vmatpush1.bf16.msra.mxu0 %v2847
        %3018 = vmatprep.mubr.bf16.mxu0 %v1913
        %3019 = vmatmul.mubr.bf16.gmra.mrb[0].mxu0 %v1912
        %v3020 = vpop.f32.mrb[0].mxu0
        %v3021 = vadd.f32 %v2948, %v3020
        %v3022 = vpop.f32.mrb[0].mxu0
        %v3023 = vadd.f32 %v2950, %v3022
        %v3024 = vpop.f32.mrb[0].mxu0
        %v3025 = vadd.f32 %v2952, %v3024
        %v3026 = vpop.f32.mrb[0].mxu0
        %v3027 = vadd.f32 %v2954, %v3026
        %3028 = vmatprep.mubr.bf16.mxu0 %v1917
        %3029 = vmatmul.mubr.bf16.gmra.mrb[0].mxu0 %v1916
        %v3030 = vpop.f32.mrb[0].mxu0
        %v3031 = vadd.f32 %v2958, %v3030
        %v3032 = vpop.f32.mrb[0].mxu0
        %v3033 = vadd.f32 %v2960, %v3032
        %v3034 = vpop.f32.mrb[0].mxu0
        %v3035 = vadd.f32 %v2962, %v3034
        %v3036 = vpop.f32.mrb[0].mxu0
        %v3037 = vadd.f32 %v2964, %v3036
        %3038 = vmatprep.mubr.bf16.mxu0 %v1921
        %3039 = vmatmul.mubr.bf16.gmra.mrb[0].mxu0 %v1920
        %v3040 = vpop.f32.mrb[0].mxu0
        %v3041 = vadd.f32 %v2968, %v3040
        %v3042 = vpop.f32.mrb[0].mxu0
        %v3043 = vadd.f32 %v2970, %v3042
        %v3044 = vpop.f32.mrb[0].mxu0
        %v3045 = vadd.f32 %v2972, %v3044
        %v3046 = vpop.f32.mrb[0].mxu0
        %v3047 = vadd.f32 %v2974, %v3046
        %3048 = vmatprep.mubr.bf16.mxu0 %v1925
        %3049 = vmatmul.mubr.bf16.gmra.mrb[0].mxu0 %v1924
        %v3050 = vpop.f32.mrb[0].mxu0
        %v3051 = vadd.f32 %v2978, %v3050
        %v3052 = vpop.f32.mrb[0].mxu0
        %v3053 = vadd.f32 %v2980, %v3052
        %v3054 = vpop.f32.mrb[0].mxu0
        %v3055 = vadd.f32 %v2982, %v3054
        %v3056 = vpop.f32.mrb[0].mxu0
        %v3057 = vadd.f32 %v2984, %v3056
        %3058 = vdwg.mxu0
        %v3059 = vmax.f32 %v3021, %v3031
        %v3060 = vmax.f32 %v3025, %v3035
        %v3061 = vmax.f32 %v3059, %v3041
        %v3062 = vmax.f32 %v3060, %v3045
        %v3063 = vmax.f32 %v3061, %v3051
        %v3064 = vmax.f32 %v3062, %v3055
        %v3065 = vmax.f32 %v3063, %v3064
        %v3066 = vrot.slane %v3065, 4
        %v3067 = vmax.f32 %v3065, %v3066
        %v3068 = vrot.slane %v3067, 2
        %v3069 = vmax.f32 %v3067, %v3068
        %v3070 = vrot.slane %v3069, 1
        %v3071 = vmax.f32 %v3069, %v3070
        %v3072 = vmax.f32 %v3023, %v3033
        %v3073 = vmax.f32 %v3027, %v3037
        %v3074 = vmax.f32 %v3072, %v3043
        %v3075 = vmax.f32 %v3073, %v3047
        %v3076 = vmax.f32 %v3074, %v3053
        %v3077 = vmax.f32 %v3075, %v3057
        %v3078 = vmax.f32 %v3076, %v3077
        %v3079 = vrot.slane %v3078, 4
        %v3080 = vmax.f32 %v3078, %v3079
        %v3081 = vrot.slane %v3080, 2
        %v3082 = vmax.f32 %v3080, %v3081
        %v3083 = vrot.slane %v3082, 1
        %v3084 = vmax.f32 %v3082, %v3083
        %v3087 = vcombine.low %v3071, %v3084
        %v3089 = vunpack.c.l.s4 1966171168
        %v3090 = vunpack.c.0.s8 %v3089
        %v3091 = vlaneseq
        %v3092 = vshrl.u32 %v3091, 7
        %v3093 = vsub.s32 %v3090, %v3092
        %v3094 = vrot.slane %v3087, %v3093
        %v3096 = vunpack.c.l.s4 1966171168
        %v3097 = vunpack.c.0.s8 %v3096
        %v3098 = vlaneseq
        %v3099 = vshrl.u32 %v3098, 7
        %v3100 = vsub.s32 %v3097, %v3099
        %v3101 = vrot.slane %v3094, %v3100
        %3103 = vst.msk [vmem:[%s396 + $0x2] sm:$0x3] %vm2515, %v3101
        %v3104 = vld [vmem:[#allocation7 + $0x10] sm:$0xff]
        %v3105 = vld [vmem:[#allocation7 + $0x30] sm:$0xff]
        %v3106 = vld [vmem:[#allocation7 + $0x50] sm:$0xff]
        %v3107 = vld [vmem:[#allocation7 + $0x70] sm:$0xff]
        %v3108 = vld [vmem:[#allocation7 + $0x90] sm:$0xff]
        %v3109 = vld [vmem:[#allocation7 + $0xb0] sm:$0xff]
        %v3110 = vld [vmem:[#allocation7 + $0xd0] sm:$0xff]
        %v3111 = vld [vmem:[#allocation7 + $0xf0] sm:$0xff]
        %v3112 = vld [vmem:[#allocation7 + $0x110] sm:$0xff]
        %v3113 = vld [vmem:[#allocation7 + $0x130] sm:$0xff]
        %v3114 = vld [vmem:[#allocation7 + $0x150] sm:$0xff]
        %v3115 = vld [vmem:[#allocation7 + $0x170] sm:$0xff]
        %v3116 = vld [vmem:[#allocation7 + $0x190] sm:$0xff]
        %v3117 = vld [vmem:[#allocation7 + $0x1b0] sm:$0xff]
        %v3118 = vld [vmem:[#allocation7 + $0x1d0] sm:$0xff]
        %v3119 = vld [vmem:[#allocation7 + $0x1f0] sm:$0xff]
        %v3120 = vld [vmem:[#allocation7 + $0x210] sm:$0xff]
        %v3121 = vld [vmem:[#allocation7 + $0x230] sm:$0xff]
        %v3122 = vld [vmem:[#allocation7 + $0x250] sm:$0xff]
        %v3123 = vld [vmem:[#allocation7 + $0x270] sm:$0xff]
        %v3124 = vld [vmem:[#allocation7 + $0x290] sm:$0xff]
        %v3125 = vld [vmem:[#allocation7 + $0x2b0] sm:$0xff]
        %v3126 = vld [vmem:[#allocation7 + $0x2d0] sm:$0xff]
        %v3127 = vld [vmem:[#allocation7 + $0x2f0] sm:$0xff]
        %v3128 = vld [vmem:[#allocation7 + $0x310] sm:$0xff]
        %v3129 = vld [vmem:[#allocation7 + $0x330] sm:$0xff]
        %v3130 = vld [vmem:[#allocation7 + $0x350] sm:$0xff]
        %v3131 = vld [vmem:[#allocation7 + $0x370] sm:$0xff]
        %v3132 = vld [vmem:[#allocation7 + $0x390] sm:$0xff]
        %v3133 = vld [vmem:[#allocation7 + $0x3b0] sm:$0xff]
        %v3134 = vld [vmem:[#allocation7 + $0x3d0] sm:$0xff]
        %v3135 = vld [vmem:[#allocation7 + $0x3f0] sm:$0xff]
        %v3136 = vld [vmem:[#allocation7 + $0x410] sm:$0xff]
        %v3137 = vld [vmem:[#allocation7 + $0x430] sm:$0xff]
        %v3138 = vld [vmem:[#allocation7 + $0x450] sm:$0xff]
        %v3139 = vld [vmem:[#allocation7 + $0x470] sm:$0xff]
        %v3140 = vld [vmem:[#allocation7 + $0x490] sm:$0xff]
        %v3141 = vld [vmem:[#allocation7 + $0x4b0] sm:$0xff]
        %v3142 = vld [vmem:[#allocation7 + $0x4d0] sm:$0xff]
        %v3143 = vld [vmem:[#allocation7 + $0x4f0] sm:$0xff]
        %v3144 = vld [vmem:[#allocation7 + $0x510] sm:$0xff]
        %v3145 = vld [vmem:[#allocation7 + $0x530] sm:$0xff]
        %v3146 = vld [vmem:[#allocation7 + $0x550] sm:$0xff]
        %v3147 = vld [vmem:[#allocation7 + $0x570] sm:$0xff]
        %v3148 = vld [vmem:[#allocation7 + $0x590] sm:$0xff]
        %v3149 = vld [vmem:[#allocation7 + $0x5b0] sm:$0xff]
        %v3150 = vld [vmem:[#allocation7 + $0x5d0] sm:$0xff]
        %v3151 = vld [vmem:[#allocation7 + $0x5f0] sm:$0xff]
        %v3152 = vld [vmem:[#allocation7 + $0x610] sm:$0xff]
        %v3153 = vld [vmem:[#allocation7 + $0x630] sm:$0xff]
        %v3154 = vld [vmem:[#allocation7 + $0x650] sm:$0xff]
        %v3155 = vld [vmem:[#allocation7 + $0x670] sm:$0xff]
        %v3156 = vld [vmem:[#allocation7 + $0x690] sm:$0xff]
        %v3157 = vld [vmem:[#allocation7 + $0x6b0] sm:$0xff]
        %v3158 = vld [vmem:[#allocation7 + $0x6d0] sm:$0xff]
        %v3159 = vld [vmem:[#allocation7 + $0x6f0] sm:$0xff]
        %v3160 = vld [vmem:[#allocation7 + $0x710] sm:$0xff]
        %v3161 = vld [vmem:[#allocation7 + $0x730] sm:$0xff]
        %v3162 = vld [vmem:[#allocation7 + $0x750] sm:$0xff]
        %v3163 = vld [vmem:[#allocation7 + $0x770] sm:$0xff]
        %v3164 = vld [vmem:[#allocation7 + $0x790] sm:$0xff]
        %v3165 = vld [vmem:[#allocation7 + $0x7b0] sm:$0xff]
        %v3166 = vld [vmem:[#allocation7 + $0x7d0] sm:$0xff]
        %v3167 = vld [vmem:[#allocation7 + $0x7f0] sm:$0xff]
        %v3168 = vld [vmem:[%s9 + $0x4] sm:$0x3]
        %v3170 = vlaneseq
        %v3171 = vshrl.u32 %v3170, 7
        %v3172 = vsub.s32 0, %v3171
        %v3173 = vrot.slane %v3168, %v3172
        %v3174 = vlaneseq
        %v3175 = vshrl.u32 %v3174, 7
        %v3176 = vsub.s32 1, %v3175
        %v3177 = vrot.slane %v3168, %v3176
        %v3244 = vunpack.c.l.b16 %v3104
        %v3245 = vunpack.c.h.b16 %v3104
        %v3246 = vunpack.c.l.b16 %v3105
        %v3247 = vunpack.c.h.b16 %v3105
        %v3248 = vunpack.c.l.b16 %v3106
        %v3249 = vunpack.c.h.b16 %v3106
        %v3250 = vunpack.c.l.b16 %v3107
        %v3251 = vunpack.c.h.b16 %v3107
        %v3252 = vunpack.c.l.b16 %v3108
        %v3253 = vunpack.c.h.b16 %v3108
        %v3254 = vunpack.c.l.b16 %v3109
        %v3255 = vunpack.c.h.b16 %v3109
        %v3256 = vunpack.c.l.b16 %v3110
        %v3257 = vunpack.c.h.b16 %v3110
        %v3258 = vunpack.c.l.b16 %v3111
        %v3259 = vunpack.c.h.b16 %v3111
        %v3260 = vunpack.c.l.b16 %v3112
        %v3261 = vunpack.c.h.b16 %v3112
        %v3262 = vunpack.c.l.b16 %v3113
        %v3263 = vunpack.c.h.b16 %v3113
        %v3264 = vunpack.c.l.b16 %v3114
        %v3265 = vunpack.c.h.b16 %v3114
        %v3266 = vunpack.c.l.b16 %v3115
        %v3267 = vunpack.c.h.b16 %v3115
        %v3268 = vunpack.c.l.b16 %v3116
        %v3269 = vunpack.c.h.b16 %v3116
        %v3270 = vunpack.c.l.b16 %v3117
        %v3271 = vunpack.c.h.b16 %v3117
        %v3272 = vunpack.c.l.b16 %v3118
        %v3273 = vunpack.c.h.b16 %v3118
        %v3274 = vunpack.c.l.b16 %v3119
        %v3275 = vunpack.c.h.b16 %v3119
        %v3276 = vunpack.c.l.b16 %v3120
        %v3277 = vunpack.c.h.b16 %v3120
        %v3278 = vunpack.c.l.b16 %v3121
        %v3279 = vunpack.c.h.b16 %v3121
        %v3280 = vunpack.c.l.b16 %v3122
        %v3281 = vunpack.c.h.b16 %v3122
        %v3282 = vunpack.c.l.b16 %v3123
        %v3283 = vunpack.c.h.b16 %v3123
        %v3284 = vunpack.c.l.b16 %v3124
        %v3285 = vunpack.c.h.b16 %v3124
        %v3286 = vunpack.c.l.b16 %v3125
        %v3287 = vunpack.c.h.b16 %v3125
        %v3288 = vunpack.c.l.b16 %v3126
        %v3289 = vunpack.c.h.b16 %v3126
        %v3290 = vunpack.c.l.b16 %v3127
        %v3291 = vunpack.c.h.b16 %v3127
        %v3292 = vunpack.c.l.b16 %v3128
        %v3293 = vunpack.c.h.b16 %v3128
        %v3294 = vunpack.c.l.b16 %v3129
        %v3295 = vunpack.c.h.b16 %v3129
        %v3296 = vunpack.c.l.b16 %v3130
        %v3297 = vunpack.c.h.b16 %v3130
        %v3298 = vunpack.c.l.b16 %v3131
        %v3299 = vunpack.c.h.b16 %v3131
        %v3300 = vunpack.c.l.b16 %v3132
        %v3301 = vunpack.c.h.b16 %v3132
        %v3302 = vunpack.c.l.b16 %v3133
        %v3303 = vunpack.c.h.b16 %v3133
        %v3304 = vunpack.c.l.b16 %v3134
        %v3305 = vunpack.c.h.b16 %v3134
        %v3306 = vunpack.c.l.b16 %v3135
        %v3307 = vunpack.c.h.b16 %v3135
        %v3308 = vunpack.c.l.b16 %v3136
        %v3309 = vunpack.c.h.b16 %v3136
        %v3310 = vunpack.c.l.b16 %v3137
        %v3311 = vunpack.c.h.b16 %v3137
        %v3312 = vunpack.c.l.b16 %v3138
        %v3313 = vunpack.c.h.b16 %v3138
        %v3314 = vunpack.c.l.b16 %v3139
        %v3315 = vunpack.c.h.b16 %v3139
        %v3316 = vunpack.c.l.b16 %v3140
        %v3317 = vunpack.c.h.b16 %v3140
        %v3318 = vunpack.c.l.b16 %v3141
        %v3319 = vunpack.c.h.b16 %v3141
        %v3320 = vunpack.c.l.b16 %v3142
        %v3321 = vunpack.c.h.b16 %v3142
        %v3322 = vunpack.c.l.b16 %v3143
        %v3323 = vunpack.c.h.b16 %v3143
        %v3324 = vunpack.c.l.b16 %v3144
        %v3325 = vunpack.c.h.b16 %v3144
        %v3326 = vunpack.c.l.b16 %v3145
        %v3327 = vunpack.c.h.b16 %v3145
        %v3328 = vunpack.c.l.b16 %v3146
        %v3329 = vunpack.c.h.b16 %v3146
        %v3330 = vunpack.c.l.b16 %v3147
        %v3331 = vunpack.c.h.b16 %v3147
        %v3332 = vunpack.c.l.b16 %v3148
        %v3333 = vunpack.c.h.b16 %v3148
        %v3334 = vunpack.c.l.b16 %v3149
        %v3335 = vunpack.c.h.b16 %v3149
        %v3336 = vunpack.c.l.b16 %v3150
        %v3337 = vunpack.c.h.b16 %v3150
        %v3338 = vunpack.c.l.b16 %v3151
        %v3339 = vunpack.c.h.b16 %v3151
        %v3340 = vunpack.c.l.b16 %v3152
        %v3341 = vunpack.c.h.b16 %v3152
        %v3342 = vunpack.c.l.b16 %v3153
        %v3343 = vunpack.c.h.b16 %v3153
        %v3344 = vunpack.c.l.b16 %v3154
        %v3345 = vunpack.c.h.b16 %v3154
        %v3346 = vunpack.c.l.b16 %v3155
        %v3347 = vunpack.c.h.b16 %v3155
        %v3348 = vunpack.c.l.b16 %v3156
        %v3349 = vunpack.c.h.b16 %v3156
        %v3350 = vunpack.c.l.b16 %v3157
        %v3351 = vunpack.c.h.b16 %v3157
        %v3352 = vunpack.c.l.b16 %v3158
        %v3353 = vunpack.c.h.b16 %v3158
        %v3354 = vunpack.c.l.b16 %v3159
        %v3355 = vunpack.c.h.b16 %v3159
        %v3356 = vunpack.c.l.b16 %v3160
        %v3357 = vunpack.c.h.b16 %v3160
        %v3358 = vunpack.c.l.b16 %v3161
        %v3359 = vunpack.c.h.b16 %v3161
        %v3360 = vunpack.c.l.b16 %v3162
        %v3361 = vunpack.c.h.b16 %v3162
        %v3362 = vunpack.c.l.b16 %v3163
        %v3363 = vunpack.c.h.b16 %v3163
        %v3364 = vunpack.c.l.b16 %v3164
        %v3365 = vunpack.c.h.b16 %v3164
        %v3366 = vunpack.c.l.b16 %v3165
        %v3367 = vunpack.c.h.b16 %v3165
        %v3368 = vunpack.c.l.b16 %v3166
        %v3369 = vunpack.c.h.b16 %v3166
        %v3370 = vunpack.c.l.b16 %v3167
        %v3371 = vunpack.c.h.b16 %v3167
        %v3372 = vpack.c.b16 %v3246, %v3244
        %v3373 = vpack.c.b16 %v3247, %v3245
        %v3374 = vpack.c.b16 %v3250, %v3248
        %v3375 = vpack.c.b16 %v3251, %v3249
        %v3376 = vpack.c.b16 %v3254, %v3252
        %v3377 = vpack.c.b16 %v3255, %v3253
        %v3378 = vpack.c.b16 %v3258, %v3256
        %v3379 = vpack.c.b16 %v3259, %v3257
        %v3380 = vpack.c.b16 %v3262, %v3260
        %v3381 = vpack.c.b16 %v3263, %v3261
        %v3382 = vpack.c.b16 %v3266, %v3264
        %v3383 = vpack.c.b16 %v3267, %v3265
        %v3384 = vpack.c.b16 %v3270, %v3268
        %v3385 = vpack.c.b16 %v3271, %v3269
        %v3386 = vpack.c.b16 %v3274, %v3272
        %v3387 = vpack.c.b16 %v3275, %v3273
        %v3388 = vpack.c.b16 %v3278, %v3276
        %v3389 = vpack.c.b16 %v3279, %v3277
        %v3390 = vpack.c.b16 %v3282, %v3280
        %v3391 = vpack.c.b16 %v3283, %v3281
        %v3392 = vpack.c.b16 %v3286, %v3284
        %v3393 = vpack.c.b16 %v3287, %v3285
        %v3394 = vpack.c.b16 %v3290, %v3288
        %v3395 = vpack.c.b16 %v3291, %v3289
        %v3396 = vpack.c.b16 %v3294, %v3292
        %v3397 = vpack.c.b16 %v3295, %v3293
        %v3398 = vpack.c.b16 %v3298, %v3296
        %v3399 = vpack.c.b16 %v3299, %v3297
        %v3400 = vpack.c.b16 %v3302, %v3300
        %v3401 = vpack.c.b16 %v3303, %v3301
        %v3402 = vpack.c.b16 %v3306, %v3304
        %v3403 = vpack.c.b16 %v3307, %v3305
        %v3404 = vpack.c.b16 %v3310, %v3308
        %v3405 = vpack.c.b16 %v3311, %v3309
        %v3406 = vpack.c.b16 %v3314, %v3312
        %v3407 = vpack.c.b16 %v3315, %v3313
        %v3408 = vpack.c.b16 %v3318, %v3316
        %v3409 = vpack.c.b16 %v3319, %v3317
        %v3410 = vpack.c.b16 %v3322, %v3320
        %v3411 = vpack.c.b16 %v3323, %v3321
        %v3412 = vpack.c.b16 %v3326, %v3324
        %v3413 = vpack.c.b16 %v3327, %v3325
        %v3414 = vpack.c.b16 %v3330, %v3328
        %v3415 = vpack.c.b16 %v3331, %v3329
        %v3416 = vpack.c.b16 %v3334, %v3332
        %v3417 = vpack.c.b16 %v3335, %v3333
        %v3418 = vpack.c.b16 %v3338, %v3336
        %v3419 = vpack.c.b16 %v3339, %v3337
        %v3420 = vpack.c.b16 %v3342, %v3340
        %v3421 = vpack.c.b16 %v3343, %v3341
        %v3422 = vpack.c.b16 %v3346, %v3344
        %v3423 = vpack.c.b16 %v3347, %v3345
        %v3424 = vpack.c.b16 %v3350, %v3348
        %v3425 = vpack.c.b16 %v3351, %v3349
        %v3426 = vpack.c.b16 %v3354, %v3352
        %v3427 = vpack.c.b16 %v3355, %v3353
        %v3428 = vpack.c.b16 %v3358, %v3356
        %v3429 = vpack.c.b16 %v3359, %v3357
        %v3430 = vpack.c.b16 %v3362, %v3360
        %v3431 = vpack.c.b16 %v3363, %v3361
        %v3432 = vpack.c.b16 %v3366, %v3364
        %v3433 = vpack.c.b16 %v3367, %v3365
        %v3434 = vpack.c.b16 %v3370, %v3368
        %v3435 = vpack.c.b16 %v3371, %v3369
        %3500 = vmatprep.subr.bf16.mxu0 %v3373
        %3501 = vmatpush1.bf16.msra.mxu0 %v3372
        %3502 = vmatprep.subr.bf16.mxu0 %v3375
        %3503 = vmatpush1.bf16.msra.mxu0 %v3374
        %3504 = vmatprep.subr.bf16.mxu0 %v3377
        %3505 = vmatpush1.bf16.msra.mxu0 %v3376
        %3506 = vmatprep.subr.bf16.mxu0 %v3379
        %3507 = vmatpush1.bf16.msra.mxu0 %v3378
        %3508 = vmatprep.subr.bf16.mxu0 %v3381
        %3509 = vmatpush1.bf16.msra.mxu0 %v3380
        %3510 = vmatprep.subr.bf16.mxu0 %v3383
        %3511 = vmatpush1.bf16.msra.mxu0 %v3382
        %3512 = vmatprep.subr.bf16.mxu0 %v3385
        %3513 = vmatpush1.bf16.msra.mxu0 %v3384
        %3514 = vmatprep.subr.bf16.mxu0 %v3387
        %3515 = vmatpush1.bf16.msra.mxu0 %v3386
        %3516 = vmatprep.subr.bf16.mxu0 %v3389
        %3517 = vmatpush1.bf16.msra.mxu0 %v3388
        %3518 = vmatprep.subr.bf16.mxu0 %v3391
        %3519 = vmatpush1.bf16.msra.mxu0 %v3390
        %3520 = vmatprep.subr.bf16.mxu0 %v3393
        %3521 = vmatpush1.bf16.msra.mxu0 %v3392
        %3522 = vmatprep.subr.bf16.mxu0 %v3395
        %3523 = vmatpush1.bf16.msra.mxu0 %v3394
        %3524 = vmatprep.subr.bf16.mxu0 %v3397
        %3525 = vmatpush1.bf16.msra.mxu0 %v3396
        %3526 = vmatprep.subr.bf16.mxu0 %v3399
        %3527 = vmatpush1.bf16.msra.mxu0 %v3398
        %3528 = vmatprep.subr.bf16.mxu0 %v3401
        %3529 = vmatpush1.bf16.msra.mxu0 %v3400
        %3530 = vmatprep.subr.bf16.mxu0 %v3403
        %3531 = vmatpush1.bf16.msra.mxu0 %v3402
        %3532 = vmatprep.mubr.bf16.mxu0 %v1911
        %3533 = vmatmul.mubr.bf16.gmra.mrb[0].mxu0 %v1910
        %v3534 = vpop.f32.mrb[0].mxu0
        %v3535 = vadd.f32 %v3173, %v3534
        %v3536 = vpop.f32.mrb[0].mxu0
        %v3537 = vadd.f32 %v3177, %v3536
        %v3538 = vpop.f32.mrb[0].mxu0
        %v3539 = vadd.f32 %v3173, %v3538
        %v3540 = vpop.f32.mrb[0].mxu0
        %v3541 = vadd.f32 %v3177, %v3540
        %3542 = vmatprep.mubr.bf16.mxu0 %v1915
        %3543 = vmatmul.mubr.bf16.gmra.mrb[0].mxu0 %v1914
        %v3544 = vpop.f32.mrb[0].mxu0
        %v3545 = vadd.f32 %v3173, %v3544
        %v3546 = vpop.f32.mrb[0].mxu0
        %v3547 = vadd.f32 %v3177, %v3546
        %v3548 = vpop.f32.mrb[0].mxu0
        %v3549 = vadd.f32 %v3173, %v3548
        %v3550 = vpop.f32.mrb[0].mxu0
        %v3551 = vadd.f32 %v3177, %v3550
        %3552 = vmatprep.mubr.bf16.mxu0 %v1919
        %3553 = vmatmul.mubr.bf16.gmra.mrb[0].mxu0 %v1918
        %v3554 = vpop.f32.mrb[0].mxu0
        %v3555 = vadd.f32 %v3173, %v3554
        %v3556 = vpop.f32.mrb[0].mxu0
        %v3557 = vadd.f32 %v3177, %v3556
        %v3558 = vpop.f32.mrb[0].mxu0
        %v3559 = vadd.f32 %v3173, %v3558
        %v3560 = vpop.f32.mrb[0].mxu0
        %v3561 = vadd.f32 %v3177, %v3560
        %3562 = vmatprep.mubr.bf16.mxu0 %v1923
        %3563 = vmatmul.mubr.bf16.gmra.mrb[0].mxu0 %v1922
        %v3564 = vpop.f32.mrb[0].mxu0
        %v3565 = vadd.f32 %v3173, %v3564
        %v3566 = vpop.f32.mrb[0].mxu0
        %v3567 = vadd.f32 %v3177, %v3566
        %v3568 = vpop.f32.mrb[0].mxu0
        %v3569 = vadd.f32 %v3173, %v3568
        %v3570 = vpop.f32.mrb[0].mxu0
        %v3571 = vadd.f32 %v3177, %v3570
        %3572 = vdwg.mxu0
        %3573 = vmatprep.subr.bf16.mxu0 %v3405
        %3574 = vmatpush1.bf16.msra.mxu0 %v3404
        %3575 = vmatprep.subr.bf16.mxu0 %v3407
        %3576 = vmatpush1.bf16.msra.mxu0 %v3406
        %3577 = vmatprep.subr.bf16.mxu0 %v3409
        %3578 = vmatpush1.bf16.msra.mxu0 %v3408
        %3579 = vmatprep.subr.bf16.mxu0 %v3411
        %3580 = vmatpush1.bf16.msra.mxu0 %v3410
        %3581 = vmatprep.subr.bf16.mxu0 %v3413
        %3582 = vmatpush1.bf16.msra.mxu0 %v3412
        %3583 = vmatprep.subr.bf16.mxu0 %v3415
        %3584 = vmatpush1.bf16.msra.mxu0 %v3414
        %3585 = vmatprep.subr.bf16.mxu0 %v3417
        %3586 = vmatpush1.bf16.msra.mxu0 %v3416
        %3587 = vmatprep.subr.bf16.mxu0 %v3419
        %3588 = vmatpush1.bf16.msra.mxu0 %v3418
        %3589 = vmatprep.subr.bf16.mxu0 %v3421
        %3590 = vmatpush1.bf16.msra.mxu0 %v3420
        %3591 = vmatprep.subr.bf16.mxu0 %v3423
        %3592 = vmatpush1.bf16.msra.mxu0 %v3422
        %3593 = vmatprep.subr.bf16.mxu0 %v3425
        %3594 = vmatpush1.bf16.msra.mxu0 %v3424
        %3595 = vmatprep.subr.bf16.mxu0 %v3427
        %3596 = vmatpush1.bf16.msra.mxu0 %v3426
        %3597 = vmatprep.subr.bf16.mxu0 %v3429
        %3598 = vmatpush1.bf16.msra.mxu0 %v3428
        %3599 = vmatprep.subr.bf16.mxu0 %v3431
        %3600 = vmatpush1.bf16.msra.mxu0 %v3430
        %3601 = vmatprep.subr.bf16.mxu0 %v3433
        %3602 = vmatpush1.bf16.msra.mxu0 %v3432
        %3603 = vmatprep.subr.bf16.mxu0 %v3435
        %3604 = vmatpush1.bf16.msra.mxu0 %v3434
        %3605 = vmatprep.mubr.bf16.mxu0 %v1913
        %3606 = vmatmul.mubr.bf16.gmra.mrb[0].mxu0 %v1912
        %v3607 = vpop.f32.mrb[0].mxu0
        %v3608 = vadd.f32 %v3535, %v3607
        %v3609 = vpop.f32.mrb[0].mxu0
        %v3610 = vadd.f32 %v3537, %v3609
        %v3611 = vpop.f32.mrb[0].mxu0
        %v3612 = vadd.f32 %v3539, %v3611
        %v3613 = vpop.f32.mrb[0].mxu0
        %v3614 = vadd.f32 %v3541, %v3613
        %3615 = vmatprep.mubr.bf16.mxu0 %v1917
        %3616 = vmatmul.mubr.bf16.gmra.mrb[0].mxu0 %v1916
        %v3617 = vpop.f32.mrb[0].mxu0
        %v3618 = vadd.f32 %v3545, %v3617
        %v3619 = vpop.f32.mrb[0].mxu0
        %v3620 = vadd.f32 %v3547, %v3619
        %v3621 = vpop.f32.mrb[0].mxu0
        %v3622 = vadd.f32 %v3549, %v3621
        %v3623 = vpop.f32.mrb[0].mxu0
        %v3624 = vadd.f32 %v3551, %v3623
        %3625 = vmatprep.mubr.bf16.mxu0 %v1921
        %3626 = vmatmul.mubr.bf16.gmra.mrb[0].mxu0 %v1920
        %v3627 = vpop.f32.mrb[0].mxu0
        %v3628 = vadd.f32 %v3555, %v3627
        %v3629 = vpop.f32.mrb[0].mxu0
        %v3630 = vadd.f32 %v3557, %v3629
        %v3631 = vpop.f32.mrb[0].mxu0
        %v3632 = vadd.f32 %v3559, %v3631
        %v3633 = vpop.f32.mrb[0].mxu0
        %v3634 = vadd.f32 %v3561, %v3633
        %3635 = vmatprep.mubr.bf16.mxu0 %v1925
        %3636 = vmatmul.mubr.bf16.gmra.mrb[0].mxu0 %v1924
        %v3637 = vpop.f32.mrb[0].mxu0
        %v3638 = vadd.f32 %v3565, %v3637
        %v3639 = vpop.f32.mrb[0].mxu0
        %v3640 = vadd.f32 %v3567, %v3639
        %v3641 = vpop.f32.mrb[0].mxu0
        %v3642 = vadd.f32 %v3569, %v3641
        %v3643 = vpop.f32.mrb[0].mxu0
        %v3644 = vadd.f32 %v3571, %v3643
        %3645 = vdwg.mxu0
        %v3646 = vmax.f32 %v3608, %v3618
        %v3647 = vmax.f32 %v3612, %v3622
        %v3648 = vmax.f32 %v3646, %v3628
        %v3649 = vmax.f32 %v3647, %v3632
        %v3650 = vmax.f32 %v3648, %v3638
        %v3651 = vmax.f32 %v3649, %v3642
        %v3652 = vmax.f32 %v3650, %v3651
        %v3653 = vrot.slane %v3652, 4
        %v3654 = vmax.f32 %v3652, %v3653
        %v3655 = vrot.slane %v3654, 2
        %v3656 = vmax.f32 %v3654, %v3655
        %v3657 = vrot.slane %v3656, 1
        %v3658 = vmax.f32 %v3656, %v3657
        %v3659 = vmax.f32 %v3610, %v3620
        %v3660 = vmax.f32 %v3614, %v3624
        %v3661 = vmax.f32 %v3659, %v3630
        %v3662 = vmax.f32 %v3660, %v3634
        %v3663 = vmax.f32 %v3661, %v3640
        %v3664 = vmax.f32 %v3662, %v3644
        %v3665 = vmax.f32 %v3663, %v3664
        %v3666 = vrot.slane %v3665, 4
        %v3667 = vmax.f32 %v3665, %v3666
        %v3668 = vrot.slane %v3667, 2
        %v3669 = vmax.f32 %v3667, %v3668
        %v3670 = vrot.slane %v3669, 1
        %v3671 = vmax.f32 %v3669, %v3670
        %v3674 = vcombine.low %v3658, %v3671
        %v3676 = vunpack.c.l.s4 1966171168
        %v3677 = vunpack.c.0.s8 %v3676
        %v3678 = vlaneseq
        %v3679 = vshrl.u32 %v3678, 7
        %v3680 = vsub.s32 %v3677, %v3679
        %v3681 = vrot.slane %v3674, %v3680
        %v3683 = vunpack.c.l.s4 1966171168
        %v3684 = vunpack.c.0.s8 %v3683
        %v3685 = vlaneseq
        %v3686 = vshrl.u32 %v3685, 7
        %v3687 = vsub.s32 %v3684, %v3686
        %v3688 = vrot.slane %v3681, %v3687
        %3690 = vst.msk [vmem:[%s396 + $0x4] sm:$0x3] %vm2515, %v3688
        %v3691 = vld [vmem:[#allocation7 + $0x18] sm:$0xff]
        %v3692 = vld [vmem:[#allocation7 + $0x38] sm:$0xff]
        %v3693 = vld [vmem:[#allocation7 + $0x58] sm:$0xff]
        %v3694 = vld [vmem:[#allocation7 + $0x78] sm:$0xff]
        %v3695 = vld [vmem:[#allocation7 + $0x98] sm:$0xff]
        %v3696 = vld [vmem:[#allocation7 + $0xb8] sm:$0xff]
        %v3697 = vld [vmem:[#allocation7 + $0xd8] sm:$0xff]
        %v3698 = vld [vmem:[#allocation7 + $0xf8] sm:$0xff]
        %v3699 = vld [vmem:[#allocation7 + $0x118] sm:$0xff]
        %v3700 = vld [vmem:[#allocation7 + $0x138] sm:$0xff]
        %v3701 = vld [vmem:[#allocation7 + $0x158] sm:$0xff]
        %v3702 = vld [vmem:[#allocation7 + $0x178] sm:$0xff]
        %v3703 = vld [vmem:[#allocation7 + $0x198] sm:$0xff]
        %v3704 = vld [vmem:[#allocation7 + $0x1b8] sm:$0xff]
        %v3705 = vld [vmem:[#allocation7 + $0x1d8] sm:$0xff]
        %v3706 = vld [vmem:[#allocation7 + $0x1f8] sm:$0xff]
        %v3707 = vld [vmem:[#allocation7 + $0x218] sm:$0xff]
        %v3708 = vld [vmem:[#allocation7 + $0x238] sm:$0xff]
        %v3709 = vld [vmem:[#allocation7 + $0x258] sm:$0xff]
        %v3710 = vld [vmem:[#allocation7 + $0x278] sm:$0xff]
        %v3711 = vld [vmem:[#allocation7 + $0x298] sm:$0xff]
        %v3712 = vld [vmem:[#allocation7 + $0x2b8] sm:$0xff]
        %v3713 = vld [vmem:[#allocation7 + $0x2d8] sm:$0xff]
        %v3714 = vld [vmem:[#allocation7 + $0x2f8] sm:$0xff]
        %v3715 = vld [vmem:[#allocation7 + $0x318] sm:$0xff]
        %v3716 = vld [vmem:[#allocation7 + $0x338] sm:$0xff]
        %v3717 = vld [vmem:[#allocation7 + $0x358] sm:$0xff]
        %v3718 = vld [vmem:[#allocation7 + $0x378] sm:$0xff]
        %v3719 = vld [vmem:[#allocation7 + $0x398] sm:$0xff]
        %v3720 = vld [vmem:[#allocation7 + $0x3b8] sm:$0xff]
        %v3721 = vld [vmem:[#allocation7 + $0x3d8] sm:$0xff]
        %v3722 = vld [vmem:[#allocation7 + $0x3f8] sm:$0xff]
        %v3723 = vld [vmem:[#allocation7 + $0x418] sm:$0xff]
        %v3724 = vld [vmem:[#allocation7 + $0x438] sm:$0xff]
        %v3725 = vld [vmem:[#allocation7 + $0x458] sm:$0xff]
        %v3726 = vld [vmem:[#allocation7 + $0x478] sm:$0xff]
        %v3727 = vld [vmem:[#allocation7 + $0x498] sm:$0xff]
        %v3728 = vld [vmem:[#allocation7 + $0x4b8] sm:$0xff]
        %v3729 = vld [vmem:[#allocation7 + $0x4d8] sm:$0xff]
        %v3730 = vld [vmem:[#allocation7 + $0x4f8] sm:$0xff]
        %v3731 = vld [vmem:[#allocation7 + $0x518] sm:$0xff]
        %v3732 = vld [vmem:[#allocation7 + $0x538] sm:$0xff]
        %v3733 = vld [vmem:[#allocation7 + $0x558] sm:$0xff]
        %v3734 = vld [vmem:[#allocation7 + $0x578] sm:$0xff]
        %v3735 = vld [vmem:[#allocation7 + $0x598] sm:$0xff]
        %v3736 = vld [vmem:[#allocation7 + $0x5b8] sm:$0xff]
        %v3737 = vld [vmem:[#allocation7 + $0x5d8] sm:$0xff]
        %v3738 = vld [vmem:[#allocation7 + $0x5f8] sm:$0xff]
        %v3739 = vld [vmem:[#allocation7 + $0x618] sm:$0xff]
        %v3740 = vld [vmem:[#allocation7 + $0x638] sm:$0xff]
        %v3741 = vld [vmem:[#allocation7 + $0x658] sm:$0xff]
        %v3742 = vld [vmem:[#allocation7 + $0x678] sm:$0xff]
        %v3743 = vld [vmem:[#allocation7 + $0x698] sm:$0xff]
        %v3744 = vld [vmem:[#allocation7 + $0x6b8] sm:$0xff]
        %v3745 = vld [vmem:[#allocation7 + $0x6d8] sm:$0xff]
        %v3746 = vld [vmem:[#allocation7 + $0x6f8] sm:$0xff]
        %v3747 = vld [vmem:[#allocation7 + $0x718] sm:$0xff]
        %v3748 = vld [vmem:[#allocation7 + $0x738] sm:$0xff]
        %v3749 = vld [vmem:[#allocation7 + $0x758] sm:$0xff]
        %v3750 = vld [vmem:[#allocation7 + $0x778] sm:$0xff]
        %v3751 = vld [vmem:[#allocation7 + $0x798] sm:$0xff]
        %v3752 = vld [vmem:[#allocation7 + $0x7b8] sm:$0xff]
        %v3753 = vld [vmem:[#allocation7 + $0x7d8] sm:$0xff]
        %v3754 = vld [vmem:[#allocation7 + $0x7f8] sm:$0xff]
        %v3755 = vld [vmem:[%s9 + $0x6] sm:$0x3]
        %v3757 = vlaneseq
        %v3758 = vshrl.u32 %v3757, 7
        %v3759 = vsub.s32 0, %v3758
        %v3760 = vrot.slane %v3755, %v3759
        %v3761 = vlaneseq
        %v3762 = vshrl.u32 %v3761, 7
        %v3763 = vsub.s32 1, %v3762
        %v3764 = vrot.slane %v3755, %v3763
        %v3831 = vunpack.c.l.b16 %v3691
        %v3832 = vunpack.c.h.b16 %v3691
        %v3833 = vunpack.c.l.b16 %v3692
        %v3834 = vunpack.c.h.b16 %v3692
        %v3835 = vunpack.c.l.b16 %v3693
        %v3836 = vunpack.c.h.b16 %v3693
        %v3837 = vunpack.c.l.b16 %v3694
        %v3838 = vunpack.c.h.b16 %v3694
        %v3839 = vunpack.c.l.b16 %v3695
        %v3840 = vunpack.c.h.b16 %v3695
        %v3841 = vunpack.c.l.b16 %v3696
        %v3842 = vunpack.c.h.b16 %v3696
        %v3843 = vunpack.c.l.b16 %v3697
        %v3844 = vunpack.c.h.b16 %v3697
        %v3845 = vunpack.c.l.b16 %v3698
        %v3846 = vunpack.c.h.b16 %v3698
        %v3847 = vunpack.c.l.b16 %v3699
        %v3848 = vunpack.c.h.b16 %v3699
        %v3849 = vunpack.c.l.b16 %v3700
        %v3850 = vunpack.c.h.b16 %v3700
        %v3851 = vunpack.c.l.b16 %v3701
        %v3852 = vunpack.c.h.b16 %v3701
        %v3853 = vunpack.c.l.b16 %v3702
        %v3854 = vunpack.c.h.b16 %v3702
        %v3855 = vunpack.c.l.b16 %v3703
        %v3856 = vunpack.c.h.b16 %v3703
        %v3857 = vunpack.c.l.b16 %v3704
        %v3858 = vunpack.c.h.b16 %v3704
        %v3859 = vunpack.c.l.b16 %v3705
        %v3860 = vunpack.c.h.b16 %v3705
        %v3861 = vunpack.c.l.b16 %v3706
        %v3862 = vunpack.c.h.b16 %v3706
        %v3863 = vunpack.c.l.b16 %v3707
        %v3864 = vunpack.c.h.b16 %v3707
        %v3865 = vunpack.c.l.b16 %v3708
        %v3866 = vunpack.c.h.b16 %v3708
        %v3867 = vunpack.c.l.b16 %v3709
        %v3868 = vunpack.c.h.b16 %v3709
        %v3869 = vunpack.c.l.b16 %v3710
        %v3870 = vunpack.c.h.b16 %v3710
        %v3871 = vunpack.c.l.b16 %v3711
        %v3872 = vunpack.c.h.b16 %v3711
        %v3873 = vunpack.c.l.b16 %v3712
        %v3874 = vunpack.c.h.b16 %v3712
        %v3875 = vunpack.c.l.b16 %v3713
        %v3876 = vunpack.c.h.b16 %v3713
        %v3877 = vunpack.c.l.b16 %v3714
        %v3878 = vunpack.c.h.b16 %v3714
        %v3879 = vunpack.c.l.b16 %v3715
        %v3880 = vunpack.c.h.b16 %v3715
        %v3881 = vunpack.c.l.b16 %v3716
        %v3882 = vunpack.c.h.b16 %v3716
        %v3883 = vunpack.c.l.b16 %v3717
        %v3884 = vunpack.c.h.b16 %v3717
        %v3885 = vunpack.c.l.b16 %v3718
        %v3886 = vunpack.c.h.b16 %v3718
        %v3887 = vunpack.c.l.b16 %v3719
        %v3888 = vunpack.c.h.b16 %v3719
        %v3889 = vunpack.c.l.b16 %v3720
        %v3890 = vunpack.c.h.b16 %v3720
        %v3891 = vunpack.c.l.b16 %v3721
        %v3892 = vunpack.c.h.b16 %v3721
        %v3893 = vunpack.c.l.b16 %v3722
        %v3894 = vunpack.c.h.b16 %v3722
        %v3895 = vunpack.c.l.b16 %v3723
        %v3896 = vunpack.c.h.b16 %v3723
        %v3897 = vunpack.c.l.b16 %v3724
        %v3898 = vunpack.c.h.b16 %v3724
        %v3899 = vunpack.c.l.b16 %v3725
        %v3900 = vunpack.c.h.b16 %v3725
        %v3901 = vunpack.c.l.b16 %v3726
        %v3902 = vunpack.c.h.b16 %v3726
        %v3903 = vunpack.c.l.b16 %v3727
        %v3904 = vunpack.c.h.b16 %v3727
        %v3905 = vunpack.c.l.b16 %v3728
        %v3906 = vunpack.c.h.b16 %v3728
        %v3907 = vunpack.c.l.b16 %v3729
        %v3908 = vunpack.c.h.b16 %v3729
        %v3909 = vunpack.c.l.b16 %v3730
        %v3910 = vunpack.c.h.b16 %v3730
        %v3911 = vunpack.c.l.b16 %v3731
        %v3912 = vunpack.c.h.b16 %v3731
        %v3913 = vunpack.c.l.b16 %v3732
        %v3914 = vunpack.c.h.b16 %v3732
        %v3915 = vunpack.c.l.b16 %v3733
        %v3916 = vunpack.c.h.b16 %v3733
        %v3917 = vunpack.c.l.b16 %v3734
        %v3918 = vunpack.c.h.b16 %v3734
        %v3919 = vunpack.c.l.b16 %v3735
        %v3920 = vunpack.c.h.b16 %v3735
        %v3921 = vunpack.c.l.b16 %v3736
        %v3922 = vunpack.c.h.b16 %v3736
        %v3923 = vunpack.c.l.b16 %v3737
        %v3924 = vunpack.c.h.b16 %v3737
        %v3925 = vunpack.c.l.b16 %v3738
        %v3926 = vunpack.c.h.b16 %v3738
        %v3927 = vunpack.c.l.b16 %v3739
        %v3928 = vunpack.c.h.b16 %v3739
        %v3929 = vunpack.c.l.b16 %v3740
        %v3930 = vunpack.c.h.b16 %v3740
        %v3931 = vunpack.c.l.b16 %v3741
        %v3932 = vunpack.c.h.b16 %v3741
        %v3933 = vunpack.c.l.b16 %v3742
        %v3934 = vunpack.c.h.b16 %v3742
        %v3935 = vunpack.c.l.b16 %v3743
        %v3936 = vunpack.c.h.b16 %v3743
        %v3937 = vunpack.c.l.b16 %v3744
        %v3938 = vunpack.c.h.b16 %v3744
        %v3939 = vunpack.c.l.b16 %v3745
        %v3940 = vunpack.c.h.b16 %v3745
        %v3941 = vunpack.c.l.b16 %v3746
        %v3942 = vunpack.c.h.b16 %v3746
        %v3943 = vunpack.c.l.b16 %v3747
        %v3944 = vunpack.c.h.b16 %v3747
        %v3945 = vunpack.c.l.b16 %v3748
        %v3946 = vunpack.c.h.b16 %v3748
        %v3947 = vunpack.c.l.b16 %v3749
        %v3948 = vunpack.c.h.b16 %v3749
        %v3949 = vunpack.c.l.b16 %v3750
        %v3950 = vunpack.c.h.b16 %v3750
        %v3951 = vunpack.c.l.b16 %v3751
        %v3952 = vunpack.c.h.b16 %v3751
        %v3953 = vunpack.c.l.b16 %v3752
        %v3954 = vunpack.c.h.b16 %v3752
        %v3955 = vunpack.c.l.b16 %v3753
        %v3956 = vunpack.c.h.b16 %v3753
        %v3957 = vunpack.c.l.b16 %v3754
        %v3958 = vunpack.c.h.b16 %v3754
        %v3959 = vpack.c.b16 %v3833, %v3831
        %v3960 = vpack.c.b16 %v3834, %v3832
        %v3961 = vpack.c.b16 %v3837, %v3835
        %v3962 = vpack.c.b16 %v3838, %v3836
        %v3963 = vpack.c.b16 %v3841, %v3839
        %v3964 = vpack.c.b16 %v3842, %v3840
        %v3965 = vpack.c.b16 %v3845, %v3843
        %v3966 = vpack.c.b16 %v3846, %v3844
        %v3967 = vpack.c.b16 %v3849, %v3847
        %v3968 = vpack.c.b16 %v3850, %v3848
        %v3969 = vpack.c.b16 %v3853, %v3851
        %v3970 = vpack.c.b16 %v3854, %v3852
        %v3971 = vpack.c.b16 %v3857, %v3855
        %v3972 = vpack.c.b16 %v3858, %v3856
        %v3973 = vpack.c.b16 %v3861, %v3859
        %v3974 = vpack.c.b16 %v3862, %v3860
        %v3975 = vpack.c.b16 %v3865, %v3863
        %v3976 = vpack.c.b16 %v3866, %v3864
        %v3977 = vpack.c.b16 %v3869, %v3867
        %v3978 = vpack.c.b16 %v3870, %v3868
        %v3979 = vpack.c.b16 %v3873, %v3871
        %v3980 = vpack.c.b16 %v3874, %v3872
        %v3981 = vpack.c.b16 %v3877, %v3875
        %v3982 = vpack.c.b16 %v3878, %v3876
        %v3983 = vpack.c.b16 %v3881, %v3879
        %v3984 = vpack.c.b16 %v3882, %v3880
        %v3985 = vpack.c.b16 %v3885, %v3883
        %v3986 = vpack.c.b16 %v3886, %v3884
        %v3987 = vpack.c.b16 %v3889, %v3887
        %v3988 = vpack.c.b16 %v3890, %v3888
        %v3989 = vpack.c.b16 %v3893, %v3891
        %v3990 = vpack.c.b16 %v3894, %v3892
        %v3991 = vpack.c.b16 %v3897, %v3895
        %v3992 = vpack.c.b16 %v3898, %v3896
        %v3993 = vpack.c.b16 %v3901, %v3899
        %v3994 = vpack.c.b16 %v3902, %v3900
        %v3995 = vpack.c.b16 %v3905, %v3903
        %v3996 = vpack.c.b16 %v3906, %v3904
        %v3997 = vpack.c.b16 %v3909, %v3907
        %v3998 = vpack.c.b16 %v3910, %v3908
        %v3999 = vpack.c.b16 %v3913, %v3911
        %v4000 = vpack.c.b16 %v3914, %v3912
        %v4001 = vpack.c.b16 %v3917, %v3915
        %v4002 = vpack.c.b16 %v3918, %v3916
        %v4003 = vpack.c.b16 %v3921, %v3919
        %v4004 = vpack.c.b16 %v3922, %v3920
        %v4005 = vpack.c.b16 %v3925, %v3923
        %v4006 = vpack.c.b16 %v3926, %v3924
        %v4007 = vpack.c.b16 %v3929, %v3927
        %v4008 = vpack.c.b16 %v3930, %v3928
        %v4009 = vpack.c.b16 %v3933, %v3931
        %v4010 = vpack.c.b16 %v3934, %v3932
        %v4011 = vpack.c.b16 %v3937, %v3935
        %v4012 = vpack.c.b16 %v3938, %v3936
        %v4013 = vpack.c.b16 %v3941, %v3939
        %v4014 = vpack.c.b16 %v3942, %v3940
        %v4015 = vpack.c.b16 %v3945, %v3943
        %v4016 = vpack.c.b16 %v3946, %v3944
        %v4017 = vpack.c.b16 %v3949, %v3947
        %v4018 = vpack.c.b16 %v3950, %v3948
        %v4019 = vpack.c.b16 %v3953, %v3951
        %v4020 = vpack.c.b16 %v3954, %v3952
        %v4021 = vpack.c.b16 %v3957, %v3955
        %v4022 = vpack.c.b16 %v3958, %v3956
        %4087 = vmatprep.subr.bf16.mxu0 %v3960
        %4088 = vmatpush1.bf16.msra.mxu0 %v3959
        %4089 = vmatprep.subr.bf16.mxu0 %v3962
        %4090 = vmatpush1.bf16.msra.mxu0 %v3961
        %4091 = vmatprep.subr.bf16.mxu0 %v3964
        %4092 = vmatpush1.bf16.msra.mxu0 %v3963
        %4093 = vmatprep.subr.bf16.mxu0 %v3966
        %4094 = vmatpush1.bf16.msra.mxu0 %v3965
        %4095 = vmatprep.subr.bf16.mxu0 %v3968
        %4096 = vmatpush1.bf16.msra.mxu0 %v3967
        %4097 = vmatprep.subr.bf16.mxu0 %v3970
        %4098 = vmatpush1.bf16.msra.mxu0 %v3969
        %4099 = vmatprep.subr.bf16.mxu0 %v3972
        %4100 = vmatpush1.bf16.msra.mxu0 %v3971
        %4101 = vmatprep.subr.bf16.mxu0 %v3974
        %4102 = vmatpush1.bf16.msra.mxu0 %v3973
        %4103 = vmatprep.subr.bf16.mxu0 %v3976
        %4104 = vmatpush1.bf16.msra.mxu0 %v3975
        %4105 = vmatprep.subr.bf16.mxu0 %v3978
        %4106 = vmatpush1.bf16.msra.mxu0 %v3977
        %4107 = vmatprep.subr.bf16.mxu0 %v3980
        %4108 = vmatpush1.bf16.msra.mxu0 %v3979
        %4109 = vmatprep.subr.bf16.mxu0 %v3982
        %4110 = vmatpush1.bf16.msra.mxu0 %v3981
        %4111 = vmatprep.subr.bf16.mxu0 %v3984
        %4112 = vmatpush1.bf16.msra.mxu0 %v3983
        %4113 = vmatprep.subr.bf16.mxu0 %v3986
        %4114 = vmatpush1.bf16.msra.mxu0 %v3985
        %4115 = vmatprep.subr.bf16.mxu0 %v3988
        %4116 = vmatpush1.bf16.msra.mxu0 %v3987
        %4117 = vmatprep.subr.bf16.mxu0 %v3990
        %4118 = vmatpush1.bf16.msra.mxu0 %v3989
        %4119 = vmatprep.mubr.bf16.mxu0 %v1911
        %4120 = vmatmul.mubr.bf16.gmra.mrb[0].mxu0 %v1910
        %v4121 = vpop.f32.mrb[0].mxu0
        %v4122 = vadd.f32 %v3760, %v4121
        %v4123 = vpop.f32.mrb[0].mxu0
        %v4124 = vadd.f32 %v3764, %v4123
        %v4125 = vpop.f32.mrb[0].mxu0
        %v4126 = vadd.f32 %v3760, %v4125
        %v4127 = vpop.f32.mrb[0].mxu0
        %v4128 = vadd.f32 %v3764, %v4127
        %4129 = vmatprep.mubr.bf16.mxu0 %v1915
        %4130 = vmatmul.mubr.bf16.gmra.mrb[0].mxu0 %v1914
        %v4131 = vpop.f32.mrb[0].mxu0
        %v4132 = vadd.f32 %v3760, %v4131
        %v4133 = vpop.f32.mrb[0].mxu0
        %v4134 = vadd.f32 %v3764, %v4133
        %v4135 = vpop.f32.mrb[0].mxu0
        %v4136 = vadd.f32 %v3760, %v4135
        %v4137 = vpop.f32.mrb[0].mxu0
        %v4138 = vadd.f32 %v3764, %v4137
        %4139 = vmatprep.mubr.bf16.mxu0 %v1919
        %4140 = vmatmul.mubr.bf16.gmra.mrb[0].mxu0 %v1918
        %v4141 = vpop.f32.mrb[0].mxu0
        %v4142 = vadd.f32 %v3760, %v4141
        %v4143 = vpop.f32.mrb[0].mxu0
        %v4144 = vadd.f32 %v3764, %v4143
        %v4145 = vpop.f32.mrb[0].mxu0
        %v4146 = vadd.f32 %v3760, %v4145
        %v4147 = vpop.f32.mrb[0].mxu0
        %v4148 = vadd.f32 %v3764, %v4147
        %4149 = vmatprep.mubr.bf16.mxu0 %v1923
        %4150 = vmatmul.mubr.bf16.gmra.mrb[0].mxu0 %v1922
        %v4151 = vpop.f32.mrb[0].mxu0
        %v4152 = vadd.f32 %v3760, %v4151
        %v4153 = vpop.f32.mrb[0].mxu0
        %v4154 = vadd.f32 %v3764, %v4153
        %v4155 = vpop.f32.mrb[0].mxu0
        %v4156 = vadd.f32 %v3760, %v4155
        %v4157 = vpop.f32.mrb[0].mxu0
        %v4158 = vadd.f32 %v3764, %v4157
        %4159 = vdwg.mxu0
        %4160 = vmatprep.subr.bf16.mxu0 %v3992
        %4161 = vmatpush1.bf16.msra.mxu0 %v3991
        %4162 = vmatprep.subr.bf16.mxu0 %v3994
        %4163 = vmatpush1.bf16.msra.mxu0 %v3993
        %4164 = vmatprep.subr.bf16.mxu0 %v3996
        %4165 = vmatpush1.bf16.msra.mxu0 %v3995
        %4166 = vmatprep.subr.bf16.mxu0 %v3998
        %4167 = vmatpush1.bf16.msra.mxu0 %v3997
        %4168 = vmatprep.subr.bf16.mxu0 %v4000
        %4169 = vmatpush1.bf16.msra.mxu0 %v3999
        %4170 = vmatprep.subr.bf16.mxu0 %v4002
        %4171 = vmatpush1.bf16.msra.mxu0 %v4001
        %4172 = vmatprep.subr.bf16.mxu0 %v4004
        %4173 = vmatpush1.bf16.msra.mxu0 %v4003
        %4174 = vmatprep.subr.bf16.mxu0 %v4006
        %4175 = vmatpush1.bf16.msra.mxu0 %v4005
        %4176 = vmatprep.subr.bf16.mxu0 %v4008
        %4177 = vmatpush1.bf16.msra.mxu0 %v4007
        %4178 = vmatprep.subr.bf16.mxu0 %v4010
        %4179 = vmatpush1.bf16.msra.mxu0 %v4009
        %4180 = vmatprep.subr.bf16.mxu0 %v4012
        %4181 = vmatpush1.bf16.msra.mxu0 %v4011
        %4182 = vmatprep.subr.bf16.mxu0 %v4014
        %4183 = vmatpush1.bf16.msra.mxu0 %v4013
        %4184 = vmatprep.subr.bf16.mxu0 %v4016
        %4185 = vmatpush1.bf16.msra.mxu0 %v4015
        %4186 = vmatprep.subr.bf16.mxu0 %v4018
        %4187 = vmatpush1.bf16.msra.mxu0 %v4017
        %4188 = vmatprep.subr.bf16.mxu0 %v4020
        %4189 = vmatpush1.bf16.msra.mxu0 %v4019
        %4190 = vmatprep.subr.bf16.mxu0 %v4022
        %4191 = vmatpush1.bf16.msra.mxu0 %v4021
        %4192 = vmatprep.mubr.bf16.mxu0 %v1913
        %4193 = vmatmul.mubr.bf16.gmra.mrb[0].mxu0 %v1912
        %v4194 = vpop.f32.mrb[0].mxu0
        %v4195 = vadd.f32 %v4122, %v4194
        %v4196 = vpop.f32.mrb[0].mxu0
        %v4197 = vadd.f32 %v4124, %v4196
        %v4198 = vpop.f32.mrb[0].mxu0
        %v4199 = vadd.f32 %v4126, %v4198
        %v4200 = vpop.f32.mrb[0].mxu0
        %v4201 = vadd.f32 %v4128, %v4200
        %4202 = vmatprep.mubr.bf16.mxu0 %v1917
        %4203 = vmatmul.mubr.bf16.gmra.mrb[0].mxu0 %v1916
        %v4204 = vpop.f32.mrb[0].mxu0
        %v4205 = vadd.f32 %v4132, %v4204
        %v4206 = vpop.f32.mrb[0].mxu0
        %v4207 = vadd.f32 %v4134, %v4206
        %v4208 = vpop.f32.mrb[0].mxu0
        %v4209 = vadd.f32 %v4136, %v4208
        %v4210 = vpop.f32.mrb[0].mxu0
        %v4211 = vadd.f32 %v4138, %v4210
        %4212 = vmatprep.mubr.bf16.mxu0 %v1921
        %4213 = vmatmul.mubr.bf16.gmra.mrb[0].mxu0 %v1920
        %v4214 = vpop.f32.mrb[0].mxu0
        %v4215 = vadd.f32 %v4142, %v4214
        %v4216 = vpop.f32.mrb[0].mxu0
        %v4217 = vadd.f32 %v4144, %v4216
        %v4218 = vpop.f32.mrb[0].mxu0
        %v4219 = vadd.f32 %v4146, %v4218
        %v4220 = vpop.f32.mrb[0].mxu0
        %v4221 = vadd.f32 %v4148, %v4220
        %4222 = vmatprep.mubr.bf16.mxu0 %v1925
        %4223 = vmatmul.mubr.bf16.gmra.mrb[0].mxu0 %v1924
        %v4224 = vpop.f32.mrb[0].mxu0
        %v4225 = vadd.f32 %v4152, %v4224
        %v4226 = vpop.f32.mrb[0].mxu0
        %v4227 = vadd.f32 %v4154, %v4226
        %v4228 = vpop.f32.mrb[0].mxu0
        %v4229 = vadd.f32 %v4156, %v4228
        %v4230 = vpop.f32.mrb[0].mxu0
        %v4231 = vadd.f32 %v4158, %v4230
        %4232 = vdwg.mxu0
        %v4233 = vmax.f32 %v4195, %v4205
        %v4234 = vmax.f32 %v4199, %v4209
        %v4235 = vmax.f32 %v4233, %v4215
        %v4236 = vmax.f32 %v4234, %v4219
        %v4237 = vmax.f32 %v4235, %v4225
        %v4238 = vmax.f32 %v4236, %v4229
        %v4239 = vmax.f32 %v4237, %v4238
        %v4240 = vrot.slane %v4239, 4
        %v4241 = vmax.f32 %v4239, %v4240
        %v4242 = vrot.slane %v4241, 2
        %v4243 = vmax.f32 %v4241, %v4242
        %v4244 = vrot.slane %v4243, 1
        %v4245 = vmax.f32 %v4243, %v4244
        %v4246 = vmax.f32 %v4197, %v4207
        %v4247 = vmax.f32 %v4201, %v4211
        %v4248 = vmax.f32 %v4246, %v4217
        %v4249 = vmax.f32 %v4247, %v4221
        %v4250 = vmax.f32 %v4248, %v4227
        %v4251 = vmax.f32 %v4249, %v4231
        %v4252 = vmax.f32 %v4250, %v4251
        %v4253 = vrot.slane %v4252, 4
        %v4254 = vmax.f32 %v4252, %v4253
        %v4255 = vrot.slane %v4254, 2
        %v4256 = vmax.f32 %v4254, %v4255
        %v4257 = vrot.slane %v4256, 1
        %v4258 = vmax.f32 %v4256, %v4257
        %v4261 = vcombine.low %v4245, %v4258
        %v4263 = vunpack.c.l.s4 1966171168
        %v4264 = vunpack.c.0.s8 %v4263
        %v4265 = vlaneseq
        %v4266 = vshrl.u32 %v4265, 7
        %v4267 = vsub.s32 %v4264, %v4266
        %v4268 = vrot.slane %v4261, %v4267
        %v4270 = vunpack.c.l.s4 1966171168
        %v4271 = vunpack.c.0.s8 %v4270
        %v4272 = vlaneseq
        %v4273 = vshrl.u32 %v4272, 7
        %v4274 = vsub.s32 %v4271, %v4273
        %v4275 = vrot.slane %v4268, %v4274
        %4277 = vst.msk [vmem:[%s396 + $0x6] sm:$0x3] %vm2515, %v4275
        %s4278 = sand.u32 %s249, 1
        %s4279 = scalar_lea.sflag [#allocation4], %s4278
        %s4280 = sand.u32 %s249, 1
        %s4281 = smul.addr %s4280, 8
        %s4282 = scalar_lea.vmem [#allocation8], %s4281
        // Predicated region
        $region73: #{tpu_custom_call.1} parent=59 // pred_check
          %p4283 = pneg %p259
        $region74: #{tpu_custom_call.1} parent=59 // pred_check_branch
          %4285 = sbr.rel (%p4283) target = $region76
        $region75: #{tpu_custom_call.1} parent=59 // pred_region
          %s4287 = ssub.s32 128, 128
          %4288 = vsyncadd %s4279, %s4287
          %s4289 = smul.addr %s26, 8
          %s4290 = smul.addr %s4289, 16
          %s4291 = scalar_lea.hbm %s10, %s4290
          %s4293 = sshll.u32 %s4282, 4
          %s4294 = int_to_ptr.vmem [resolvable:$true] %s4293
          %4296 = dma.vmem_to_hbm [thread:$0]  %s4294, 128, %s4291, %s4279
        $region76: #{tpu_custom_call.1} parent=59 // pred_fallthru
          _
      $region60: #{tpu_custom_call.1} parent=5 // pred_fallthru
        _
      %p4297 = scmp.le.s32.totalorder 2, %s21
      // Predicated region
      $region77: #{tpu_custom_call.1} parent=5 // pred_check
        %p4298 = pneg %p4297
      $region78: #{tpu_custom_call.1} parent=5 // pred_check_branch
        %4300 = sbr.rel (%p4298) target = $region80
      $region79: #{tpu_custom_call.1} parent=5 // pred_region
        %s4301 = ssub.s32 %s21, 2
        // Predicated region
        $region81: #{tpu_custom_call.1} parent=79 // pred_check
          %p4302 = pneg %p265
        $region82: #{tpu_custom_call.1} parent=79 // pred_check_branch
          %4304 = sbr.rel (%p4302) target = $region84
        $region83: #{tpu_custom_call.1} parent=79 // pred_region
          %s4305 = sand.u32 %s250, 1
          %s4306 = scalar_lea.sflag [#allocation4], %s4305
          %s4307 = sand.u32 %s250, 1
          %s4308 = smul.addr %s4307, 8
          %s4309 = scalar_lea.vmem [#allocation8], %s4308
          %4310 = dma.done %s4306, 128
        $region84: #{tpu_custom_call.1} parent=79 // pred_fallthru
          _
      $region80: #{tpu_custom_call.1} parent=5 // pred_fallthru
        _
    $region6: #{tpu_custom_call.1} parent=1 // loop_footer
      %s25 = sadd.s32 1, %s21
    $region7: #{tpu_custom_call.1} parent=1 // loop_footer_branch
      %20 = sbr.rel target = $region3
    $region8: #{tpu_custom_call.1} parent=1 // loop_exit
      _
    %4311 = vsyncpa [#allocation3], 1
    %s4312 = scalar_lea.sflag [#allocation3], 1
    %4313 = vsyncpa %s4312, 1
    %4314 = vsyncpa [#allocation6], 1
    %4315 = vsyncpa [#allocation4], 1
    %s4316 = scalar_lea.sflag [#allocation4], 1
    %4317 = vsyncpa %s4316, 1

</llo_original>
